<compile_context>
chip_gen: v7x
topology: tpu7x:2x2x1
jax: 0.10.0
libtpu: 0.0.40
codegen_flags: <defaults>
</compile_context>

<pallas_src>
import functools

import jax
import jax.numpy as jnp
from jax.experimental import pallas as pl
from jax.experimental.pallas import tpu as pltpu

BN_EPS = 1e-5
LANE = 128


def _round_up(x, m):
    return (x + m - 1) // m * m


def _vmem_limit(nbytes):
    # 2x headroom for f32 temps / relayouts; clamp to [32 MiB, 64 MiB] so it is v7x-safe.
    return int(min(max(2 * nbytes, 32 * 1024 * 1024), 64 * 1024 * 1024))


# --------------------------------------------------------------------------- kernels
def _downsample_kernel(xs_ref, w_ref, b_ref, o_ref, *, ho, wo):
    """Stride-2 3x3 conv + folded BN + ReLU on a space-to-depth packed image.

    xs_ref: (1, ho+1, wo+1, k)  bf16   packed padded input (one image), k = rup(4*cin,128)
    w_ref : (4, k, tn)          bf16   folded conv*BN weights, one K-slab per spatial window
    b_ref : (1, tn)             f32    folded bias
    o_ref : (1, ho, wo, tn)     bf16
    """
    k = xs_ref.shape[-1]
    tn = o_ref.shape[-1]
    acc = jnp.zeros((ho * wo, tn), jnp.float32)
    # The 9 conv taps collapse onto 4 windows of the packed image; taps sharing a window are
    # merged along K (phase channels are contiguous) -> 4 dots instead of 9.
    for ra in range(2):
        for ca in range(2):
            tap = xs_ref[0, ra:ra + ho, ca:ca + wo, :].reshape(ho * wo, k)
            acc += jnp.dot(tap, w_ref[2 * ra + ca],
                           preferred_element_type=jnp.float32)
    y = jnp.maximum(acc + b_ref[...], 0.0)
    o_ref[...] = y.reshape(1, ho, wo, tn).astype(o_ref.dtype)


def _residual_chain_kernel(x_ref, w1_ref, b1_ref, w2_ref, b2_ref, o_ref,
                           apad_ref, hpad_ref, *, h, w):
    """One grid step = one ResidualBlock of one image; activation carried in VMEM scratch.

    x_ref : (1, h, w, cp)   bf16  downsample output (read only at block 0)
    w*_ref: (1, 9, cp, cp)  bf16  folded conv*BN weights of the current block
    b*_ref: (1, 1, cp)      f32
    o_ref : (1, h, w, cp)   bf16  written only at the last block
    apad  : (h+2, w+2, cp)  bf16  padded activation (input of the current block), persistent
    hpad  : (h+2, w+2, cp)  bf16  padded conv1 intermediate
    """
    cp = apad_ref.shape[-1]
    b = pl.program_id(1)
    nb = pl.num_programs(1)

    @pl.when(b == 0)
    def _():
        # Zero only the 1-pixel halo (interiors are fully overwritten every step) and load
        # this image's activation into the persistent scratch.
        zrow = jnp.zeros((1, w + 2, cp), jnp.bfloat16)
        zcol = jnp.zeros((h, 1, cp), jnp.bfloat16)
        for ref in (apad_ref, hpad_ref):
            ref[0:1, :, :] = zrow
            ref[h + 1:h + 2, :, :] = zrow
            ref[1:h + 1, 0:1, :] = zcol
            ref[1:h + 1, w + 1:w + 2, :] = zcol
        apad_ref[1:h + 1, 1:w + 1, :] = x_ref[0]

    # conv1 + bn1 + relu (bf16 taps straight off the scratch, f32 accumulate)
    acc1 = jnp.zeros((h * w, cp), jnp.float32)
    for dy in range(3):
        for dx in range(3):
            tap = apad_ref[dy:dy + h, dx:dx + w, :].reshape(h * w, cp)
            acc1 += jnp.dot(tap, w1_ref[0, 3 * dy + dx],
                            preferred_element_type=jnp.float32)
    hid = jnp.maximum(acc1 + b1_ref[0], 0.0)
    hpad_ref[1:h + 1, 1:w + 1, :] = hid.reshape(h, w, cp).astype(jnp.bfloat16)

    # conv2 + bn2 + identity + relu
    acc2 = jnp.zeros((h * w, cp), jnp.float32)
    for dy in range(3):
        for dx in range(3):
            tap = hpad_ref[dy:dy + h, dx:dx + w, :].reshape(h * w, cp)
            acc2 += jnp.dot(tap, w2_ref[0, 3 * dy + dx],
                            preferred_element_type=jnp.float32)
    identity = apad_ref[1:h + 1, 1:w + 1, :].astype(jnp.float32).reshape(h * w, cp)
    y = jnp.maximum(acc2 + b2_ref[0] + identity, 0.0)
    yb = y.reshape(h, w, cp).astype(jnp.bfloat16)

    @pl.when(b < nb - 1)
    def _():
        apad_ref[1:h + 1, 1:w + 1, :] = yb       # feed the next block (stays in VMEM)

    @pl.when(b == nb - 1)
    def _():
        o_ref[...] = yb.reshape(1, h, w, cp)


# ------------------------------------------------------------------------- call sites
def _downsample_conv_call(xs, conv_p, ho, wo):
    n = xs.shape[0]
    k = conv_p["w"].shape[1]
    cout_p = conv_p["w"].shape[2]
    tn = 256 if cout_p % 256 == 0 else LANE      # fill the 256-wide MXU on v6e/v7x
    kernel = functools.partial(_downsample_kernel, ho=ho, wo=wo)
    flops = 2 * n * ho * wo * 4 * k * cout_p
    bytes_accessed = int(xs.size * 2 + n * conv_p["w"].size * 2
                         + n * conv_p["b"].size * 4 + n * ho * wo * cout_p * 2)
    block_bytes = (2 * (ho + 1) * (wo + 1) * k * 2 + 2 * 4 * k * tn * 2
                   + 2 * tn * 4 + 2 * ho * wo * tn * 2 + ho * wo * tn * 4)
    return pl.pallas_call(
        kernel,
        out_shape=jax.ShapeDtypeStruct((n, ho, wo, cout_p), jnp.bfloat16),
        grid=(n, cout_p // tn),
        in_specs=[
            pl.BlockSpec((1, ho + 1, wo + 1, k), lambda i, j: (i, 0, 0, 0)),
            pl.BlockSpec((4, k, tn), lambda i, j: (0, 0, j)),
            pl.BlockSpec((1, tn), lambda i, j: (0, j)),
        ],
        out_specs=pl.BlockSpec((1, ho, wo, tn), lambda i, j: (i, 0, 0, j)),
        compiler_params=pltpu.CompilerParams(
            dimension_semantics=("parallel", "parallel"),
            vmem_limit_bytes=_vmem_limit(block_bytes)),
        cost_estimate=pl.CostEstimate(
            flops=flops, transcendentals=0, bytes_accessed=bytes_accessed),
    )(xs, conv_p["w"], conv_p["b"])


def _residual_chain_call(x, res_p, h, w):
    n, _, _, cp = x.shape
    nb = res_p["w1"].shape[0]
    kernel = functools.partial(_residual_chain_kernel, h=h, w=w)
    flops = 2 * 2 * n * nb * h * w * 9 * cp * cp
    bytes_accessed = int(2 * x.size * 2
                         + n * (res_p["w1"].size + res_p["w2"].size) * 2
                         + n * (res_p["b1"].size + res_p["b2"].size) * 4)
    block_bytes = (2 * 2 * h * w * cp * 2                 # in + out blocks, double buffered
                   + 2 * 2 * 9 * cp * cp * 2              # w1 + w2, double buffered
                   + 2 * (h + 2) * (w + 2) * cp * 2       # apad + hpad scratch (bf16)
                   + 3 * h * w * cp * 4)                  # f32 accumulators / temps
    return pl.pallas_call(
        kernel,
        out_shape=jax.ShapeDtypeStruct((n, h, w, cp), jnp.bfloat16),
        grid=(n, nb),
        in_specs=[
            pl.BlockSpec((1, h, w, cp), lambda i, b: (i, 0, 0, 0)),
            pl.BlockSpec((1, 9, cp, cp), lambda i, b: (b, 0, 0, 0)),
            pl.BlockSpec((1, 1, cp), lambda i, b: (b, 0, 0)),
            pl.BlockSpec((1, 9, cp, cp), lambda i, b: (b, 0, 0, 0)),
            pl.BlockSpec((1, 1, cp), lambda i, b: (b, 0, 0)),
        ],
        out_specs=pl.BlockSpec((1, h, w, cp), lambda i, b: (i, 0, 0, 0)),
        scratch_shapes=[pltpu.VMEM((h + 2, w + 2, cp), jnp.bfloat16),
                        pltpu.VMEM((h + 2, w + 2, cp), jnp.bfloat16)],
        compiler_params=pltpu.CompilerParams(
            dimension_semantics=("parallel", "arbitrary"),
            vmem_limit_bytes=_vmem_limit(block_bytes)),
        cost_estimate=pl.CostEstimate(
            flops=flops, transcendentals=0, bytes_accessed=bytes_accessed),
    )(x, res_p["w1"], res_p["b1"], res_p["w2"], res_p["b2"])


# ------------------------------------------------------------------------------ params
def _fold_bn(w, b):
    """PyTorch-default inference BatchNorm folded into conv weight/bias."""
    scale = 1.0 / jnp.sqrt(1.0 + BN_EPS)          # gamma=1, running_var=1, mean=0, beta=0
    return w * scale, b * scale


def _make_downsample_params(key, cin, cout, k_p, cout_p):
    kw, kb = jax.random.split(key)
    w = jax.random.normal(kw, (cout, cin, 3, 3), jnp.float32) * 0.1
    b = jax.random.normal(kb, (cout,), jnp.float32) * 0.1
    wf, bf = _fold_bn(w, b)
    wt = jnp.transpose(wf, (2, 3, 1, 0))           # (3, 3, cin, cout)
    # Merge the 9 taps into 4 per-window K-slabs over the packed stride-2 phase channels.
    wk = jnp.zeros((4, k_p, cout_p), jnp.float32)
    for ra in range(2):
        for ca in range(2):
            for ry in range(2):
                for rx in range(2):
                    dy, dx = 2 * ra + ry, 2 * ca + rx
                    if dy > 2 or dx > 2:
                        continue
                    ph = 2 * ry + rx
                    wk = wk.at[2 * ra + ca, ph * cin:(ph + 1) * cin, :cout].set(wt[dy, dx])
    bias = jnp.pad(bf, (0, cout_p - cout)).reshape(1, cout_p)
    return ({"w": wk.astype(jnp.bfloat16), "b": bias.astype(jnp.float32)},
            {"w": w, "b": b})


def _make_res_conv_params(key, c, cp):
    kw, kb = jax.random.split(key)
    w = jax.random.normal(kw, (c, c, 3, 3), jnp.float32) * 0.1
    b = jax.random.normal(kb, (c,), jnp.float32) * 0.1
    wf, bf = _fold_bn(w, b)
    wk = jnp.transpose(wf, (2, 3, 1, 0)).reshape(9, c, c)    # (tap, cin, cout)
    wk = jnp.pad(wk, ((0, 0), (0, cp - c), (0, cp - c)))
    bias = jnp.pad(bf, (0, cp - c)).reshape(1, cp)
    return wk.astype(jnp.bfloat16), bias.astype(jnp.float32), {"w": w, "b": b}


def init_downsample_block(key, in_channels, out_channels, num_blocks):
    """Returns (kernel params with BN folded in, raw params for the f32 reference)."""
    # TODO(synk): training-mode BatchNorm (batch statistics) is not implemented.
    k_p = _round_up(4 * in_channels, LANE)        # packed stride-2 phases, padded once
    cout_p = _round_up(out_channels, LANE)
    keys = jax.random.split(key, 1 + 2 * max(num_blocks, 1))
    conv_p, conv_raw = _make_downsample_params(keys[0], in_channels, out_channels,
                                               k_p, cout_p)
    w1s, b1s, w2s, b2s, blocks_raw = [], [], [], [], []
    for i in range(num_blocks):
        w1, b1, r1 = _make_res_conv_params(keys[1 + 2 * i], out_channels, cout_p)
        w2, b2, r2 = _make_res_conv_params(keys[2 + 2 * i], out_channels, cout_p)
        w1s.append(w1); b1s.append(b1); w2s.append(w2); b2s.append(b2)
        blocks_raw.append({"conv1": r1, "conv2": r2})
    params = {"conv": conv_p}
    if num_blocks > 0:
        params["res"] = {"w1": jnp.stack(w1s), "b1": jnp.stack(b1s),
                         "w2": jnp.stack(w2s), "b2": jnp.stack(b2s)}
    raw = {"conv": conv_raw, "blocks": blocks_raw}
    return params, raw


# ----------------------------------------------------------------------------- forward
def downsample_block_forward(x_nchw, params, *, out_channels):
    n, cin, hh, ww = x_nchw.shape
    assert hh % 2 == 0 and ww % 2 == 0  # TODO(synk): odd spatial sizes not handled
    ho, wo = hh // 2, ww // 2
    k_p = params["conv"]["w"].shape[1]

    # NCHW -> NHWC bf16, zero-pad (conv padding=1), then space-to-depth pack the stride-2
    # phases (phases first, ONE lane pad) so the stride-2 conv is 4 unit-stride window dots.
    x = jnp.transpose(x_nchw, (0, 2, 3, 1)).astype(jnp.bfloat16)
    xp = jnp.pad(x, ((0, 0), (1, 1), (1, 1), (0, 0)))
    xs = xp.reshape(n, ho + 1, 2, wo + 1, 2, cin)
    xs = jnp.transpose(xs, (0, 1, 3, 2, 4, 5)).reshape(n, ho + 1, wo + 1, 4 * cin)
    xs = jnp.pad(xs, ((0, 0), (0, 0), (0, 0), (0, k_p - 4 * cin)))

    y = _downsample_conv_call(xs, params["conv"], ho, wo)      # (n, ho, wo, cout_p) bf16
    if "res" in params:
        y = _residual_chain_call(y, params["res"], ho, wo)     # all blocks, one pallas_call

    out = y[:, :, :, :out_channels].astype(jnp.float32)        # strip channel padding
    return jnp.transpose(out, (0, 3, 1, 2))                    # NHWC -> NCHW


# -------------------------------------------------------------- pure-JAX f32 reference
def reference_forward(x, raw):
    def conv_bn(x, p, stride):
        y = jax.lax.conv_general_dilated(
            x, p["w"], window_strides=(stride, stride), padding=((1, 1), (1, 1)),
            dimension_numbers=("NCHW", "OIHW", "NCHW"))
        y = y + p["b"][None, :, None, None]
        return y / jnp.sqrt(1.0 + BN_EPS)        # PyTorch-default inference BatchNorm
    y = jax.nn.relu(conv_bn(x, raw["conv"], 2))
    for blk in raw["blocks"]:
        h = jax.nn.relu(conv_bn(y, blk["conv1"], 1))
        h = conv_bn(h, blk["conv2"], 1)
        y = jax.nn.relu(h + y)
    return y


# -------------------------------------------------------------------------------- main
if __name__ == "__main__":
    key = jax.random.PRNGKey(0)
    k_x, k_p = jax.random.split(key)

    batch, in_channels, out_channels, num_blocks, spatial = 2, 4, 8, 2, 16
    x = jax.random.normal(k_x, (batch, in_channels, spatial, spatial), jnp.float32)
    params, raw = init_downsample_block(k_p, in_channels, out_channels, num_blocks)

    fwd = jax.jit(functools.partial(downsample_block_forward,
                                    out_channels=out_channels))
    out = fwd(x, params)
    jax.block_until_ready(out)

    assert out.shape == (batch, out_channels, spatial // 2, spatial // 2), out.shape
    assert bool(jnp.all(out >= 0.0))             # final ReLU
    assert bool(jnp.all(jnp.isfinite(out)))

    # Loose tolerance: activations/matmuls run in bf16, reference is f32.
    ref = reference_forward(x, raw)
    max_err = float(jnp.max(jnp.abs(out - ref)))
    mean_err = float(jnp.mean(jnp.abs(out - ref)))
    assert max_err < 2e-1 and mean_err < 2e-2, (max_err, mean_err)
    print("KERNEL_OK")
</pallas_src>

<mosaic_0001>
module attributes {stable_mosaic.version = 11 : i64} {
  func.func @_downsample_kernel(%arg0: i32, %arg1: i32, %arg2: memref<1x9x9x128xbf16, #tpu.memory_space<vmem>>, %arg3: memref<4x128x128xbf16, #tpu.memory_space<vmem>>, %arg4: memref<1x128xf32, #tpu.memory_space<vmem>>, %arg5: memref<1x8x8x128xbf16, #tpu.memory_space<vmem>>) attributes {dimension_semantics = [#tpu.dimension_semantics<parallel>, #tpu.dimension_semantics<parallel>], iteration_bounds = array<i64: 2, 1>, scalar_prefetch = 0 : i64, scratch_operands = 0 : i64, tpu.core_type = #tpu.core_type<tc>, window_params = [{transform_indices = @transform_0, window_bounds = array<i64: 1, 9, 9, 128>}, {transform_indices = @transform_1, window_bounds = array<i64: 4, 128, 128>}, {transform_indices = @transform_2, window_bounds = array<i64: 1, 128>}, {transform_indices = @transform_3, window_bounds = array<i64: 1, 8, 8, 128>}]} {
    %cst = arith.constant 0.000000e+00 : f32
    %0 = vector.broadcast %cst : f32 to vector<64x128xf32>
    %c0 = arith.constant 0 : index
    %c0_0 = arith.constant 0 : index
    %c0_1 = arith.constant 0 : index
    %c0_2 = arith.constant 0 : index
    %1 = vector.load %arg2[%c0, %c0_0, %c0_1, %c0_2] : memref<1x9x9x128xbf16, #tpu.memory_space<vmem>>, vector<1x8x8x128xbf16>
    %2 = vector.shape_cast %1 : vector<1x8x8x128xbf16> to vector<8x8x128xbf16>
    %3 = vector.shape_cast %2 : vector<8x8x128xbf16> to vector<64x128xbf16>
    %c0_3 = arith.constant 0 : index
    %c0_4 = arith.constant 0 : index
    %c0_5 = arith.constant 0 : index
    %4 = vector.load %arg3[%c0_3, %c0_4, %c0_5] : memref<4x128x128xbf16, #tpu.memory_space<vmem>>, vector<1x128x128xbf16>
    %5 = vector.shape_cast %4 : vector<1x128x128xbf16> to vector<128x128xbf16>
    %cst_6 = arith.constant dense<0.000000e+00> : vector<64x128xf32>
    %6 = tpu.matmul %3, %5, %cst_6 {dimension_numbers = #tpu.dot_dimension_numbers<[1], [0], [0], [1], [0, 0, 1, 1], [], []>} : vector<64x128xbf16>, vector<128x128xbf16>, vector<64x128xf32> -> vector<64x128xf32>
    %7 = arith.addf %0, %6 : vector<64x128xf32>
    %c0_7 = arith.constant 0 : index
    %c0_8 = arith.constant 0 : index
    %c1 = arith.constant 1 : index
    %c0_9 = arith.constant 0 : index
    %8 = vector.load %arg2[%c0_7, %c0_8, %c1, %c0_9] : memref<1x9x9x128xbf16, #tpu.memory_space<vmem>>, vector<1x8x8x128xbf16>
    %9 = vector.shape_cast %8 : vector<1x8x8x128xbf16> to vector<8x8x128xbf16>
    %10 = vector.shape_cast %9 : vector<8x8x128xbf16> to vector<64x128xbf16>
    %c1_10 = arith.constant 1 : index
    %c0_11 = arith.constant 0 : index
    %c0_12 = arith.constant 0 : index
    %11 = vector.load %arg3[%c1_10, %c0_11, %c0_12] : memref<4x128x128xbf16, #tpu.memory_space<vmem>>, vector<1x128x128xbf16>
    %12 = vector.shape_cast %11 : vector<1x128x128xbf16> to vector<128x128xbf16>
    %cst_13 = arith.constant dense<0.000000e+00> : vector<64x128xf32>
    %13 = tpu.matmul %10, %12, %cst_13 {dimension_numbers = #tpu.dot_dimension_numbers<[1], [0], [0], [1], [0, 0, 1, 1], [], []>} : vector<64x128xbf16>, vector<128x128xbf16>, vector<64x128xf32> -> vector<64x128xf32>
    %14 = arith.addf %7, %13 : vector<64x128xf32>
    %c0_14 = arith.constant 0 : index
    %c1_15 = arith.constant 1 : index
    %c0_16 = arith.constant 0 : index
    %c0_17 = arith.constant 0 : index
    %15 = vector.load %arg2[%c0_14, %c1_15, %c0_16, %c0_17] : memref<1x9x9x128xbf16, #tpu.memory_space<vmem>>, vector<1x8x8x128xbf16>
    %16 = vector.shape_cast %15 : vector<1x8x8x128xbf16> to vector<8x8x128xbf16>
    %17 = vector.shape_cast %16 : vector<8x8x128xbf16> to vector<64x128xbf16>
    %c2 = arith.constant 2 : index
    %c0_18 = arith.constant 0 : index
    %c0_19 = arith.constant 0 : index
    %18 = vector.load %arg3[%c2, %c0_18, %c0_19] : memref<4x128x128xbf16, #tpu.memory_space<vmem>>, vector<1x128x128xbf16>
    %19 = vector.shape_cast %18 : vector<1x128x128xbf16> to vector<128x128xbf16>
    %cst_20 = arith.constant dense<0.000000e+00> : vector<64x128xf32>
    %20 = tpu.matmul %17, %19, %cst_20 {dimension_numbers = #tpu.dot_dimension_numbers<[1], [0], [0], [1], [0, 0, 1, 1], [], []>} : vector<64x128xbf16>, vector<128x128xbf16>, vector<64x128xf32> -> vector<64x128xf32>
    %21 = arith.addf %14, %20 : vector<64x128xf32>
    %c0_21 = arith.constant 0 : index
    %c1_22 = arith.constant 1 : index
    %c1_23 = arith.constant 1 : index
    %c0_24 = arith.constant 0 : index
    %22 = vector.load %arg2[%c0_21, %c1_22, %c1_23, %c0_24] : memref<1x9x9x128xbf16, #tpu.memory_space<vmem>>, vector<1x8x8x128xbf16>
    %23 = vector.shape_cast %22 : vector<1x8x8x128xbf16> to vector<8x8x128xbf16>
    %24 = vector.shape_cast %23 : vector<8x8x128xbf16> to vector<64x128xbf16>
    %c3 = arith.constant 3 : index
    %c0_25 = arith.constant 0 : index
    %c0_26 = arith.constant 0 : index
    %25 = vector.load %arg3[%c3, %c0_25, %c0_26] : memref<4x128x128xbf16, #tpu.memory_space<vmem>>, vector<1x128x128xbf16>
    %26 = vector.shape_cast %25 : vector<1x128x128xbf16> to vector<128x128xbf16>
    %cst_27 = arith.constant dense<0.000000e+00> : vector<64x128xf32>
    %27 = tpu.matmul %24, %26, %cst_27 {dimension_numbers = #tpu.dot_dimension_numbers<[1], [0], [0], [1], [0, 0, 1, 1], [], []>} : vector<64x128xbf16>, vector<128x128xbf16>, vector<64x128xf32> -> vector<64x128xf32>
    %28 = arith.addf %21, %27 : vector<64x128xf32>
    %c0_28 = arith.constant 0 : index
    %c0_29 = arith.constant 0 : index
    %29 = vector.load %arg4[%c0_28, %c0_29] : memref<1x128xf32, #tpu.memory_space<vmem>>, vector<1x128xf32>
    %30 = vector.broadcast %29 : vector<1x128xf32> to vector<64x128xf32>
    %31 = arith.addf %28, %30 : vector<64x128xf32>
    %cst_30 = arith.constant 0.000000e+00 : f32
    %32 = vector.broadcast %cst_30 : f32 to vector<64x128xf32>
    %33 = arith.maximumf %31, %32 : vector<64x128xf32>
    %34 = vector.shape_cast %33 : vector<64x128xf32> to vector<1x8x8x128xf32>
    %35 = arith.truncf %34 : vector<1x8x8x128xf32> to vector<1x8x8x128xbf16>
    %c0_31 = arith.constant 0 : index
    %c0_32 = arith.constant 0 : index
    %c0_33 = arith.constant 0 : index
    %c0_34 = arith.constant 0 : index
    %36 = vector.load %arg5[%c0_31, %c0_32, %c0_33, %c0_34] : memref<1x8x8x128xbf16, #tpu.memory_space<vmem>>, vector<1x8x8x128xbf16>
    tpu.vector_store %arg5[%c0_31, %c0_32, %c0_33, %c0_34], %35 {strides = array<i32>} : memref<1x8x8x128xbf16, #tpu.memory_space<vmem>>, vector<1x8x8x128xbf16>,
    return
  }
  func.func @transform_0(%arg0: i32, %arg1: i32) -> (i32, i32, i32, i32) {
    %c0_i32 = arith.constant 0 : i32
    %c0_i32_0 = arith.constant 0 : i32
    %c0_i32_1 = arith.constant 0 : i32
    %c0_i32_2 = arith.constant 0 : i32
    return %arg0, %c0_i32, %c0_i32_0, %c0_i32_1 : i32, i32, i32, i32
  }
  func.func @transform_1(%arg0: i32, %arg1: i32) -> (i32, i32, i32) {
    %c0_i32 = arith.constant 0 : i32
    %c0_i32_0 = arith.constant 0 : i32
    %c0_i32_1 = arith.constant 0 : i32
    return %c0_i32, %c0_i32_0, %arg1 : i32, i32, i32
  }
  func.func @transform_2(%arg0: i32, %arg1: i32) -> (i32, i32) {
    %c0_i32 = arith.constant 0 : i32
    %c0_i32_0 = arith.constant 0 : i32
    return %c0_i32, %arg1 : i32, i32
  }
  func.func @transform_3(%arg0: i32, %arg1: i32) -> (i32, i32, i32, i32) {
    %c0_i32 = arith.constant 0 : i32
    %c0_i32_0 = arith.constant 0 : i32
    %c0_i32_1 = arith.constant 0 : i32
    return %arg0, %c0_i32, %c0_i32_0, %arg1 : i32, i32, i32, i32
  }
}

module attributes {stable_mosaic.version = 11 : i64} {
  func.func @_residual_chain_kernel(%arg0: i32, %arg1: i32, %arg2: memref<1x8x8x128xbf16, #tpu.memory_space<vmem>>, %arg3: memref<1x9x128x128xbf16, #tpu.memory_space<vmem>>, %arg4: memref<1x1x128xf32, #tpu.memory_space<vmem>>, %arg5: memref<1x9x128x128xbf16, #tpu.memory_space<vmem>>, %arg6: memref<1x1x128xf32, #tpu.memory_space<vmem>>, %arg7: memref<1x8x8x128xbf16, #tpu.memory_space<vmem>>, %arg8: memref<10x10x128xbf16, #tpu.memory_space<vmem>>, %arg9: memref<10x10x128xbf16, #tpu.memory_space<vmem>>) attributes {dimension_semantics = [#tpu.dimension_semantics<parallel>, #tpu.dimension_semantics<arbitrary>], iteration_bounds = array<i64: 2, 2>, scalar_prefetch = 0 : i64, scratch_operands = 2 : i64, tpu.core_type = #tpu.core_type<tc>, window_params = [{transform_indices = @transform_0, window_bounds = array<i64: 1, 8, 8, 128>}, {transform_indices = @transform_1, window_bounds = array<i64: 1, 9, 128, 128>}, {transform_indices = @transform_2, window_bounds = array<i64: 1, 1, 128>}, {transform_indices = @transform_3, window_bounds = array<i64: 1, 9, 128, 128>}, {transform_indices = @transform_4, window_bounds = array<i64: 1, 1, 128>}, {transform_indices = @transform_5, window_bounds = array<i64: 1, 8, 8, 128>}]} {
    %c0_i32 = arith.constant 0 : i32
    %0 = arith.cmpi eq, %arg1, %c0_i32 : i32
    %1 = arith.extui %0 : i1 to i32
    %c0_i32_0 = arith.constant 0 : i32
    %2 = arith.cmpi ne, %1, %c0_i32_0 : i32
    scf.if %2 {
      %cst_154 = arith.constant 0.000000e+00 : bf16
      %140 = vector.broadcast %cst_154 : bf16 to vector<1x10x128xbf16>
      %cst_155 = arith.constant 0.000000e+00 : bf16
      %141 = vector.broadcast %cst_155 : bf16 to vector<8x1x128xbf16>
      %c0_156 = arith.constant 0 : index
      %c0_157 = arith.constant 0 : index
      %c0_158 = arith.constant 0 : index
      %142 = vector.load %arg8[%c0_156, %c0_157, %c0_158] : memref<10x10x128xbf16, #tpu.memory_space<vmem>>, vector<1x10x128xbf16>
      tpu.vector_store %arg8[%c0_156, %c0_157, %c0_158], %140 {strides = array<i32>} : memref<10x10x128xbf16, #tpu.memory_space<vmem>>, vector<1x10x128xbf16>,
      %c9 = arith.constant 9 : index
      %c0_159 = arith.constant 0 : index
      %c0_160 = arith.constant 0 : index
      %143 = vector.load %arg8[%c9, %c0_159, %c0_160] : memref<10x10x128xbf16, #tpu.memory_space<vmem>>, vector<1x10x128xbf16>
      tpu.vector_store %arg8[%c9, %c0_159, %c0_160], %140 {strides = array<i32>} : memref<10x10x128xbf16, #tpu.memory_space<vmem>>, vector<1x10x128xbf16>,
      %c1_161 = arith.constant 1 : index
      %c0_162 = arith.constant 0 : index
      %c0_163 = arith.constant 0 : index
      %144 = vector.load %arg8[%c1_161, %c0_162, %c0_163] : memref<10x10x128xbf16, #tpu.memory_space<vmem>>, vector<8x1x128xbf16>
      tpu.vector_store %arg8[%c1_161, %c0_162, %c0_163], %141 {strides = array<i32>} : memref<10x10x128xbf16, #tpu.memory_space<vmem>>, vector<8x1x128xbf16>,
      %c1_164 = arith.constant 1 : index
      %c9_165 = arith.constant 9 : index
      %c0_166 = arith.constant 0 : index
      %145 = vector.load %arg8[%c1_164, %c9_165, %c0_166] : memref<10x10x128xbf16, #tpu.memory_space<vmem>>, vector<8x1x128xbf16>
      tpu.vector_store %arg8[%c1_164, %c9_165, %c0_166], %141 {strides = array<i32>} : memref<10x10x128xbf16, #tpu.memory_space<vmem>>, vector<8x1x128xbf16>,
      %c0_167 = arith.constant 0 : index
      %c0_168 = arith.constant 0 : index
      %c0_169 = arith.constant 0 : index
      %146 = vector.load %arg9[%c0_167, %c0_168, %c0_169] : memref<10x10x128xbf16, #tpu.memory_space<vmem>>, vector<1x10x128xbf16>
      tpu.vector_store %arg9[%c0_167, %c0_168, %c0_169], %140 {strides = array<i32>} : memref<10x10x128xbf16, #tpu.memory_space<vmem>>, vector<1x10x128xbf16>,
      %c9_170 = arith.constant 9 : index
      %c0_171 = arith.constant 0 : index
      %c0_172 = arith.constant 0 : index
      %147 = vector.load %arg9[%c9_170, %c0_171, %c0_172] : memref<10x10x128xbf16, #tpu.memory_space<vmem>>, vector<1x10x128xbf16>
      tpu.vector_store %arg9[%c9_170, %c0_171, %c0_172], %140 {strides = array<i32>} : memref<10x10x128xbf16, #tpu.memory_space<vmem>>, vector<1x10x128xbf16>,
      %c1_173 = arith.constant 1 : index
      %c0_174 = arith.constant 0 : index
      %c0_175 = arith.constant 0 : index
      %148 = vector.load %arg9[%c1_173, %c0_174, %c0_175] : memref<10x10x128xbf16, #tpu.memory_space<vmem>>, vector<8x1x128xbf16>
      tpu.vector_store %arg9[%c1_173, %c0_174, %c0_175], %141 {strides = array<i32>} : memref<10x10x128xbf16, #tpu.memory_space<vmem>>, vector<8x1x128xbf16>,
      %c1_176 = arith.constant 1 : index
      %c9_177 = arith.constant 9 : index
      %c0_178 = arith.constant 0 : index
      %149 = vector.load %arg9[%c1_176, %c9_177, %c0_178] : memref<10x10x128xbf16, #tpu.memory_space<vmem>>, vector<8x1x128xbf16>
      tpu.vector_store %arg9[%c1_176, %c9_177, %c0_178], %141 {strides = array<i32>} : memref<10x10x128xbf16, #tpu.memory_space<vmem>>, vector<8x1x128xbf16>,
      %c0_179 = arith.constant 0 : index
      %c0_180 = arith.constant 0 : index
      %c0_181 = arith.constant 0 : index
      %c0_182 = arith.constant 0 : index
      %150 = vector.load %arg2[%c0_179, %c0_180, %c0_181, %c0_182] : memref<1x8x8x128xbf16, #tpu.memory_space<vmem>>, vector<1x8x8x128xbf16>
      %151 = vector.shape_cast %150 : vector<1x8x8x128xbf16> to vector<8x8x128xbf16>
      %c1_183 = arith.constant 1 : index
      %c1_184 = arith.constant 1 : index
      %c0_185 = arith.constant 0 : index
      %152 = vector.load %arg8[%c1_183, %c1_184, %c0_185] : memref<10x10x128xbf16, #tpu.memory_space<vmem>>, vector<8x8x128xbf16>
      tpu.vector_store %arg8[%c1_183, %c1_184, %c0_185], %151 {strides = array<i32>} : memref<10x10x128xbf16, #tpu.memory_space<vmem>>, vector<8x8x128xbf16>,
    } else {
    }
    %cst = arith.constant 0.000000e+00 : f32
    %3 = vector.broadcast %cst : f32 to vector<64x128xf32>
    %c0 = arith.constant 0 : index
    %c0_1 = arith.constant 0 : index
    %c0_2 = arith.constant 0 : index
    %4 = vector.load %arg8[%c0, %c0_1, %c0_2] : memref<10x10x128xbf16, #tpu.memory_space<vmem>>, vector<8x8x128xbf16>
    %5 = vector.shape_cast %4 : vector<8x8x128xbf16> to vector<64x128xbf16>
    %c0_3 = arith.constant 0 : index
    %c0_4 = arith.constant 0 : index
    %c0_5 = arith.constant 0 : index
    %c0_6 = arith.constant 0 : index
    %6 = vector.load %arg3[%c0_3, %c0_4, %c0_5, %c0_6] : memref<1x9x128x128xbf16, #tpu.memory_space<vmem>>, vector<1x1x128x128xbf16>
    %7 = vector.shape_cast %6 : vector<1x1x128x128xbf16> to vector<128x128xbf16>
    %cst_7 = arith.constant dense<0.000000e+00> : vector<64x128xf32>
    %8 = tpu.matmul %5, %7, %cst_7 {dimension_numbers = #tpu.dot_dimension_numbers<[1], [0], [0], [1], [0, 0, 1, 1], [], []>} : vector<64x128xbf16>, vector<128x128xbf16>, vector<64x128xf32> -> vector<64x128xf32>
    %9 = arith.addf %3, %8 : vector<64x128xf32>
    %c0_8 = arith.constant 0 : index
    %c1 = arith.constant 1 : index
    %c0_9 = arith.constant 0 : index
    %10 = vector.load %arg8[%c0_8, %c1, %c0_9] : memref<10x10x128xbf16, #tpu.memory_space<vmem>>, vector<8x8x128xbf16>
    %11 = vector.shape_cast %10 : vector<8x8x128xbf16> to vector<64x128xbf16>
    %c0_10 = arith.constant 0 : index
    %c1_11 = arith.constant 1 : index
    %c0_12 = arith.constant 0 : index
    %c0_13 = arith.constant 0 : index
    %12 = vector.load %arg3[%c0_10, %c1_11, %c0_12, %c0_13] : memref<1x9x128x128xbf16, #tpu.memory_space<vmem>>, vector<1x1x128x128xbf16>
    %13 = vector.shape_cast %12 : vector<1x1x128x128xbf16> to vector<128x128xbf16>
    %cst_14 = arith.constant dense<0.000000e+00> : vector<64x128xf32>
    %14 = tpu.matmul %11, %13, %cst_14 {dimension_numbers = #tpu.dot_dimension_numbers<[1], [0], [0], [1], [0, 0, 1, 1], [], []>} : vector<64x128xbf16>, vector<128x128xbf16>, vector<64x128xf32> -> vector<64x128xf32>
    %15 = arith.addf %9, %14 : vector<64x128xf32>
    %c0_15 = arith.constant 0 : index
    %c2 = arith.constant 2 : index
    %c0_16 = arith.constant 0 : index
    %16 = vector.load %arg8[%c0_15, %c2, %c0_16] : memref<10x10x128xbf16, #tpu.memory_space<vmem>>, vector<8x8x128xbf16>
    %17 = vector.shape_cast %16 : vector<8x8x128xbf16> to vector<64x128xbf16>
    %c0_17 = arith.constant 0 : index
    %c2_18 = arith.constant 2 : index
    %c0_19 = arith.constant 0 : index
    %c0_20 = arith.constant 0 : index
    %18 = vector.load %arg3[%c0_17, %c2_18, %c0_19, %c0_20] : memref<1x9x128x128xbf16, #tpu.memory_space<vmem>>, vector<1x1x128x128xbf16>
    %19 = vector.shape_cast %18 : vector<1x1x128x128xbf16> to vector<128x128xbf16>
    %cst_21 = arith.constant dense<0.000000e+00> : vector<64x128xf32>
    %20 = tpu.matmul %17, %19, %cst_21 {dimension_numbers = #tpu.dot_dimension_numbers<[1], [0], [0], [1], [0, 0, 1, 1], [], []>} : vector<64x128xbf16>, vector<128x128xbf16>, vector<64x128xf32> -> vector<64x128xf32>
    %21 = arith.addf %15, %20 : vector<64x128xf32>
    %c1_22 = arith.constant 1 : index
    %c0_23 = arith.constant 0 : index
    %c0_24 = arith.constant 0 : index
    %22 = vector.load %arg8[%c1_22, %c0_23, %c0_24] : memref<10x10x128xbf16, #tpu.memory_space<vmem>>, vector<8x8x128xbf16>
    %23 = vector.shape_cast %22 : vector<8x8x128xbf16> to vector<64x128xbf16>
    %c0_25 = arith.constant 0 : index
    %c3 = arith.constant 3 : index
    %c0_26 = arith.constant 0 : index
    %c0_27 = arith.constant 0 : index
    %24 = vector.load %arg3[%c0_25, %c3, %c0_26, %c0_27] : memref<1x9x128x128xbf16, #tpu.memory_space<vmem>>, vector<1x1x128x128xbf16>
    %25 = vector.shape_cast %24 : vector<1x1x128x128xbf16> to vector<128x128xbf16>
    %cst_28 = arith.constant dense<0.000000e+00> : vector<64x128xf32>
    %26 = tpu.matmul %23, %25, %cst_28 {dimension_numbers = #tpu.dot_dimension_numbers<[1], [0], [0], [1], [0, 0, 1, 1], [], []>} : vector<64x128xbf16>, vector<128x128xbf16>, vector<64x128xf32> -> vector<64x128xf32>
    %27 = arith.addf %21, %26 : vector<64x128xf32>
    %c1_29 = arith.constant 1 : index
    %c1_30 = arith.constant 1 : index
    %c0_31 = arith.constant 0 : index
    %28 = vector.load %arg8[%c1_29, %c1_30, %c0_31] : memref<10x10x128xbf16, #tpu.memory_space<vmem>>, vector<8x8x128xbf16>
    %29 = vector.shape_cast %28 : vector<8x8x128xbf16> to vector<64x128xbf16>
    %c0_32 = arith.constant 0 : index
    %c4 = arith.constant 4 : index
    %c0_33 = arith.constant 0 : index
    %c0_34 = arith.constant 0 : index
    %30 = vector.load %arg3[%c0_32, %c4, %c0_33, %c0_34] : memref<1x9x128x128xbf16, #tpu.memory_space<vmem>>, vector<1x1x128x128xbf16>
    %31 = vector.shape_cast %30 : vector<1x1x128x128xbf16> to vector<128x128xbf16>
    %cst_35 = arith.constant dense<0.000000e+00> : vector<64x128xf32>
    %32 = tpu.matmul %29, %31, %cst_35 {dimension_numbers = #tpu.dot_dimension_numbers<[1], [0], [0], [1], [0, 0, 1, 1], [], []>} : vector<64x128xbf16>, vector<128x128xbf16>, vector<64x128xf32> -> vector<64x128xf32>
    %33 = arith.addf %27, %32 : vector<64x128xf32>
    %c1_36 = arith.constant 1 : index
    %c2_37 = arith.constant 2 : index
    %c0_38 = arith.constant 0 : index
    %34 = vector.load %arg8[%c1_36, %c2_37, %c0_38] : memref<10x10x128xbf16, #tpu.memory_space<vmem>>, vector<8x8x128xbf16>
    %35 = vector.shape_cast %34 : vector<8x8x128xbf16> to vector<64x128xbf16>
    %c0_39 = arith.constant 0 : index
    %c5 = arith.constant 5 : index
    %c0_40 = arith.constant 0 : index
    %c0_41 = arith.constant 0 : index
    %36 = vector.load %arg3[%c0_39, %c5, %c0_40, %c0_41] : memref<1x9x128x128xbf16, #tpu.memory_space<vmem>>, vector<1x1x128x128xbf16>
    %37 = vector.shape_cast %36 : vector<1x1x128x128xbf16> to vector<128x128xbf16>
    %cst_42 = arith.constant dense<0.000000e+00> : vector<64x128xf32>
    %38 = tpu.matmul %35, %37, %cst_42 {dimension_numbers = #tpu.dot_dimension_numbers<[1], [0], [0], [1], [0, 0, 1, 1], [], []>} : vector<64x128xbf16>, vector<128x128xbf16>, vector<64x128xf32> -> vector<64x128xf32>
    %39 = arith.addf %33, %38 : vector<64x128xf32>
    %c2_43 = arith.constant 2 : index
    %c0_44 = arith.constant 0 : index
    %c0_45 = arith.constant 0 : index
    %40 = vector.load %arg8[%c2_43, %c0_44, %c0_45] : memref<10x10x128xbf16, #tpu.memory_space<vmem>>, vector<8x8x128xbf16>
    %41 = vector.shape_cast %40 : vector<8x8x128xbf16> to vector<64x128xbf16>
    %c0_46 = arith.constant 0 : index
    %c6 = arith.constant 6 : index
    %c0_47 = arith.constant 0 : index
    %c0_48 = arith.constant 0 : index
    %42 = vector.load %arg3[%c0_46, %c6, %c0_47, %c0_48] : memref<1x9x128x128xbf16, #tpu.memory_space<vmem>>, vector<1x1x128x128xbf16>
    %43 = vector.shape_cast %42 : vector<1x1x128x128xbf16> to vector<128x128xbf16>
    %cst_49 = arith.constant dense<0.000000e+00> : vector<64x128xf32>
    %44 = tpu.matmul %41, %43, %cst_49 {dimension_numbers = #tpu.dot_dimension_numbers<[1], [0], [0], [1], [0, 0, 1, 1], [], []>} : vector<64x128xbf16>, vector<128x128xbf16>, vector<64x128xf32> -> vector<64x128xf32>
    %45 = arith.addf %39, %44 : vector<64x128xf32>
    %c2_50 = arith.constant 2 : index
    %c1_51 = arith.constant 1 : index
    %c0_52 = arith.constant 0 : index
    %46 = vector.load %arg8[%c2_50, %c1_51, %c0_52] : memref<10x10x128xbf16, #tpu.memory_space<vmem>>, vector<8x8x128xbf16>
    %47 = vector.shape_cast %46 : vector<8x8x128xbf16> to vector<64x128xbf16>
    %c0_53 = arith.constant 0 : index
    %c7 = arith.constant 7 : index
    %c0_54 = arith.constant 0 : index
    %c0_55 = arith.constant 0 : index
    %48 = vector.load %arg3[%c0_53, %c7, %c0_54, %c0_55] : memref<1x9x128x128xbf16, #tpu.memory_space<vmem>>, vector<1x1x128x128xbf16>
    %49 = vector.shape_cast %48 : vector<1x1x128x128xbf16> to vector<128x128xbf16>
    %cst_56 = arith.constant dense<0.000000e+00> : vector<64x128xf32>
    %50 = tpu.matmul %47, %49, %cst_56 {dimension_numbers = #tpu.dot_dimension_numbers<[1], [0], [0], [1], [0, 0, 1, 1], [], []>} : vector<64x128xbf16>, vector<128x128xbf16>, vector<64x128xf32> -> vector<64x128xf32>
    %51 = arith.addf %45, %50 : vector<64x128xf32>
    %c2_57 = arith.constant 2 : index
    %c2_58 = arith.constant 2 : index
    %c0_59 = arith.constant 0 : index
    %52 = vector.load %arg8[%c2_57, %c2_58, %c0_59] : memref<10x10x128xbf16, #tpu.memory_space<vmem>>, vector<8x8x128xbf16>
    %53 = vector.shape_cast %52 : vector<8x8x128xbf16> to vector<64x128xbf16>
    %c0_60 = arith.constant 0 : index
    %c8 = arith.constant 8 : index
    %c0_61 = arith.constant 0 : index
    %c0_62 = arith.constant 0 : index
    %54 = vector.load %arg3[%c0_60, %c8, %c0_61, %c0_62] : memref<1x9x128x128xbf16, #tpu.memory_space<vmem>>, vector<1x1x128x128xbf16>
    %55 = vector.shape_cast %54 : vector<1x1x128x128xbf16> to vector<128x128xbf16>
    %cst_63 = arith.constant dense<0.000000e+00> : vector<64x128xf32>
    %56 = tpu.matmul %53, %55, %cst_63 {dimension_numbers = #tpu.dot_dimension_numbers<[1], [0], [0], [1], [0, 0, 1, 1], [], []>} : vector<64x128xbf16>, vector<128x128xbf16>, vector<64x128xf32> -> vector<64x128xf32>
    %57 = arith.addf %51, %56 : vector<64x128xf32>
    %c0_64 = arith.constant 0 : index
    %c0_65 = arith.constant 0 : index
    %c0_66 = arith.constant 0 : index
    %58 = vector.load %arg4[%c0_64, %c0_65, %c0_66] : memref<1x1x128xf32, #tpu.memory_space<vmem>>, vector<1x1x128xf32>
    %59 = vector.shape_cast %58 : vector<1x1x128xf32> to vector<1x128xf32>
    %60 = vector.broadcast %59 : vector<1x128xf32> to vector<64x128xf32>
    %61 = arith.addf %57, %60 : vector<64x128xf32>
    %cst_67 = arith.constant 0.000000e+00 : f32
    %62 = vector.broadcast %cst_67 : f32 to vector<64x128xf32>
    %63 = arith.maximumf %61, %62 : vector<64x128xf32>
    %64 = vector.shape_cast %63 : vector<64x128xf32> to vector<8x8x128xf32>
    %65 = arith.truncf %64 : vector<8x8x128xf32> to vector<8x8x128xbf16>
    %c1_68 = arith.constant 1 : index
    %c1_69 = arith.constant 1 : index
    %c0_70 = arith.constant 0 : index
    %66 = vector.load %arg9[%c1_68, %c1_69, %c0_70] : memref<10x10x128xbf16, #tpu.memory_space<vmem>>, vector<8x8x128xbf16>
    tpu.vector_store %arg9[%c1_68, %c1_69, %c0_70], %65 {strides = array<i32>} : memref<10x10x128xbf16, #tpu.memory_space<vmem>>, vector<8x8x128xbf16>,
    %cst_71 = arith.constant 0.000000e+00 : f32
    %67 = vector.broadcast %cst_71 : f32 to vector<64x128xf32>
    %c0_72 = arith.constant 0 : index
    %c0_73 = arith.constant 0 : index
    %c0_74 = arith.constant 0 : index
    %68 = vector.load %arg9[%c0_72, %c0_73, %c0_74] : memref<10x10x128xbf16, #tpu.memory_space<vmem>>, vector<8x8x128xbf16>
    %69 = vector.shape_cast %68 : vector<8x8x128xbf16> to vector<64x128xbf16>
    %c0_75 = arith.constant 0 : index
    %c0_76 = arith.constant 0 : index
    %c0_77 = arith.constant 0 : index
    %c0_78 = arith.constant 0 : index
    %70 = vector.load %arg5[%c0_75, %c0_76, %c0_77, %c0_78] : memref<1x9x128x128xbf16, #tpu.memory_space<vmem>>, vector<1x1x128x128xbf16>
    %71 = vector.shape_cast %70 : vector<1x1x128x128xbf16> to vector<128x128xbf16>
    %cst_79 = arith.constant dense<0.000000e+00> : vector<64x128xf32>
    %72 = tpu.matmul %69, %71, %cst_79 {dimension_numbers = #tpu.dot_dimension_numbers<[1], [0], [0], [1], [0, 0, 1, 1], [], []>} : vector<64x128xbf16>, vector<128x128xbf16>, vector<64x128xf32> -> vector<64x128xf32>
    %73 = arith.addf %67, %72 : vector<64x128xf32>
    %c0_80 = arith.constant 0 : index
    %c1_81 = arith.constant 1 : index
    %c0_82 = arith.constant 0 : index
    %74 = vector.load %arg9[%c0_80, %c1_81, %c0_82] : memref<10x10x128xbf16, #tpu.memory_space<vmem>>, vector<8x8x128xbf16>
    %75 = vector.shape_cast %74 : vector<8x8x128xbf16> to vector<64x128xbf16>
    %c0_83 = arith.constant 0 : index
    %c1_84 = arith.constant 1 : index
    %c0_85 = arith.constant 0 : index
    %c0_86 = arith.constant 0 : index
    %76 = vector.load %arg5[%c0_83, %c1_84, %c0_85, %c0_86] : memref<1x9x128x128xbf16, #tpu.memory_space<vmem>>, vector<1x1x128x128xbf16>
    %77 = vector.shape_cast %76 : vector<1x1x128x128xbf16> to vector<128x128xbf16>
    %cst_87 = arith.constant dense<0.000000e+00> : vector<64x128xf32>
    %78 = tpu.matmul %75, %77, %cst_87 {dimension_numbers = #tpu.dot_dimension_numbers<[1], [0], [0], [1], [0, 0, 1, 1], [], []>} : vector<64x128xbf16>, vector<128x128xbf16>, vector<64x128xf32> -> vector<64x128xf32>
    %79 = arith.addf %73, %78 : vector<64x128xf32>
    %c0_88 = arith.constant 0 : index
    %c2_89 = arith.constant 2 : index
    %c0_90 = arith.constant 0 : index
    %80 = vector.load %arg9[%c0_88, %c2_89, %c0_90] : memref<10x10x128xbf16, #tpu.memory_space<vmem>>, vector<8x8x128xbf16>
    %81 = vector.shape_cast %80 : vector<8x8x128xbf16> to vector<64x128xbf16>
    %c0_91 = arith.constant 0 : index
    %c2_92 = arith.constant 2 : index
    %c0_93 = arith.constant 0 : index
    %c0_94 = arith.constant 0 : index
    %82 = vector.load %arg5[%c0_91, %c2_92, %c0_93, %c0_94] : memref<1x9x128x128xbf16, #tpu.memory_space<vmem>>, vector<1x1x128x128xbf16>
    %83 = vector.shape_cast %82 : vector<1x1x128x128xbf16> to vector<128x128xbf16>
    %cst_95 = arith.constant dense<0.000000e+00> : vector<64x128xf32>
    %84 = tpu.matmul %81, %83, %cst_95 {dimension_numbers = #tpu.dot_dimension_numbers<[1], [0], [0], [1], [0, 0, 1, 1], [], []>} : vector<64x128xbf16>, vector<128x128xbf16>, vector<64x128xf32> -> vector<64x128xf32>
    %85 = arith.addf %79, %84 : vector<64x128xf32>
    %c1_96 = arith.constant 1 : index
    %c0_97 = arith.constant 0 : index
    %c0_98 = arith.constant 0 : index
    %86 = vector.load %arg9[%c1_96, %c0_97, %c0_98] : memref<10x10x128xbf16, #tpu.memory_space<vmem>>, vector<8x8x128xbf16>
    %87 = vector.shape_cast %86 : vector<8x8x128xbf16> to vector<64x128xbf16>
    %c0_99 = arith.constant 0 : index
    %c3_100 = arith.constant 3 : index
    %c0_101 = arith.constant 0 : index
    %c0_102 = arith.constant 0 : index
    %88 = vector.load %arg5[%c0_99, %c3_100, %c0_101, %c0_102] : memref<1x9x128x128xbf16, #tpu.memory_space<vmem>>, vector<1x1x128x128xbf16>
    %89 = vector.shape_cast %88 : vector<1x1x128x128xbf16> to vector<128x128xbf16>
    %cst_103 = arith.constant dense<0.000000e+00> : vector<64x128xf32>
    %90 = tpu.matmul %87, %89, %cst_103 {dimension_numbers = #tpu.dot_dimension_numbers<[1], [0], [0], [1], [0, 0, 1, 1], [], []>} : vector<64x128xbf16>, vector<128x128xbf16>, vector<64x128xf32> -> vector<64x128xf32>
    %91 = arith.addf %85, %90 : vector<64x128xf32>
    %c1_104 = arith.constant 1 : index
    %c1_105 = arith.constant 1 : index
    %c0_106 = arith.constant 0 : index
    %92 = vector.load %arg9[%c1_104, %c1_105, %c0_106] : memref<10x10x128xbf16, #tpu.memory_space<vmem>>, vector<8x8x128xbf16>
    %93 = vector.shape_cast %92 : vector<8x8x128xbf16> to vector<64x128xbf16>
    %c0_107 = arith.constant 0 : index
    %c4_108 = arith.constant 4 : index
    %c0_109 = arith.constant 0 : index
    %c0_110 = arith.constant 0 : index
    %94 = vector.load %arg5[%c0_107, %c4_108, %c0_109, %c0_110] : memref<1x9x128x128xbf16, #tpu.memory_space<vmem>>, vector<1x1x128x128xbf16>
    %95 = vector.shape_cast %94 : vector<1x1x128x128xbf16> to vector<128x128xbf16>
    %cst_111 = arith.constant dense<0.000000e+00> : vector<64x128xf32>
    %96 = tpu.matmul %93, %95, %cst_111 {dimension_numbers = #tpu.dot_dimension_numbers<[1], [0], [0], [1], [0, 0, 1, 1], [], []>} : vector<64x128xbf16>, vector<128x128xbf16>, vector<64x128xf32> -> vector<64x128xf32>
    %97 = arith.addf %91, %96 : vector<64x128xf32>
    %c1_112 = arith.constant 1 : index
    %c2_113 = arith.constant 2 : index
    %c0_114 = arith.constant 0 : index
    %98 = vector.load %arg9[%c1_112, %c2_113, %c0_114] : memref<10x10x128xbf16, #tpu.memory_space<vmem>>, vector<8x8x128xbf16>
    %99 = vector.shape_cast %98 : vector<8x8x128xbf16> to vector<64x128xbf16>
    %c0_115 = arith.constant 0 : index
    %c5_116 = arith.constant 5 : index
    %c0_117 = arith.constant 0 : index
    %c0_118 = arith.constant 0 : index
    %100 = vector.load %arg5[%c0_115, %c5_116, %c0_117, %c0_118] : memref<1x9x128x128xbf16, #tpu.memory_space<vmem>>, vector<1x1x128x128xbf16>
    %101 = vector.shape_cast %100 : vector<1x1x128x128xbf16> to vector<128x128xbf16>
    %cst_119 = arith.constant dense<0.000000e+00> : vector<64x128xf32>
    %102 = tpu.matmul %99, %101, %cst_119 {dimension_numbers = #tpu.dot_dimension_numbers<[1], [0], [0], [1], [0, 0, 1, 1], [], []>} : vector<64x128xbf16>, vector<128x128xbf16>, vector<64x128xf32> -> vector<64x128xf32>
    %103 = arith.addf %97, %102 : vector<64x128xf32>
    %c2_120 = arith.constant 2 : index
    %c0_121 = arith.constant 0 : index
    %c0_122 = arith.constant 0 : index
    %104 = vector.load %arg9[%c2_120, %c0_121, %c0_122] : memref<10x10x128xbf16, #tpu.memory_space<vmem>>, vector<8x8x128xbf16>
    %105 = vector.shape_cast %104 : vector<8x8x128xbf16> to vector<64x128xbf16>
    %c0_123 = arith.constant 0 : index
    %c6_124 = arith.constant 6 : index
    %c0_125 = arith.constant 0 : index
    %c0_126 = arith.constant 0 : index
    %106 = vector.load %arg5[%c0_123, %c6_124, %c0_125, %c0_126] : memref<1x9x128x128xbf16, #tpu.memory_space<vmem>>, vector<1x1x128x128xbf16>
    %107 = vector.shape_cast %106 : vector<1x1x128x128xbf16> to vector<128x128xbf16>
    %cst_127 = arith.constant dense<0.000000e+00> : vector<64x128xf32>
    %108 = tpu.matmul %105, %107, %cst_127 {dimension_numbers = #tpu.dot_dimension_numbers<[1], [0], [0], [1], [0, 0, 1, 1], [], []>} : vector<64x128xbf16>, vector<128x128xbf16>, vector<64x128xf32> -> vector<64x128xf32>
    %109 = arith.addf %103, %108 : vector<64x128xf32>
    %c2_128 = arith.constant 2 : index
    %c1_129 = arith.constant 1 : index
    %c0_130 = arith.constant 0 : index
    %110 = vector.load %arg9[%c2_128, %c1_129, %c0_130] : memref<10x10x128xbf16, #tpu.memory_space<vmem>>, vector<8x8x128xbf16>
    %111 = vector.shape_cast %110 : vector<8x8x128xbf16> to vector<64x128xbf16>
    %c0_131 = arith.constant 0 : index
    %c7_132 = arith.constant 7 : index
    %c0_133 = arith.constant 0 : index
    %c0_134 = arith.constant 0 : index
    %112 = vector.load %arg5[%c0_131, %c7_132, %c0_133, %c0_134] : memref<1x9x128x128xbf16, #tpu.memory_space<vmem>>, vector<1x1x128x128xbf16>
    %113 = vector.shape_cast %112 : vector<1x1x128x128xbf16> to vector<128x128xbf16>
    %cst_135 = arith.constant dense<0.000000e+00> : vector<64x128xf32>
    %114 = tpu.matmul %111, %113, %cst_135 {dimension_numbers = #tpu.dot_dimension_numbers<[1], [0], [0], [1], [0, 0, 1, 1], [], []>} : vector<64x128xbf16>, vector<128x128xbf16>, vector<64x128xf32> -> vector<64x128xf32>
    %115 = arith.addf %109, %114 : vector<64x128xf32>
    %c2_136 = arith.constant 2 : index
    %c2_137 = arith.constant 2 : index
    %c0_138 = arith.constant 0 : index
    %116 = vector.load %arg9[%c2_136, %c2_137, %c0_138] : memref<10x10x128xbf16, #tpu.memory_space<vmem>>, vector<8x8x128xbf16>
    %117 = vector.shape_cast %116 : vector<8x8x128xbf16> to vector<64x128xbf16>
    %c0_139 = arith.constant 0 : index
    %c8_140 = arith.constant 8 : index
    %c0_141 = arith.constant 0 : index
    %c0_142 = arith.constant 0 : index
    %118 = vector.load %arg5[%c0_139, %c8_140, %c0_141, %c0_142] : memref<1x9x128x128xbf16, #tpu.memory_space<vmem>>, vector<1x1x128x128xbf16>
    %119 = vector.shape_cast %118 : vector<1x1x128x128xbf16> to vector<128x128xbf16>
    %cst_143 = arith.constant dense<0.000000e+00> : vector<64x128xf32>
    %120 = tpu.matmul %117, %119, %cst_143 {dimension_numbers = #tpu.dot_dimension_numbers<[1], [0], [0], [1], [0, 0, 1, 1], [], []>} : vector<64x128xbf16>, vector<128x128xbf16>, vector<64x128xf32> -> vector<64x128xf32>
    %121 = arith.addf %115, %120 : vector<64x128xf32>
    %c1_144 = arith.constant 1 : index
    %c1_145 = arith.constant 1 : index
    %c0_146 = arith.constant 0 : index
    %122 = vector.load %arg8[%c1_144, %c1_145, %c0_146] : memref<10x10x128xbf16, #tpu.memory_space<vmem>>, vector<8x8x128xbf16>
    %123 = arith.extf %122 : vector<8x8x128xbf16> to vector<8x8x128xf32>
    %124 = vector.shape_cast %123 : vector<8x8x128xf32> to vector<64x128xf32>
    %c0_147 = arith.constant 0 : index
    %c0_148 = arith.constant 0 : index
    %c0_149 = arith.constant 0 : index
    %125 = vector.load %arg6[%c0_147, %c0_148, %c0_149] : memref<1x1x128xf32, #tpu.memory_space<vmem>>, vector<1x1x128xf32>
    %126 = vector.shape_cast %125 : vector<1x1x128xf32> to vector<1x128xf32>
    %127 = vector.broadcast %126 : vector<1x128xf32> to vector<64x128xf32>
    %128 = arith.addf %121, %127 : vector<64x128xf32>
    %129 = arith.addf %128, %124 : vector<64x128xf32>
    %cst_150 = arith.constant 0.000000e+00 : f32
    %130 = vector.broadcast %cst_150 : f32 to vector<64x128xf32>
    %131 = arith.maximumf %129, %130 : vector<64x128xf32>
    %132 = vector.shape_cast %131 : vector<64x128xf32> to vector<8x8x128xf32>
    %133 = arith.truncf %132 : vector<8x8x128xf32> to vector<8x8x128xbf16>
    %c1_i32 = arith.constant 1 : i32
    %134 = arith.cmpi slt, %arg1, %c1_i32 : i32
    %135 = arith.extui %134 : i1 to i32
    %c0_i32_151 = arith.constant 0 : i32
    %136 = arith.cmpi ne, %135, %c0_i32_151 : i32
    scf.if %136 {
      %c1_154 = arith.constant 1 : index
      %c1_155 = arith.constant 1 : index
      %c0_156 = arith.constant 0 : index
      %140 = vector.load %arg8[%c1_154, %c1_155, %c0_156] : memref<10x10x128xbf16, #tpu.memory_space<vmem>>, vector<8x8x128xbf16>
      tpu.vector_store %arg8[%c1_154, %c1_155, %c0_156], %133 {strides = array<i32>} : memref<10x10x128xbf16, #tpu.memory_space<vmem>>, vector<8x8x128xbf16>,
    } else {
    }
    %c1_i32_152 = arith.constant 1 : i32
    %137 = arith.cmpi eq, %arg1, %c1_i32_152 : i32
    %138 = arith.extui %137 : i1 to i32
    %c0_i32_153 = arith.constant 0 : i32
    %139 = arith.cmpi ne, %138, %c0_i32_153 : i32
    scf.if %139 {
      %140 = vector.shape_cast %133 : vector<8x8x128xbf16> to vector<1x8x8x128xbf16>
      %c0_154 = arith.constant 0 : index
      %c0_155 = arith.constant 0 : index
      %c0_156 = arith.constant 0 : index
      %c0_157 = arith.constant 0 : index
      %141 = vector.load %arg7[%c0_154, %c0_155, %c0_156, %c0_157] : memref<1x8x8x128xbf16, #tpu.memory_space<vmem>>, vector<1x8x8x128xbf16>
      tpu.vector_store %arg7[%c0_154, %c0_155, %c0_156, %c0_157], %140 {strides = array<i32>} : memref<1x8x8x128xbf16, #tpu.memory_space<vmem>>, vector<1x8x8x128xbf16>,
    } else {
    }
    return
  }
  func.func @transform_0(%arg0: i32, %arg1: i32) -> (i32, i32, i32, i32) {
    %c0_i32 = arith.constant 0 : i32
    %c0_i32_0 = arith.constant 0 : i32
    %c0_i32_1 = arith.constant 0 : i32
    %c0_i32_2 = arith.constant 0 : i32
    return %arg0, %c0_i32, %c0_i32_0, %c0_i32_1 : i32, i32, i32, i32
  }
  func.func @transform_1(%arg0: i32, %arg1: i32) -> (i32, i32, i32, i32) {
    %c0_i32 = arith.constant 0 : i32
    %c0_i32_0 = arith.constant 0 : i32
    %c0_i32_1 = arith.constant 0 : i32
    %c0_i32_2 = arith.constant 0 : i32
    return %arg1, %c0_i32, %c0_i32_0, %c0_i32_1 : i32, i32, i32, i32
  }
  func.func @transform_2(%arg0: i32, %arg1: i32) -> (i32, i32, i32) {
    %c0_i32 = arith.constant 0 : i32
    %c0_i32_0 = arith.constant 0 : i32
    %c0_i32_1 = arith.constant 0 : i32
    return %arg1, %c0_i32, %c0_i32_0 : i32, i32, i32
  }
  func.func @transform_3(%arg0: i32, %arg1: i32) -> (i32, i32, i32, i32) {
    %c0_i32 = arith.constant 0 : i32
    %c0_i32_0 = arith.constant 0 : i32
    %c0_i32_1 = arith.constant 0 : i32
    %c0_i32_2 = arith.constant 0 : i32
    return %arg1, %c0_i32, %c0_i32_0, %c0_i32_1 : i32, i32, i32, i32
  }
  func.func @transform_4(%arg0: i32, %arg1: i32) -> (i32, i32, i32) {
    %c0_i32 = arith.constant 0 : i32
    %c0_i32_0 = arith.constant 0 : i32
    %c0_i32_1 = arith.constant 0 : i32
    return %arg1, %c0_i32, %c0_i32_0 : i32, i32, i32
  }
  func.func @transform_5(%arg0: i32, %arg1: i32) -> (i32, i32, i32, i32) {
    %c0_i32 = arith.constant 0 : i32
    %c0_i32_0 = arith.constant 0 : i32
    %c0_i32_1 = arith.constant 0 : i32
    %c0_i32_2 = arith.constant 0 : i32
    return %arg0, %c0_i32, %c0_i32_0, %c0_i32_1 : i32, i32, i32, i32
  }
}

</mosaic_0001>

<llo_original>
// kernel: downsample_block_forward.2
$region0: #{downsample_block_forward.2}
  #allocation0 [shape = 'u32[]', space=smem, size = 0x4, offset = 0x4, fixed_abs, tag = 'smem constant byte address 0x4 - core index']
  #allocation1 [shape = 'u32[144,128]{1,0:T(1,128)}', space=vmem, size = 0x12000, scoped, tag = 'internal scratch']
  %s0 = inlined_call_operand.vmem [shape: bf16[2,9,9,128], index: 0, kind: input, shape index: {}]
  %s1 = inlined_call_operand.vmem [shape: bf16[4,128,128], index: 1, kind: input, shape index: {}]
  %s2 = inlined_call_operand.vmem [shape: f32[1,128], index: 2, kind: input, shape index: {}]
  %s3 = inlined_call_operand.vmem [shape: bf16[2,8,8,128], index: 3, kind: output, shape index: {}]
  %s4 = sld [smem:[#allocation0]]
  $region45: #{downsample_block_forward.2} parent=0
    _
  %s6 = ssub.s32 1, %s4
  %s7 = scalar_select 0, %s6, %s4
  loop: start=0, step=1, limit=4
  $region2: #{downsample_block_forward.2} parent=0 // loop_pre_header
    _
  $region3: #{downsample_block_forward.2} parent=0 // loop_header
    %s9 = sphi 0, %s13
    %p10 = scmp.ge.s32.totalorder %s9, 4
    %s16 = sphi 0, %s28
    %s17 = sphi 0, %s24
    %s18 = sphi 0, %s16
    %s19 = sphi 0, %s17
    %s20 = sphi 0, %s18
    %s21 = sphi 0, %s19
    %s31 = sphi 0, %s33
    %s34 = sphi 0, %s31
    %s35 = sphi 0, %s34
    %s51 = sphi 0, %s35
    %s57 = sphi 0, %s59
    %s60 = sphi 0, %s57
    %s61 = sphi 0, %s60
    %s77 = sphi 0, %s61
    %s83 = sphi 0, %s85
    %s86 = sphi 0, %s83
    %s87 = sphi 0, %s86
    %s103 = sphi 0, %s87
    %s111 = sphi 0, %s113
    %s114 = sphi 0, %s111
    %s115 = sphi 0, %s114
    %s131 = sphi 0, %s115
  $region4: #{downsample_block_forward.2} parent=0 // loop_header_branch
    %12 = sbr.rel (%p10) target = $region8
  $region5: #{downsample_block_forward.2} parent=0 // loop_body
    %s14 = ssub.s32 %s9, 1
    %s15 = ssub.s32 %s9, 2
    %s22 = sadd.s32 1, %s17
    %p23 = scmp.ge.s32.totalorder %s22, 1
    %s24 = scalar_select %p23, 0, %s22
    %s25 = sadd.s32 1, %s16
    %s26 = scalar_select %p23, %s25, %s16
    %p27 = scmp.ge.s32.totalorder %s26, 2
    %s28 = scalar_select %p27, 0, %s26
    %s29 = ssub.s32 %s16, %s28
    %p30 = scmp.eq.s32.totalorder %s29, 0
    %s32 = sadd.s32 %s31, 1
    %s33 = scalar_select %p30, %s31, %s32
    %p36 = pneg %p30
    %p37 = scmp.eq.s32.totalorder %s9, 1
    %p38 = por %p36, %p37
    %p39 = scmp.ne.s32.totalorder %s31, %s34
    %p40 = scmp.eq.s32.totalorder %s9, 0
    %p41 = por %p39, %p40
    %p42 = scmp.ne.s32.totalorder %s31, %s34
    %p43 = scmp.eq.s32.totalorder %s14, 1
    %p44 = por %p42, %p43
    %p45 = scmp.ne.s32.totalorder %s34, %s35
    %p46 = scmp.eq.s32.totalorder %s14, 0
    %p47 = por %p45, %p46
    %p48 = scmp.ne.s32.totalorder %s34, %s35
    %p49 = scmp.eq.s32.totalorder %s15, 1
    %p50 = por %p48, %p49
    %p52 = scmp.ne.s32.totalorder %s35, %s51
    %p53 = scmp.eq.s32.totalorder %s15, 0
    %p54 = por %p52, %p53
    %s55 = ssub.s32 %s17, %s24
    %p56 = scmp.eq.s32.totalorder %s55, 0
    %s58 = sadd.s32 %s57, 1
    %s59 = scalar_select %p56, %s57, %s58
    %p62 = pneg %p56
    %p63 = scmp.eq.s32.totalorder %s9, 1
    %p64 = por %p62, %p63
    %p65 = scmp.ne.s32.totalorder %s57, %s60
    %p66 = scmp.eq.s32.totalorder %s9, 0
    %p67 = por %p65, %p66
    %p68 = scmp.ne.s32.totalorder %s57, %s60
    %p69 = scmp.eq.s32.totalorder %s14, 1
    %p70 = por %p68, %p69
    %p71 = scmp.ne.s32.totalorder %s60, %s61
    %p72 = scmp.eq.s32.totalorder %s14, 0
    %p73 = por %p71, %p72
    %p74 = scmp.ne.s32.totalorder %s60, %s61
    %p75 = scmp.eq.s32.totalorder %s15, 1
    %p76 = por %p74, %p75
    %p78 = scmp.ne.s32.totalorder %s61, %s77
    %p79 = scmp.eq.s32.totalorder %s15, 0
    %p80 = por %p78, %p79
    %s81 = ssub.s32 %s17, %s24
    %p82 = scmp.eq.s32.totalorder %s81, 0
    %s84 = sadd.s32 %s83, 1
    %s85 = scalar_select %p82, %s83, %s84
    %p88 = pneg %p82
    %p89 = scmp.eq.s32.totalorder %s9, 1
    %p90 = por %p88, %p89
    %p91 = scmp.ne.s32.totalorder %s83, %s86
    %p92 = scmp.eq.s32.totalorder %s9, 0
    %p93 = por %p91, %p92
    %p94 = scmp.ne.s32.totalorder %s83, %s86
    %p95 = scmp.eq.s32.totalorder %s14, 1
    %p96 = por %p94, %p95
    %p97 = scmp.ne.s32.totalorder %s86, %s87
    %p98 = scmp.eq.s32.totalorder %s14, 0
    %p99 = por %p97, %p98
    %p100 = scmp.ne.s32.totalorder %s86, %s87
    %p101 = scmp.eq.s32.totalorder %s15, 1
    %p102 = por %p100, %p101
    %p104 = scmp.ne.s32.totalorder %s87, %s103
    %p105 = scmp.eq.s32.totalorder %s15, 0
    %p106 = por %p104, %p105
    %s107 = ssub.s32 %s16, %s28
    %s108 = ssub.s32 %s17, %s24
    %s109 = sor.u32 %s107, %s108
    %p110 = scmp.eq.s32.totalorder %s109, 0
    %s112 = sadd.s32 %s111, 1
    %s113 = scalar_select %p110, %s111, %s112
    %p116 = pneg %p110
    %p117 = scmp.eq.s32.totalorder %s9, 1
    %p118 = por %p116, %p117
    %p119 = scmp.ne.s32.totalorder %s111, %s114
    %p120 = scmp.eq.s32.totalorder %s9, 0
    %p121 = por %p119, %p120
    %p122 = scmp.ne.s32.totalorder %s111, %s114
    %p123 = scmp.eq.s32.totalorder %s14, 1
    %p124 = por %p122, %p123
    %p125 = scmp.ne.s32.totalorder %s114, %s115
    %p126 = scmp.eq.s32.totalorder %s14, 0
    %p127 = por %p125, %p126
    %p128 = scmp.ne.s32.totalorder %s114, %s115
    %p129 = scmp.eq.s32.totalorder %s15, 1
    %p130 = por %p128, %p129
    %p132 = scmp.ne.s32.totalorder %s115, %s131
    %p133 = scmp.eq.s32.totalorder %s15, 0
    %p134 = por %p132, %p133
    %p135 = scmp.le.s32.totalorder 1, %s9
    %p136 = scmp.lt.s32.totalorder %s9, 3
    %p137 = pnand %p135, %p136
    %p138 = pneg %p137
    // Predicated region
    $region9: #{downsample_block_forward.2} parent=5 // pred_check
      _
    $region10: #{downsample_block_forward.2} parent=5 // pred_check_branch
      %140 = sbr.rel (%p137) target = $region12
    $region11: #{downsample_block_forward.2} parent=5 // pred_region
      %s141 = ssub.s32 %s9, 1
      // Predicated region
      $region13: #{downsample_block_forward.2} parent=11 // pred_check
        %p142 = pneg %p73
      $region14: #{downsample_block_forward.2} parent=11 // pred_check_branch
        %144 = sbr.rel (%p142) target = $region16
      $region15: #{downsample_block_forward.2} parent=11 // pred_region
        %p145 = scmp.lt.s32.totalorder %s19, 0
        %s146 = scalar_select %p145, %s19, 0
        %s147 = smul.addr %s146, 4
        %s148 = scalar_lea.vmem %s1, %s147
      $region16: #{downsample_block_forward.2} parent=11 // pred_fallthru
        _
      // Predicated region
      $region17: #{downsample_block_forward.2} parent=11 // pred_check
        %p149 = pneg %p99
      $region18: #{downsample_block_forward.2} parent=11 // pred_check_branch
        %151 = sbr.rel (%p149) target = $region20
      $region19: #{downsample_block_forward.2} parent=11 // pred_region
        %p152 = scmp.lt.s32.totalorder %s19, 0
        %s153 = scalar_select %p152, %s19, 0
        %s154 = scalar_lea.vmem %s2, %s153
      $region20: #{downsample_block_forward.2} parent=11 // pred_fallthru
        _
    $region12: #{downsample_block_forward.2} parent=5 // pred_fallthru
      _
    %p155 = scmp.lt.s32.totalorder %s9, 2
    // Predicated region
    $region21: #{downsample_block_forward.2} parent=5 // pred_check
      %p156 = pneg %p155
    $region22: #{downsample_block_forward.2} parent=5 // pred_check_branch
      %158 = sbr.rel (%p156) target = $region24
    $region23: #{downsample_block_forward.2} parent=5 // pred_region
      // Predicated region
      $region25: #{downsample_block_forward.2} parent=23 // pred_check
        %p159 = pneg %p41
      $region26: #{downsample_block_forward.2} parent=23 // pred_check_branch
        %161 = sbr.rel (%p159) target = $region28
      $region27: #{downsample_block_forward.2} parent=23 // pred_region
        %p162 = scmp.lt.s32.totalorder %s16, 1
        %s163 = scalar_select %p162, %s16, 1
        %s164 = smul.addr %s163, 18
        %s165 = smul.addr %s164, 4
        %s166 = scalar_lea.vmem %s0, %s165
      $region28: #{downsample_block_forward.2} parent=23 // pred_fallthru
        _
    $region24: #{downsample_block_forward.2} parent=5 // pred_fallthru
      _
    %p167 = scmp.le.s32.totalorder 1, %s9
    %p168 = scmp.lt.s32.totalorder %s9, 3
    %p169 = pnand %p167, %p168
    %p170 = pneg %p169
    // Predicated region
    $region29: #{downsample_block_forward.2} parent=5 // pred_check
      _
    $region30: #{downsample_block_forward.2} parent=5 // pred_check_branch
      %172 = sbr.rel (%p169) target = $region32
    $region31: #{downsample_block_forward.2} parent=5 // pred_region
      %s173 = ssub.s32 %s9, 1
      %p174 = scmp.lt.s32.totalorder %s18, 1
      %s175 = scalar_select %p174, %s18, 1
      %s176 = smul.addr %s175, 18
      %s177 = smul.addr %s176, 4
      %s178 = scalar_lea.vmem %s0, %s177
      %p179 = pneg %p47
      %p180 = pneg %p44
      %p181 = scmp.lt.s32.totalorder %s19, 0
      %s182 = scalar_select %p181, %s19, 0
      %s183 = smul.addr %s182, 4
      %s184 = scalar_lea.vmem %s1, %s183
      %p185 = pneg %p73
      %p186 = pneg %p70
      %p187 = scmp.lt.s32.totalorder %s19, 0
      %s188 = scalar_select %p187, %s19, 0
      %s189 = scalar_lea.vmem %s2, %s188
      %p190 = pneg %p99
      %p191 = pneg %p96
      %p192 = pneg %p127
      %p193 = pneg %p124
      %p194 = scmp.lt.s32.totalorder %s18, 1
      %s195 = scalar_select %p194, %s18, 1
      %p196 = scmp.lt.s32.totalorder %s19, 0
      %s197 = scalar_select %p196, %s19, 0
      %s198 = smul.addr %s195, 8
      %s199 = sadd.s32 %s197, %s198
      %s200 = smul.addr %s199, 4
      %s201 = scalar_lea.vmem %s3, %s200
      %p202 = scmp.lt.s32.totalorder %s18, 1
      %s203 = scalar_select %p202, %s18, 1
      %s204 = smul.addr %s203, 18
      %s205 = smul.addr %s204, 4
      %s206 = scalar_lea.vmem %s0, %s205
      %p207 = scmp.lt.s32.totalorder %s19, 0
      %s208 = scalar_select %p207, %s19, 0
      %s209 = smul.addr %s208, 4
      %s210 = scalar_lea.vmem %s1, %s209
      %p211 = scmp.lt.s32.totalorder %s19, 0
      %s212 = scalar_select %p211, %s19, 0
      %s213 = scalar_lea.vmem %s2, %s212
      %p214 = scmp.lt.s32.totalorder %s18, 1
      %s215 = scalar_select %p214, %s18, 1
      %p216 = scmp.lt.s32.totalorder %s19, 0
      %s217 = scalar_select %p216, %s19, 0
      %s218 = smul.addr %s215, 8
      %s219 = sadd.s32 %s217, %s218
      %s220 = smul.addr %s219, 4
      %s221 = scalar_lea.vmem %s3, %s220
      %v223 = vld [vmem:[%s206] sm:$0xf]
      %v224 = vld [vmem:[%s206 + $0x8] sm:$0xf]
      %v225 = vld [vmem:[%s206 + $0x10] sm:$0xf]
      %v226 = vld [vmem:[%s206 + $0x18] sm:$0xf]
      %v227 = vld [vmem:[%s206 + $0x20] sm:$0xf]
      %v228 = vld [vmem:[%s206 + $0x28] sm:$0xf]
      %v229 = vld [vmem:[%s206 + $0x30] sm:$0xf]
      %v230 = vld [vmem:[%s206 + $0x38] sm:$0xf]
      %v231 = vld [vmem:[%s210] sm:$0xf]
      %v232 = vld [vmem:[%s210 + $0x4] sm:$0xf]
      %v233 = vld [vmem:[%s210 + $0x8] sm:$0xf]
      %v234 = vld [vmem:[%s210 + $0xc] sm:$0xf]
      %v235 = vld [vmem:[%s210 + $0x10] sm:$0xf]
      %v236 = vld [vmem:[%s210 + $0x14] sm:$0xf]
      %v237 = vld [vmem:[%s210 + $0x18] sm:$0xf]
      %v238 = vld [vmem:[%s210 + $0x1c] sm:$0xf]
      %v239 = vld [vmem:[%s210 + $0x20] sm:$0xf]
      %v240 = vld [vmem:[%s210 + $0x24] sm:$0xf]
      %v241 = vld [vmem:[%s210 + $0x28] sm:$0xf]
      %v242 = vld [vmem:[%s210 + $0x2c] sm:$0xf]
      %v243 = vld [vmem:[%s210 + $0x30] sm:$0xf]
      %v244 = vld [vmem:[%s210 + $0x34] sm:$0xf]
      %v245 = vld [vmem:[%s210 + $0x38] sm:$0xf]
      %v246 = vld [vmem:[%s210 + $0x3c] sm:$0xf]
      %v247 = vld [vmem:[%s206 + $0x4] sm:$0x1]
      %v248 = vld [vmem:[%s206 + $0xc] sm:$0x1]
      %v249 = vld [vmem:[%s206 + $0x14] sm:$0x1]
      %v250 = vld [vmem:[%s206 + $0x1c] sm:$0x1]
      %v251 = vld [vmem:[%s206 + $0x24] sm:$0x1]
      %v252 = vld [vmem:[%s206 + $0x2c] sm:$0x1]
      %v253 = vld [vmem:[%s206 + $0x34] sm:$0x1]
      %v254 = vld [vmem:[%s206 + $0x3c] sm:$0x1]
      %vm255 = vsmask.f32 3328
      %vm256 = vsmask.f32 7440
      %vm257 = vmor %vm255, %vm256
      %v259 = vshrl.u32 %v223, 16
      %v261 = vrot.slane %v259, 4
      %v262 = vshll.u32 %v223, 16
      %v264 = vrot.slane %v262, 5
      %v265 = vor.u32 %v261, %v264
      %v266 = vrot.slane %v265, 4
      %v268 = vshll.u32 %v247, 16
      %v270 = vrot.slane %v268, 5
      %v271 = vsel %vm257, %v266, %v270
      %v273 = vshrl.u32 %v224, 16
      %v275 = vrot.slane %v273, 4
      %v276 = vshll.u32 %v224, 16
      %v278 = vrot.slane %v276, 5
      %v279 = vor.u32 %v275, %v278
      %v280 = vrot.slane %v279, 4
      %v282 = vshll.u32 %v248, 16
      %v284 = vrot.slane %v282, 5
      %v285 = vsel %vm257, %v280, %v284
      %v287 = vshrl.u32 %v225, 16
      %v289 = vrot.slane %v287, 4
      %v290 = vshll.u32 %v225, 16
      %v292 = vrot.slane %v290, 5
      %v293 = vor.u32 %v289, %v292
      %v294 = vrot.slane %v293, 4
      %v296 = vshll.u32 %v249, 16
      %v298 = vrot.slane %v296, 5
      %v299 = vsel %vm257, %v294, %v298
      %v301 = vshrl.u32 %v226, 16
      %v303 = vrot.slane %v301, 4
      %v304 = vshll.u32 %v226, 16
      %v306 = vrot.slane %v304, 5
      %v307 = vor.u32 %v303, %v306
      %v308 = vrot.slane %v307, 4
      %v310 = vshll.u32 %v250, 16
      %v312 = vrot.slane %v310, 5
      %v313 = vsel %vm257, %v308, %v312
      %v315 = vshrl.u32 %v227, 16
      %v317 = vrot.slane %v315, 4
      %v318 = vshll.u32 %v227, 16
      %v320 = vrot.slane %v318, 5
      %v321 = vor.u32 %v317, %v320
      %v322 = vrot.slane %v321, 4
      %v324 = vshll.u32 %v251, 16
      %v326 = vrot.slane %v324, 5
      %v327 = vsel %vm257, %v322, %v326
      %v329 = vshrl.u32 %v228, 16
      %v331 = vrot.slane %v329, 4
      %v332 = vshll.u32 %v228, 16
      %v334 = vrot.slane %v332, 5
      %v335 = vor.u32 %v331, %v334
      %v336 = vrot.slane %v335, 4
      %v338 = vshll.u32 %v252, 16
      %v340 = vrot.slane %v338, 5
      %v341 = vsel %vm257, %v336, %v340
      %v343 = vshrl.u32 %v229, 16
      %v345 = vrot.slane %v343, 4
      %v346 = vshll.u32 %v229, 16
      %v348 = vrot.slane %v346, 5
      %v349 = vor.u32 %v345, %v348
      %v350 = vrot.slane %v349, 4
      %v352 = vshll.u32 %v253, 16
      %v354 = vrot.slane %v352, 5
      %v355 = vsel %vm257, %v350, %v354
      %v357 = vshrl.u32 %v230, 16
      %v359 = vrot.slane %v357, 4
      %v360 = vshll.u32 %v230, 16
      %v362 = vrot.slane %v360, 5
      %v363 = vor.u32 %v359, %v362
      %v364 = vrot.slane %v363, 4
      %v366 = vshll.u32 %v254, 16
      %v368 = vrot.slane %v366, 5
      %v369 = vsel %vm257, %v364, %v368
      %s370 = scalar_lea.vmem %s210, 64
      %v371 = vld [vmem:[%s370] sm:$0xf]
      %v372 = vld [vmem:[%s370 + $0x4] sm:$0xf]
      %v373 = vld [vmem:[%s370 + $0x8] sm:$0xf]
      %v374 = vld [vmem:[%s370 + $0xc] sm:$0xf]
      %v375 = vld [vmem:[%s370 + $0x10] sm:$0xf]
      %v376 = vld [vmem:[%s370 + $0x14] sm:$0xf]
      %v377 = vld [vmem:[%s370 + $0x18] sm:$0xf]
      %v378 = vld [vmem:[%s370 + $0x1c] sm:$0xf]
      %v379 = vld [vmem:[%s370 + $0x20] sm:$0xf]
      %v380 = vld [vmem:[%s370 + $0x24] sm:$0xf]
      %v381 = vld [vmem:[%s370 + $0x28] sm:$0xf]
      %v382 = vld [vmem:[%s370 + $0x2c] sm:$0xf]
      %v383 = vld [vmem:[%s370 + $0x30] sm:$0xf]
      %v384 = vld [vmem:[%s370 + $0x34] sm:$0xf]
      %v385 = vld [vmem:[%s370 + $0x38] sm:$0xf]
      %v386 = vld [vmem:[%s370 + $0x3c] sm:$0xf]
      %v387 = vunpack.c.l.b16 %v271
      %v388 = vunpack.c.l.b16 %v285
      %v389 = vunpack.c.l.b16 %v299
      %v390 = vunpack.c.l.b16 %v313
      %v391 = vunpack.c.l.b16 %v327
      %v392 = vunpack.c.l.b16 %v341
      %v393 = vunpack.c.l.b16 %v355
      %v394 = vunpack.c.l.b16 %v369
      %v395 = vpack.c.b16 %v388, %v387
      %v396 = vpack.c.b16 %v390, %v389
      %v397 = vpack.c.b16 %v392, %v391
      %v398 = vpack.c.b16 %v394, %v393
      %v419 = vunpack.c.l.b16 %v371
      %v420 = vunpack.c.l.b16 %v372
      %v421 = vunpack.c.l.b16 %v373
      %v422 = vunpack.c.l.b16 %v374
      %v423 = vunpack.c.l.b16 %v375
      %v424 = vunpack.c.l.b16 %v376
      %v425 = vunpack.c.l.b16 %v377
      %v426 = vunpack.c.l.b16 %v378
      %v427 = vunpack.c.l.b16 %v379
      %v428 = vunpack.c.l.b16 %v380
      %v429 = vunpack.c.l.b16 %v381
      %v430 = vunpack.c.l.b16 %v382
      %v431 = vunpack.c.l.b16 %v383
      %v432 = vunpack.c.l.b16 %v384
      %v433 = vunpack.c.l.b16 %v385
      %v434 = vunpack.c.l.b16 %v386
      %v435 = vpack.c.b16 %v420, %v419
      %v436 = vpack.c.b16 %v422, %v421
      %v437 = vpack.c.b16 %v424, %v423
      %v438 = vpack.c.b16 %v426, %v425
      %v439 = vpack.c.b16 %v428, %v427
      %v440 = vpack.c.b16 %v430, %v429
      %v441 = vpack.c.b16 %v432, %v431
      %v442 = vpack.c.b16 %v434, %v433
      %451 = vmatprep.subr.bf16.mxu0 0
      %452 = vmatpush1.bf16.msra.mxu0 %v435
      %453 = vmatprep.subr.bf16.mxu0 0
      %454 = vmatpush1.bf16.msra.mxu0 %v436
      %455 = vmatprep.subr.bf16.mxu0 0
      %456 = vmatpush1.bf16.msra.mxu0 %v437
      %457 = vmatprep.subr.bf16.mxu0 0
      %458 = vmatpush1.bf16.msra.mxu0 %v438
      %459 = vmatprep.subr.bf16.mxu0 0
      %460 = vmatpush1.bf16.msra.mxu0 %v439
      %461 = vmatprep.subr.bf16.mxu0 0
      %462 = vmatpush1.bf16.msra.mxu0 %v440
      %463 = vmatprep.subr.bf16.mxu0 0
      %464 = vmatpush1.bf16.msra.mxu0 %v441
      %465 = vmatprep.subr.bf16.mxu0 0
      %466 = vmatpush1.bf16.msra.mxu0 %v442
      %467 = vmatprep.subr.bf16.mxu0 0
      %468 = vmatpush1.bf16.msra.mxu0 0
      %469 = vmatprep.subr.bf16.mxu0 0
      %470 = vmatpush1.bf16.msra.mxu0 0
      %471 = vmatprep.subr.bf16.mxu0 0
      %472 = vmatpush1.bf16.msra.mxu0 0
      %473 = vmatprep.subr.bf16.mxu0 0
      %474 = vmatpush1.bf16.msra.mxu0 0
      %475 = vmatprep.subr.bf16.mxu0 0
      %476 = vmatpush1.bf16.msra.mxu0 0
      %477 = vmatprep.subr.bf16.mxu0 0
      %478 = vmatpush1.bf16.msra.mxu0 0
      %479 = vmatprep.subr.bf16.mxu0 0
      %480 = vmatpush1.bf16.msra.mxu0 0
      %481 = vmatprep.subr.bf16.mxu0 0
      %482 = vmatpush1.bf16.msra.mxu0 0
      %483 = vmatprep.mubr.bf16.mxu0 0
      %484 = vmatmul.mubr.bf16.gmra.mrb[0].mxu0 %v395
      %v485 = vpop.f32.mrb[0].mxu0
      %v486 = vadd.f32 0.0, %v485
      %v487 = vpop.f32.mrb[0].mxu0
      %v488 = vpop.f32.mrb[0].mxu0
      %v489 = vadd.f32 0.0, %v488
      %v490 = vpop.f32.mrb[0].mxu0
      %491 = vmatprep.mubr.bf16.mxu0 0
      %492 = vmatmul.mubr.bf16.gmra.mrb[0].mxu0 %v396
      %v493 = vpop.f32.mrb[0].mxu0
      %v494 = vadd.f32 0.0, %v493
      %v495 = vpop.f32.mrb[0].mxu0
      %v496 = vpop.f32.mrb[0].mxu0
      %v497 = vadd.f32 0.0, %v496
      %v498 = vpop.f32.mrb[0].mxu0
      %499 = vmatprep.mubr.bf16.mxu0 0
      %500 = vmatmul.mubr.bf16.gmra.mrb[0].mxu0 %v397
      %v501 = vpop.f32.mrb[0].mxu0
      %v502 = vadd.f32 0.0, %v501
      %v503 = vpop.f32.mrb[0].mxu0
      %v504 = vpop.f32.mrb[0].mxu0
      %v505 = vadd.f32 0.0, %v504
      %v506 = vpop.f32.mrb[0].mxu0
      %507 = vmatprep.mubr.bf16.mxu0 0
      %508 = vmatmul.mubr.bf16.gmra.mrb[0].mxu0 %v398
      %v509 = vpop.f32.mrb[0].mxu0
      %v510 = vadd.f32 0.0, %v509
      %v511 = vpop.f32.mrb[0].mxu0
      %v512 = vpop.f32.mrb[0].mxu0
      %v513 = vadd.f32 0.0, %v512
      %v514 = vpop.f32.mrb[0].mxu0
      %515 = vdwg.mxu0
      %v524 = vunpack.c.l.b16 %v223
      %v525 = vunpack.c.l.b16 %v224
      %v526 = vunpack.c.l.b16 %v225
      %v527 = vunpack.c.l.b16 %v226
      %v528 = vunpack.c.l.b16 %v227
      %v529 = vunpack.c.l.b16 %v228
      %v530 = vunpack.c.l.b16 %v229
      %v531 = vunpack.c.l.b16 %v230
      %v532 = vpack.c.b16 %v525, %v524
      %v533 = vpack.c.b16 %v527, %v526
      %v534 = vpack.c.b16 %v529, %v528
      %v535 = vpack.c.b16 %v531, %v530
      %v556 = vunpack.c.l.b16 %v231
      %v557 = vunpack.c.l.b16 %v232
      %v558 = vunpack.c.l.b16 %v233
      %v559 = vunpack.c.l.b16 %v234
      %v560 = vunpack.c.l.b16 %v235
      %v561 = vunpack.c.l.b16 %v236
      %v562 = vunpack.c.l.b16 %v237
      %v563 = vunpack.c.l.b16 %v238
      %v564 = vunpack.c.l.b16 %v239
      %v565 = vunpack.c.l.b16 %v240
      %v566 = vunpack.c.l.b16 %v241
      %v567 = vunpack.c.l.b16 %v242
      %v568 = vunpack.c.l.b16 %v243
      %v569 = vunpack.c.l.b16 %v244
      %v570 = vunpack.c.l.b16 %v245
      %v571 = vunpack.c.l.b16 %v246
      %v572 = vpack.c.b16 %v557, %v556
      %v573 = vpack.c.b16 %v559, %v558
      %v574 = vpack.c.b16 %v561, %v560
      %v575 = vpack.c.b16 %v563, %v562
      %v576 = vpack.c.b16 %v565, %v564
      %v577 = vpack.c.b16 %v567, %v566
      %v578 = vpack.c.b16 %v569, %v568
      %v579 = vpack.c.b16 %v571, %v570
      %588 = vmatprep.subr.bf16.mxu0 0
      %589 = vmatpush1.bf16.msra.mxu0 %v572
      %590 = vmatprep.subr.bf16.mxu0 0
      %591 = vmatpush1.bf16.msra.mxu0 %v573
      %592 = vmatprep.subr.bf16.mxu0 0
      %593 = vmatpush1.bf16.msra.mxu0 %v574
      %594 = vmatprep.subr.bf16.mxu0 0
      %595 = vmatpush1.bf16.msra.mxu0 %v575
      %596 = vmatprep.subr.bf16.mxu0 0
      %597 = vmatpush1.bf16.msra.mxu0 %v576
      %598 = vmatprep.subr.bf16.mxu0 0
      %599 = vmatpush1.bf16.msra.mxu0 %v577
      %600 = vmatprep.subr.bf16.mxu0 0
      %601 = vmatpush1.bf16.msra.mxu0 %v578
      %602 = vmatprep.subr.bf16.mxu0 0
      %603 = vmatpush1.bf16.msra.mxu0 %v579
      %604 = vmatprep.subr.bf16.mxu0 0
      %605 = vmatpush1.bf16.msra.mxu0 0
      %606 = vmatprep.subr.bf16.mxu0 0
      %607 = vmatpush1.bf16.msra.mxu0 0
      %608 = vmatprep.subr.bf16.mxu0 0
      %609 = vmatpush1.bf16.msra.mxu0 0
      %610 = vmatprep.subr.bf16.mxu0 0
      %611 = vmatpush1.bf16.msra.mxu0 0
      %612 = vmatprep.subr.bf16.mxu0 0
      %613 = vmatpush1.bf16.msra.mxu0 0
      %614 = vmatprep.subr.bf16.mxu0 0
      %615 = vmatpush1.bf16.msra.mxu0 0
      %616 = vmatprep.subr.bf16.mxu0 0
      %617 = vmatpush1.bf16.msra.mxu0 0
      %618 = vmatprep.subr.bf16.mxu0 0
      %619 = vmatpush1.bf16.msra.mxu0 0
      %620 = vmatprep.mubr.bf16.mxu0 0
      %621 = vmatmul.mubr.bf16.gmra.mrb[0].mxu0 %v532
      %v622 = vpop.f32.mrb[0].mxu0
      %v623 = vadd.f32 %v486, %v622
      %v624 = vpop.f32.mrb[0].mxu0
      %v625 = vpop.f32.mrb[0].mxu0
      %v626 = vadd.f32 %v489, %v625
      %v627 = vpop.f32.mrb[0].mxu0
      %628 = vmatprep.mubr.bf16.mxu0 0
      %629 = vmatmul.mubr.bf16.gmra.mrb[0].mxu0 %v533
      %v630 = vpop.f32.mrb[0].mxu0
      %v631 = vadd.f32 %v494, %v630
      %v632 = vpop.f32.mrb[0].mxu0
      %v633 = vpop.f32.mrb[0].mxu0
      %v634 = vadd.f32 %v497, %v633
      %v635 = vpop.f32.mrb[0].mxu0
      %636 = vmatprep.mubr.bf16.mxu0 0
      %637 = vmatmul.mubr.bf16.gmra.mrb[0].mxu0 %v534
      %v638 = vpop.f32.mrb[0].mxu0
      %v639 = vadd.f32 %v502, %v638
      %v640 = vpop.f32.mrb[0].mxu0
      %v641 = vpop.f32.mrb[0].mxu0
      %v642 = vadd.f32 %v505, %v641
      %v643 = vpop.f32.mrb[0].mxu0
      %644 = vmatprep.mubr.bf16.mxu0 0
      %645 = vmatmul.mubr.bf16.gmra.mrb[0].mxu0 %v535
      %v646 = vpop.f32.mrb[0].mxu0
      %v647 = vadd.f32 %v510, %v646
      %v648 = vpop.f32.mrb[0].mxu0
      %v649 = vpop.f32.mrb[0].mxu0
      %v650 = vadd.f32 %v513, %v649
      %v651 = vpop.f32.mrb[0].mxu0
      %652 = vdwg.mxu0
      %s653 = scalar_lea.vmem %s206, 8
      %v654 = vld [vmem:[%s653] sm:$0xf]
      %v655 = vld [vmem:[%s653 + $0x8] sm:$0xf]
      %v656 = vld [vmem:[%s653 + $0x10] sm:$0xf]
      %v657 = vld [vmem:[%s653 + $0x18] sm:$0xf]
      %v658 = vld [vmem:[%s653 + $0x20] sm:$0xf]
      %v659 = vld [vmem:[%s653 + $0x28] sm:$0xf]
      %v660 = vld [vmem:[%s653 + $0x30] sm:$0xf]
      %v661 = vld [vmem:[%s653 + $0x38] sm:$0xf]
      %s662 = scalar_lea.vmem %s210, 128
      %v663 = vld [vmem:[%s662] sm:$0xf]
      %v664 = vld [vmem:[%s662 + $0x4] sm:$0xf]
      %v665 = vld [vmem:[%s662 + $0x8] sm:$0xf]
      %v666 = vld [vmem:[%s662 + $0xc] sm:$0xf]
      %v667 = vld [vmem:[%s662 + $0x10] sm:$0xf]
      %v668 = vld [vmem:[%s662 + $0x14] sm:$0xf]
      %v669 = vld [vmem:[%s662 + $0x18] sm:$0xf]
      %v670 = vld [vmem:[%s662 + $0x1c] sm:$0xf]
      %v671 = vld [vmem:[%s662 + $0x20] sm:$0xf]
      %v672 = vld [vmem:[%s662 + $0x24] sm:$0xf]
      %v673 = vld [vmem:[%s662 + $0x28] sm:$0xf]
      %v674 = vld [vmem:[%s662 + $0x2c] sm:$0xf]
      %v675 = vld [vmem:[%s662 + $0x30] sm:$0xf]
      %v676 = vld [vmem:[%s662 + $0x34] sm:$0xf]
      %v677 = vld [vmem:[%s662 + $0x38] sm:$0xf]
      %v678 = vld [vmem:[%s662 + $0x3c] sm:$0xf]
      %v687 = vunpack.c.l.b16 %v654
      %v688 = vunpack.c.l.b16 %v655
      %v689 = vunpack.c.l.b16 %v656
      %v690 = vunpack.c.l.b16 %v657
      %v691 = vunpack.c.l.b16 %v658
      %v692 = vunpack.c.l.b16 %v659
      %v693 = vunpack.c.l.b16 %v660
      %v694 = vunpack.c.l.b16 %v661
      %v695 = vpack.c.b16 %v688, %v687
      %v696 = vpack.c.b16 %v690, %v689
      %v697 = vpack.c.b16 %v692, %v691
      %v698 = vpack.c.b16 %v694, %v693
      %v719 = vunpack.c.l.b16 %v663
      %v720 = vunpack.c.l.b16 %v664
      %v721 = vunpack.c.l.b16 %v665
      %v722 = vunpack.c.l.b16 %v666
      %v723 = vunpack.c.l.b16 %v667
      %v724 = vunpack.c.l.b16 %v668
      %v725 = vunpack.c.l.b16 %v669
      %v726 = vunpack.c.l.b16 %v670
      %v727 = vunpack.c.l.b16 %v671
      %v728 = vunpack.c.l.b16 %v672
      %v729 = vunpack.c.l.b16 %v673
      %v730 = vunpack.c.l.b16 %v674
      %v731 = vunpack.c.l.b16 %v675
      %v732 = vunpack.c.l.b16 %v676
      %v733 = vunpack.c.l.b16 %v677
      %v734 = vunpack.c.l.b16 %v678
      %v735 = vpack.c.b16 %v720, %v719
      %v736 = vpack.c.b16 %v722, %v721
      %v737 = vpack.c.b16 %v724, %v723
      %v738 = vpack.c.b16 %v726, %v725
      %v739 = vpack.c.b16 %v728, %v727
      %v740 = vpack.c.b16 %v730, %v729
      %v741 = vpack.c.b16 %v732, %v731
      %v742 = vpack.c.b16 %v734, %v733
      %751 = vmatprep.subr.bf16.mxu0 0
      %752 = vmatpush1.bf16.msra.mxu0 %v735
      %753 = vmatprep.subr.bf16.mxu0 0
      %754 = vmatpush1.bf16.msra.mxu0 %v736
      %755 = vmatprep.subr.bf16.mxu0 0
      %756 = vmatpush1.bf16.msra.mxu0 %v737
      %757 = vmatprep.subr.bf16.mxu0 0
      %758 = vmatpush1.bf16.msra.mxu0 %v738
      %759 = vmatprep.subr.bf16.mxu0 0
      %760 = vmatpush1.bf16.msra.mxu0 %v739
      %761 = vmatprep.subr.bf16.mxu0 0
      %762 = vmatpush1.bf16.msra.mxu0 %v740
      %763 = vmatprep.subr.bf16.mxu0 0
      %764 = vmatpush1.bf16.msra.mxu0 %v741
      %765 = vmatprep.subr.bf16.mxu0 0
      %766 = vmatpush1.bf16.msra.mxu0 %v742
      %767 = vmatprep.subr.bf16.mxu0 0
      %768 = vmatpush1.bf16.msra.mxu0 0
      %769 = vmatprep.subr.bf16.mxu0 0
      %770 = vmatpush1.bf16.msra.mxu0 0
      %771 = vmatprep.subr.bf16.mxu0 0
      %772 = vmatpush1.bf16.msra.mxu0 0
      %773 = vmatprep.subr.bf16.mxu0 0
      %774 = vmatpush1.bf16.msra.mxu0 0
      %775 = vmatprep.subr.bf16.mxu0 0
      %776 = vmatpush1.bf16.msra.mxu0 0
      %777 = vmatprep.subr.bf16.mxu0 0
      %778 = vmatpush1.bf16.msra.mxu0 0
      %779 = vmatprep.subr.bf16.mxu0 0
      %780 = vmatpush1.bf16.msra.mxu0 0
      %781 = vmatprep.subr.bf16.mxu0 0
      %782 = vmatpush1.bf16.msra.mxu0 0
      %783 = vmatprep.mubr.bf16.mxu0 0
      %784 = vmatmul.mubr.bf16.gmra.mrb[0].mxu0 %v695
      %v785 = vpop.f32.mrb[0].mxu0
      %v786 = vadd.f32 0.0, %v785
      %v787 = vpop.f32.mrb[0].mxu0
      %v788 = vpop.f32.mrb[0].mxu0
      %v789 = vadd.f32 0.0, %v788
      %v790 = vpop.f32.mrb[0].mxu0
      %791 = vmatprep.mubr.bf16.mxu0 0
      %792 = vmatmul.mubr.bf16.gmra.mrb[0].mxu0 %v696
      %v793 = vpop.f32.mrb[0].mxu0
      %v794 = vadd.f32 0.0, %v793
      %v795 = vpop.f32.mrb[0].mxu0
      %v796 = vpop.f32.mrb[0].mxu0
      %v797 = vadd.f32 0.0, %v796
      %v798 = vpop.f32.mrb[0].mxu0
      %799 = vmatprep.mubr.bf16.mxu0 0
      %800 = vmatmul.mubr.bf16.gmra.mrb[0].mxu0 %v697
      %v801 = vpop.f32.mrb[0].mxu0
      %v802 = vadd.f32 0.0, %v801
      %v803 = vpop.f32.mrb[0].mxu0
      %v804 = vpop.f32.mrb[0].mxu0
      %v805 = vadd.f32 0.0, %v804
      %v806 = vpop.f32.mrb[0].mxu0
      %807 = vmatprep.mubr.bf16.mxu0 0
      %808 = vmatmul.mubr.bf16.gmra.mrb[0].mxu0 %v698
      %v809 = vpop.f32.mrb[0].mxu0
      %v810 = vadd.f32 0.0, %v809
      %v811 = vpop.f32.mrb[0].mxu0
      %v812 = vpop.f32.mrb[0].mxu0
      %v813 = vadd.f32 0.0, %v812
      %v814 = vpop.f32.mrb[0].mxu0
      %815 = vdwg.mxu0
      %v816 = vadd.f32 %v623, %v786
      %v817 = vadd.f32 %v626, %v789
      %v818 = vadd.f32 %v631, %v794
      %v819 = vadd.f32 %v634, %v797
      %v820 = vadd.f32 %v639, %v802
      %v821 = vadd.f32 %v642, %v805
      %v822 = vadd.f32 %v647, %v810
      %v823 = vadd.f32 %v650, %v813
      %v824 = vld [vmem:[%s653] sm:$0xf]
      %v825 = vld [vmem:[%s653 + $0x4] sm:$0x1]
      %v826 = vld [vmem:[%s653 + $0x8] sm:$0xf]
      %v827 = vld [vmem:[%s653 + $0xc] sm:$0x1]
      %v828 = vld [vmem:[%s653 + $0x10] sm:$0xf]
      %v829 = vld [vmem:[%s653 + $0x14] sm:$0x1]
      %v830 = vld [vmem:[%s653 + $0x18] sm:$0xf]
      %v831 = vld [vmem:[%s653 + $0x1c] sm:$0x1]
      %v832 = vld [vmem:[%s653 + $0x20] sm:$0xf]
      %v833 = vld [vmem:[%s653 + $0x24] sm:$0x1]
      %v834 = vld [vmem:[%s653 + $0x28] sm:$0xf]
      %v835 = vld [vmem:[%s653 + $0x2c] sm:$0x1]
      %v836 = vld [vmem:[%s653 + $0x30] sm:$0xf]
      %v837 = vld [vmem:[%s653 + $0x34] sm:$0x1]
      %v838 = vld [vmem:[%s653 + $0x38] sm:$0xf]
      %v839 = vld [vmem:[%s653 + $0x3c] sm:$0x1]
      %v841 = vshrl.u32 %v824, 16
      %v843 = vrot.slane %v841, 4
      %v844 = vshll.u32 %v824, 16
      %v846 = vrot.slane %v844, 5
      %v847 = vor.u32 %v843, %v846
      %v848 = vrot.slane %v847, 4
      %v850 = vshll.u32 %v825, 16
      %v852 = vrot.slane %v850, 5
      %v853 = vsel %vm257, %v848, %v852
      %v855 = vshrl.u32 %v826, 16
      %v857 = vrot.slane %v855, 4
      %v858 = vshll.u32 %v826, 16
      %v860 = vrot.slane %v858, 5
      %v861 = vor.u32 %v857, %v860
      %v862 = vrot.slane %v861, 4
      %v864 = vshll.u32 %v827, 16
      %v866 = vrot.slane %v864, 5
      %v867 = vsel %vm257, %v862, %v866
      %v869 = vshrl.u32 %v828, 16
      %v871 = vrot.slane %v869, 4
      %v872 = vshll.u32 %v828, 16
      %v874 = vrot.slane %v872, 5
      %v875 = vor.u32 %v871, %v874
      %v876 = vrot.slane %v875, 4
      %v878 = vshll.u32 %v829, 16
      %v880 = vrot.slane %v878, 5
      %v881 = vsel %vm257, %v876, %v880
      %v883 = vshrl.u32 %v830, 16
      %v885 = vrot.slane %v883, 4
      %v886 = vshll.u32 %v830, 16
      %v888 = vrot.slane %v886, 5
      %v889 = vor.u32 %v885, %v888
      %v890 = vrot.slane %v889, 4
      %v892 = vshll.u32 %v831, 16
      %v894 = vrot.slane %v892, 5
      %v895 = vsel %vm257, %v890, %v894
      %v897 = vshrl.u32 %v832, 16
      %v899 = vrot.slane %v897, 4
      %v900 = vshll.u32 %v832, 16
      %v902 = vrot.slane %v900, 5
      %v903 = vor.u32 %v899, %v902
      %v904 = vrot.slane %v903, 4
      %v906 = vshll.u32 %v833, 16
      %v908 = vrot.slane %v906, 5
      %v909 = vsel %vm257, %v904, %v908
      %v911 = vshrl.u32 %v834, 16
      %v913 = vrot.slane %v911, 4
      %v914 = vshll.u32 %v834, 16
      %v916 = vrot.slane %v914, 5
      %v917 = vor.u32 %v913, %v916
      %v918 = vrot.slane %v917, 4
      %v920 = vshll.u32 %v835, 16
      %v922 = vrot.slane %v920, 5
      %v923 = vsel %vm257, %v918, %v922
      %v925 = vshrl.u32 %v836, 16
      %v927 = vrot.slane %v925, 4
      %v928 = vshll.u32 %v836, 16
      %v930 = vrot.slane %v928, 5
      %v931 = vor.u32 %v927, %v930
      %v932 = vrot.slane %v931, 4
      %v934 = vshll.u32 %v837, 16
      %v936 = vrot.slane %v934, 5
      %v937 = vsel %vm257, %v932, %v936
      %v939 = vshrl.u32 %v838, 16
      %v941 = vrot.slane %v939, 4
      %v942 = vshll.u32 %v838, 16
      %v944 = vrot.slane %v942, 5
      %v945 = vor.u32 %v941, %v944
      %v946 = vrot.slane %v945, 4
      %v948 = vshll.u32 %v839, 16
      %v950 = vrot.slane %v948, 5
      %v951 = vsel %vm257, %v946, %v950
      %s952 = scalar_lea.vmem %s210, 192
      %v953 = vld [vmem:[%s952] sm:$0xf]
      %v954 = vld [vmem:[%s952 + $0x4] sm:$0xf]
      %v955 = vld [vmem:[%s952 + $0x8] sm:$0xf]
      %v956 = vld [vmem:[%s952 + $0xc] sm:$0xf]
      %v957 = vld [vmem:[%s952 + $0x10] sm:$0xf]
      %v958 = vld [vmem:[%s952 + $0x14] sm:$0xf]
      %v959 = vld [vmem:[%s952 + $0x18] sm:$0xf]
      %v960 = vld [vmem:[%s952 + $0x1c] sm:$0xf]
      %v961 = vld [vmem:[%s952 + $0x20] sm:$0xf]
      %v962 = vld [vmem:[%s952 + $0x24] sm:$0xf]
      %v963 = vld [vmem:[%s952 + $0x28] sm:$0xf]
      %v964 = vld [vmem:[%s952 + $0x2c] sm:$0xf]
      %v965 = vld [vmem:[%s952 + $0x30] sm:$0xf]
      %v966 = vld [vmem:[%s952 + $0x34] sm:$0xf]
      %v967 = vld [vmem:[%s952 + $0x38] sm:$0xf]
      %v968 = vld [vmem:[%s952 + $0x3c] sm:$0xf]
      %v969 = vunpack.c.l.b16 %v853
      %v970 = vunpack.c.l.b16 %v867
      %v971 = vunpack.c.l.b16 %v881
      %v972 = vunpack.c.l.b16 %v895
      %v973 = vunpack.c.l.b16 %v909
      %v974 = vunpack.c.l.b16 %v923
      %v975 = vunpack.c.l.b16 %v937
      %v976 = vunpack.c.l.b16 %v951
      %v977 = vpack.c.b16 %v970, %v969
      %v978 = vpack.c.b16 %v972, %v971
      %v979 = vpack.c.b16 %v974, %v973
      %v980 = vpack.c.b16 %v976, %v975
      %v1001 = vunpack.c.l.b16 %v953
      %v1002 = vunpack.c.l.b16 %v954
      %v1003 = vunpack.c.l.b16 %v955
      %v1004 = vunpack.c.l.b16 %v956
      %v1005 = vunpack.c.l.b16 %v957
      %v1006 = vunpack.c.l.b16 %v958
      %v1007 = vunpack.c.l.b16 %v959
      %v1008 = vunpack.c.l.b16 %v960
      %v1009 = vunpack.c.l.b16 %v961
      %v1010 = vunpack.c.l.b16 %v962
      %v1011 = vunpack.c.l.b16 %v963
      %v1012 = vunpack.c.l.b16 %v964
      %v1013 = vunpack.c.l.b16 %v965
      %v1014 = vunpack.c.l.b16 %v966
      %v1015 = vunpack.c.l.b16 %v967
      %v1016 = vunpack.c.l.b16 %v968
      %v1017 = vpack.c.b16 %v1002, %v1001
      %v1018 = vpack.c.b16 %v1004, %v1003
      %v1019 = vpack.c.b16 %v1006, %v1005
      %v1020 = vpack.c.b16 %v1008, %v1007
      %v1021 = vpack.c.b16 %v1010, %v1009
      %v1022 = vpack.c.b16 %v1012, %v1011
      %v1023 = vpack.c.b16 %v1014, %v1013
      %v1024 = vpack.c.b16 %v1016, %v1015
      %1033 = vmatprep.subr.bf16.mxu0 0
      %1034 = vmatpush1.bf16.msra.mxu0 %v1017
      %1035 = vmatprep.subr.bf16.mxu0 0
      %1036 = vmatpush1.bf16.msra.mxu0 %v1018
      %1037 = vmatprep.subr.bf16.mxu0 0
      %1038 = vmatpush1.bf16.msra.mxu0 %v1019
      %1039 = vmatprep.subr.bf16.mxu0 0
      %1040 = vmatpush1.bf16.msra.mxu0 %v1020
      %1041 = vmatprep.subr.bf16.mxu0 0
      %1042 = vmatpush1.bf16.msra.mxu0 %v1021
      %1043 = vmatprep.subr.bf16.mxu0 0
      %1044 = vmatpush1.bf16.msra.mxu0 %v1022
      %1045 = vmatprep.subr.bf16.mxu0 0
      %1046 = vmatpush1.bf16.msra.mxu0 %v1023
      %1047 = vmatprep.subr.bf16.mxu0 0
      %1048 = vmatpush1.bf16.msra.mxu0 %v1024
      %1049 = vmatprep.subr.bf16.mxu0 0
      %1050 = vmatpush1.bf16.msra.mxu0 0
      %1051 = vmatprep.subr.bf16.mxu0 0
      %1052 = vmatpush1.bf16.msra.mxu0 0
      %1053 = vmatprep.subr.bf16.mxu0 0
      %1054 = vmatpush1.bf16.msra.mxu0 0
      %1055 = vmatprep.subr.bf16.mxu0 0
      %1056 = vmatpush1.bf16.msra.mxu0 0
      %1057 = vmatprep.subr.bf16.mxu0 0
      %1058 = vmatpush1.bf16.msra.mxu0 0
      %1059 = vmatprep.subr.bf16.mxu0 0
      %1060 = vmatpush1.bf16.msra.mxu0 0
      %1061 = vmatprep.subr.bf16.mxu0 0
      %1062 = vmatpush1.bf16.msra.mxu0 0
      %1063 = vmatprep.subr.bf16.mxu0 0
      %1064 = vmatpush1.bf16.msra.mxu0 0
      %1065 = vmatprep.mubr.bf16.mxu0 0
      %1066 = vmatmul.mubr.bf16.gmra.mrb[0].mxu0 %v977
      %v1067 = vpop.f32.mrb[0].mxu0
      %v1068 = vadd.f32 0.0, %v1067
      %v1069 = vpop.f32.mrb[0].mxu0
      %v1070 = vpop.f32.mrb[0].mxu0
      %v1071 = vadd.f32 0.0, %v1070
      %v1072 = vpop.f32.mrb[0].mxu0
      %1073 = vmatprep.mubr.bf16.mxu0 0
      %1074 = vmatmul.mubr.bf16.gmra.mrb[0].mxu0 %v978
      %v1075 = vpop.f32.mrb[0].mxu0
      %v1076 = vadd.f32 0.0, %v1075
      %v1077 = vpop.f32.mrb[0].mxu0
      %v1078 = vpop.f32.mrb[0].mxu0
      %v1079 = vadd.f32 0.0, %v1078
      %v1080 = vpop.f32.mrb[0].mxu0
      %1081 = vmatprep.mubr.bf16.mxu0 0
      %1082 = vmatmul.mubr.bf16.gmra.mrb[0].mxu0 %v979
      %v1083 = vpop.f32.mrb[0].mxu0
      %v1084 = vadd.f32 0.0, %v1083
      %v1085 = vpop.f32.mrb[0].mxu0
      %v1086 = vpop.f32.mrb[0].mxu0
      %v1087 = vadd.f32 0.0, %v1086
      %v1088 = vpop.f32.mrb[0].mxu0
      %1089 = vmatprep.mubr.bf16.mxu0 0
      %1090 = vmatmul.mubr.bf16.gmra.mrb[0].mxu0 %v980
      %v1091 = vpop.f32.mrb[0].mxu0
      %v1092 = vadd.f32 0.0, %v1091
      %v1093 = vpop.f32.mrb[0].mxu0
      %v1094 = vpop.f32.mrb[0].mxu0
      %v1095 = vadd.f32 0.0, %v1094
      %v1096 = vpop.f32.mrb[0].mxu0
      %1097 = vdwg.mxu0
      %v1098 = vadd.f32 %v816, %v1068
      %v1099 = vadd.f32 %v817, %v1071
      %v1100 = vadd.f32 %v818, %v1076
      %v1101 = vadd.f32 %v819, %v1079
      %v1102 = vadd.f32 %v820, %v1084
      %v1103 = vadd.f32 %v821, %v1087
      %v1104 = vadd.f32 %v822, %v1092
      %v1105 = vadd.f32 %v823, %v1095
      %v1106 = vld [vmem:[%s213] sm:$0x1]
      %v1108 = vlaneseq
      %v1109 = vshrl.u32 %v1108, 7
      %v1110 = vsub.s32 0, %v1109
      %v1111 = vrot.slane %v1106, %v1110
      %v1113 = vadd.f32 %v1098, %v1111
      %v1114 = vadd.f32 %v1099, %v1111
      %v1115 = vadd.f32 %v1100, %v1111
      %v1116 = vadd.f32 %v1101, %v1111
      %v1117 = vadd.f32 %v1102, %v1111
      %v1118 = vadd.f32 %v1103, %v1111
      %v1119 = vadd.f32 %v1104, %v1111
      %v1120 = vadd.f32 %v1105, %v1111
      %v1121 = vmax.f32 %v1113, 0.0
      %v1122 = vmax.f32 %v1114, 0.0
      %v1123 = vmax.f32 %v1115, 0.0
      %v1124 = vmax.f32 %v1116, 0.0
      %v1125 = vmax.f32 %v1117, 0.0
      %v1126 = vmax.f32 %v1118, 0.0
      %v1127 = vmax.f32 %v1119, 0.0
      %v1128 = vmax.f32 %v1120, 0.0
      %v1129 = vpack.c.bf16 %v1121, %v1121
      %v1130 = vpack.c.bf16 %v1122, %v1122
      %v1131 = vpack.c.bf16 %v1123, %v1123
      %v1132 = vpack.c.bf16 %v1124, %v1124
      %v1133 = vpack.c.bf16 %v1125, %v1125
      %v1134 = vpack.c.bf16 %v1126, %v1126
      %v1135 = vpack.c.bf16 %v1127, %v1127
      %v1136 = vpack.c.bf16 %v1128, %v1128
      %1137 = vst [vmem:[%s221] sm:$0xf] %v1129
      %1138 = vst [vmem:[%s221 + $0x4] sm:$0xf] %v1130
      %1139 = vst [vmem:[%s221 + $0x8] sm:$0xf] %v1131
      %1140 = vst [vmem:[%s221 + $0xc] sm:$0xf] %v1132
      %1141 = vst [vmem:[%s221 + $0x10] sm:$0xf] %v1133
      %1142 = vst [vmem:[%s221 + $0x14] sm:$0xf] %v1134
      %1143 = vst [vmem:[%s221 + $0x18] sm:$0xf] %v1135
      %1144 = vst [vmem:[%s221 + $0x1c] sm:$0xf] %v1136
      %p1145 = scmp.lt.s32.totalorder %s18, 1
      %s1146 = scalar_select %p1145, %s18, 1
      %p1147 = scmp.lt.s32.totalorder %s19, 0
      %s1148 = scalar_select %p1147, %s19, 0
      %s1149 = smul.addr %s1146, 8
      %s1150 = sadd.s32 %s1148, %s1149
      %s1151 = smul.addr %s1150, 4
      %s1152 = scalar_lea.vmem %s3, %s1151
      // Predicated region
      $region33: #{downsample_block_forward.2} parent=31 // pred_check
        %p1153 = pneg %p124
      $region34: #{downsample_block_forward.2} parent=31 // pred_check_branch
        %1155 = sbr.rel (%p1153) target = $region36
      $region35: #{downsample_block_forward.2} parent=31 // pred_region
        _
      $region36: #{downsample_block_forward.2} parent=31 // pred_fallthru
        _
    $region32: #{downsample_block_forward.2} parent=5 // pred_fallthru
      _
    %p1156 = scmp.le.s32.totalorder 2, %s9
    // Predicated region
    $region37: #{downsample_block_forward.2} parent=5 // pred_check
      %p1157 = pneg %p1156
    $region38: #{downsample_block_forward.2} parent=5 // pred_check_branch
      %1159 = sbr.rel (%p1157) target = $region40
    $region39: #{downsample_block_forward.2} parent=5 // pred_region
      %s1160 = ssub.s32 %s9, 2
      // Predicated region
      $region41: #{downsample_block_forward.2} parent=39 // pred_check
        %p1161 = pneg %p130
      $region42: #{downsample_block_forward.2} parent=39 // pred_check_branch
        %1163 = sbr.rel (%p1161) target = $region44
      $region43: #{downsample_block_forward.2} parent=39 // pred_region
        %p1164 = scmp.lt.s32.totalorder %s20, 1
        %s1165 = scalar_select %p1164, %s20, 1
        %p1166 = scmp.lt.s32.totalorder %s21, 0
        %s1167 = scalar_select %p1166, %s21, 0
        %s1168 = smul.addr %s1165, 8
        %s1169 = sadd.s32 %s1167, %s1168
        %s1170 = smul.addr %s1169, 4
        %s1171 = scalar_lea.vmem %s3, %s1170
      $region44: #{downsample_block_forward.2} parent=39 // pred_fallthru
        _
    $region40: #{downsample_block_forward.2} parent=5 // pred_fallthru
      _
  $region6: #{downsample_block_forward.2} parent=0 // loop_footer
    %s13 = sadd.s32 1, %s9
  $region7: #{downsample_block_forward.2} parent=0 // loop_footer_branch
    %8 = sbr.rel target = $region3
  $region8: #{downsample_block_forward.2} parent=0 // loop_exit
    _

// kernel: downsample_block_forward.3
$region0: #{downsample_block_forward.3}
  #allocation0 [shape = 'u32[]', space=smem, size = 0x4, offset = 0x4, fixed_abs, tag = 'smem constant byte address 0x4 - core index']
  #allocation1 [shape = 'u32[144,128]{1,0:T(1,128)}', space=vmem, size = 0x12000, scoped, tag = 'internal scratch']
  #allocation2 [shape = 'bf16[10,10,128]{2,1,0:T(8,128)(2,1)}', space=vmem, size = 0xa000, scoped, tag = 'scratch operand']
  #allocation3 [shape = 'bf16[10,10,128]{2,1,0:T(8,128)(2,1)}', space=vmem, size = 0xa000, scoped, tag = 'scratch operand']
  %s0 = inlined_call_operand.vmem [shape: bf16[2,8,8,128], index: 0, kind: input, shape index: {}]
  %s1 = inlined_call_operand.vmem [shape: bf16[2,9,128,128], index: 1, kind: input, shape index: {}]
  %s2 = inlined_call_operand.vmem [shape: f32[2,1,128], index: 2, kind: input, shape index: {}]
  %s3 = inlined_call_operand.vmem [shape: bf16[2,9,128,128], index: 3, kind: input, shape index: {}]
  %s4 = inlined_call_operand.vmem [shape: f32[2,1,128], index: 4, kind: input, shape index: {}]
  %s5 = inlined_call_operand.vmem [shape: bf16[2,8,8,128], index: 5, kind: output, shape index: {}]
  %s6 = sld [smem:[#allocation0]]
  $region65: #{downsample_block_forward.3} parent=0
    _
  %s8 = ssub.s32 1, %s6
  %s9 = scalar_select 0, %s8, %s6
  loop: start=0, step=1, limit=6
  $region2: #{downsample_block_forward.3} parent=0 // loop_pre_header
    _
  $region3: #{downsample_block_forward.3} parent=0 // loop_header
    %s11 = sphi 0, %s15
    %p12 = scmp.ge.s32.totalorder %s11, 6
    %s18 = sphi 0, %s30
    %s19 = sphi 0, %s26
    %s20 = sphi 0, %s18
    %s21 = sphi 0, %s19
    %s22 = sphi 0, %s20
    %s23 = sphi 0, %s21
    %s33 = sphi 0, %s35
    %s36 = sphi 0, %s33
    %s37 = sphi 0, %s36
    %s53 = sphi 0, %s37
    %s59 = sphi 0, %s61
    %s62 = sphi 0, %s59
    %s63 = sphi 0, %s62
    %s79 = sphi 0, %s63
    %s85 = sphi 0, %s87
    %s88 = sphi 0, %s85
    %s89 = sphi 0, %s88
    %s105 = sphi 0, %s89
    %s111 = sphi 0, %s113
    %s114 = sphi 0, %s111
    %s115 = sphi 0, %s114
    %s131 = sphi 0, %s115
    %s137 = sphi 0, %s139
    %s140 = sphi 0, %s137
    %s141 = sphi 0, %s140
    %s157 = sphi 0, %s141
    %s163 = sphi 0, %s165
    %s166 = sphi 0, %s163
    %s167 = sphi 0, %s166
    %s183 = sphi 0, %s167
  $region4: #{downsample_block_forward.3} parent=0 // loop_header_branch
    %14 = sbr.rel (%p12) target = $region8
  $region5: #{downsample_block_forward.3} parent=0 // loop_body
    %s16 = ssub.s32 %s11, 1
    %s17 = ssub.s32 %s11, 2
    %s24 = sadd.s32 1, %s19
    %p25 = scmp.ge.s32.totalorder %s24, 2
    %s26 = scalar_select %p25, 0, %s24
    %s27 = sadd.s32 1, %s18
    %s28 = scalar_select %p25, %s27, %s18
    %p29 = scmp.ge.s32.totalorder %s28, 2
    %s30 = scalar_select %p29, 0, %s28
    %s31 = ssub.s32 %s18, %s30
    %p32 = scmp.eq.s32.totalorder %s31, 0
    %s34 = sadd.s32 %s33, 1
    %s35 = scalar_select %p32, %s33, %s34
    %p38 = pneg %p32
    %p39 = scmp.eq.s32.totalorder %s11, 3
    %p40 = por %p38, %p39
    %p41 = scmp.ne.s32.totalorder %s33, %s36
    %p42 = scmp.eq.s32.totalorder %s11, 0
    %p43 = por %p41, %p42
    %p44 = scmp.ne.s32.totalorder %s33, %s36
    %p45 = scmp.eq.s32.totalorder %s16, 3
    %p46 = por %p44, %p45
    %p47 = scmp.ne.s32.totalorder %s36, %s37
    %p48 = scmp.eq.s32.totalorder %s16, 0
    %p49 = por %p47, %p48
    %p50 = scmp.ne.s32.totalorder %s36, %s37
    %p51 = scmp.eq.s32.totalorder %s17, 3
    %p52 = por %p50, %p51
    %p54 = scmp.ne.s32.totalorder %s37, %s53
    %p55 = scmp.eq.s32.totalorder %s17, 0
    %p56 = por %p54, %p55
    %s57 = ssub.s32 %s19, %s26
    %p58 = scmp.eq.s32.totalorder %s57, 0
    %s60 = sadd.s32 %s59, 1
    %s61 = scalar_select %p58, %s59, %s60
    %p64 = pneg %p58
    %p65 = scmp.eq.s32.totalorder %s11, 3
    %p66 = por %p64, %p65
    %p67 = scmp.ne.s32.totalorder %s59, %s62
    %p68 = scmp.eq.s32.totalorder %s11, 0
    %p69 = por %p67, %p68
    %p70 = scmp.ne.s32.totalorder %s59, %s62
    %p71 = scmp.eq.s32.totalorder %s16, 3
    %p72 = por %p70, %p71
    %p73 = scmp.ne.s32.totalorder %s62, %s63
    %p74 = scmp.eq.s32.totalorder %s16, 0
    %p75 = por %p73, %p74
    %p76 = scmp.ne.s32.totalorder %s62, %s63
    %p77 = scmp.eq.s32.totalorder %s17, 3
    %p78 = por %p76, %p77
    %p80 = scmp.ne.s32.totalorder %s63, %s79
    %p81 = scmp.eq.s32.totalorder %s17, 0
    %p82 = por %p80, %p81
    %s83 = ssub.s32 %s19, %s26
    %p84 = scmp.eq.s32.totalorder %s83, 0
    %s86 = sadd.s32 %s85, 1
    %s87 = scalar_select %p84, %s85, %s86
    %p90 = pneg %p84
    %p91 = scmp.eq.s32.totalorder %s11, 3
    %p92 = por %p90, %p91
    %p93 = scmp.ne.s32.totalorder %s85, %s88
    %p94 = scmp.eq.s32.totalorder %s11, 0
    %p95 = por %p93, %p94
    %p96 = scmp.ne.s32.totalorder %s85, %s88
    %p97 = scmp.eq.s32.totalorder %s16, 3
    %p98 = por %p96, %p97
    %p99 = scmp.ne.s32.totalorder %s88, %s89
    %p100 = scmp.eq.s32.totalorder %s16, 0
    %p101 = por %p99, %p100
    %p102 = scmp.ne.s32.totalorder %s88, %s89
    %p103 = scmp.eq.s32.totalorder %s17, 3
    %p104 = por %p102, %p103
    %p106 = scmp.ne.s32.totalorder %s89, %s105
    %p107 = scmp.eq.s32.totalorder %s17, 0
    %p108 = por %p106, %p107
    %s109 = ssub.s32 %s19, %s26
    %p110 = scmp.eq.s32.totalorder %s109, 0
    %s112 = sadd.s32 %s111, 1
    %s113 = scalar_select %p110, %s111, %s112
    %p116 = pneg %p110
    %p117 = scmp.eq.s32.totalorder %s11, 3
    %p118 = por %p116, %p117
    %p119 = scmp.ne.s32.totalorder %s111, %s114
    %p120 = scmp.eq.s32.totalorder %s11, 0
    %p121 = por %p119, %p120
    %p122 = scmp.ne.s32.totalorder %s111, %s114
    %p123 = scmp.eq.s32.totalorder %s16, 3
    %p124 = por %p122, %p123
    %p125 = scmp.ne.s32.totalorder %s114, %s115
    %p126 = scmp.eq.s32.totalorder %s16, 0
    %p127 = por %p125, %p126
    %p128 = scmp.ne.s32.totalorder %s114, %s115
    %p129 = scmp.eq.s32.totalorder %s17, 3
    %p130 = por %p128, %p129
    %p132 = scmp.ne.s32.totalorder %s115, %s131
    %p133 = scmp.eq.s32.totalorder %s17, 0
    %p134 = por %p132, %p133
    %s135 = ssub.s32 %s19, %s26
    %p136 = scmp.eq.s32.totalorder %s135, 0
    %s138 = sadd.s32 %s137, 1
    %s139 = scalar_select %p136, %s137, %s138
    %p142 = pneg %p136
    %p143 = scmp.eq.s32.totalorder %s11, 3
    %p144 = por %p142, %p143
    %p145 = scmp.ne.s32.totalorder %s137, %s140
    %p146 = scmp.eq.s32.totalorder %s11, 0
    %p147 = por %p145, %p146
    %p148 = scmp.ne.s32.totalorder %s137, %s140
    %p149 = scmp.eq.s32.totalorder %s16, 3
    %p150 = por %p148, %p149
    %p151 = scmp.ne.s32.totalorder %s140, %s141
    %p152 = scmp.eq.s32.totalorder %s16, 0
    %p153 = por %p151, %p152
    %p154 = scmp.ne.s32.totalorder %s140, %s141
    %p155 = scmp.eq.s32.totalorder %s17, 3
    %p156 = por %p154, %p155
    %p158 = scmp.ne.s32.totalorder %s141, %s157
    %p159 = scmp.eq.s32.totalorder %s17, 0
    %p160 = por %p158, %p159
    %s161 = ssub.s32 %s18, %s30
    %p162 = scmp.eq.s32.totalorder %s161, 0
    %s164 = sadd.s32 %s163, 1
    %s165 = scalar_select %p162, %s163, %s164
    %p168 = pneg %p162
    %p169 = scmp.eq.s32.totalorder %s11, 3
    %p170 = por %p168, %p169
    %p171 = scmp.ne.s32.totalorder %s163, %s166
    %p172 = scmp.eq.s32.totalorder %s11, 0
    %p173 = por %p171, %p172
    %p174 = scmp.ne.s32.totalorder %s163, %s166
    %p175 = scmp.eq.s32.totalorder %s16, 3
    %p176 = por %p174, %p175
    %p177 = scmp.ne.s32.totalorder %s166, %s167
    %p178 = scmp.eq.s32.totalorder %s16, 0
    %p179 = por %p177, %p178
    %p180 = scmp.ne.s32.totalorder %s166, %s167
    %p181 = scmp.eq.s32.totalorder %s17, 3
    %p182 = por %p180, %p181
    %p184 = scmp.ne.s32.totalorder %s167, %s183
    %p185 = scmp.eq.s32.totalorder %s17, 0
    %p186 = por %p184, %p185
    %p187 = scmp.le.s32.totalorder 1, %s11
    %p188 = scmp.lt.s32.totalorder %s11, 5
    %p189 = pnand %p187, %p188
    %p190 = pneg %p189
    // Predicated region
    $region9: #{downsample_block_forward.3} parent=5 // pred_check
      _
    $region10: #{downsample_block_forward.3} parent=5 // pred_check_branch
      %192 = sbr.rel (%p189) target = $region12
    $region11: #{downsample_block_forward.3} parent=5 // pred_region
      %s193 = ssub.s32 %s11, 1
    $region12: #{downsample_block_forward.3} parent=5 // pred_fallthru
      _
    %p194 = scmp.lt.s32.totalorder %s11, 4
    // Predicated region
    $region13: #{downsample_block_forward.3} parent=5 // pred_check
      %p195 = pneg %p194
    $region14: #{downsample_block_forward.3} parent=5 // pred_check_branch
      %197 = sbr.rel (%p195) target = $region16
    $region15: #{downsample_block_forward.3} parent=5 // pred_region
      // Predicated region
      $region17: #{downsample_block_forward.3} parent=15 // pred_check
        %p198 = pneg %p43
      $region18: #{downsample_block_forward.3} parent=15 // pred_check_branch
        %200 = sbr.rel (%p198) target = $region20
      $region19: #{downsample_block_forward.3} parent=15 // pred_region
        %p201 = scmp.lt.s32.totalorder %s18, 1
        %s202 = scalar_select %p201, %s18, 1
        %s203 = smul.addr %s202, 8
        %s204 = smul.addr %s203, 4
        %s205 = scalar_lea.vmem %s0, %s204
      $region20: #{downsample_block_forward.3} parent=15 // pred_fallthru
        _
      // Predicated region
      $region21: #{downsample_block_forward.3} parent=15 // pred_check
        %p206 = pneg %p69
      $region22: #{downsample_block_forward.3} parent=15 // pred_check_branch
        %208 = sbr.rel (%p206) target = $region24
      $region23: #{downsample_block_forward.3} parent=15 // pred_region
        %p209 = scmp.lt.s32.totalorder %s19, 1
        %s210 = scalar_select %p209, %s19, 1
        %s211 = smul.addr %s210, 144
        %s212 = smul.addr %s211, 4
        %s213 = scalar_lea.vmem %s1, %s212
      $region24: #{downsample_block_forward.3} parent=15 // pred_fallthru
        _
      // Predicated region
      $region25: #{downsample_block_forward.3} parent=15 // pred_check
        %p214 = pneg %p95
      $region26: #{downsample_block_forward.3} parent=15 // pred_check_branch
        %216 = sbr.rel (%p214) target = $region28
      $region27: #{downsample_block_forward.3} parent=15 // pred_region
        %p217 = scmp.lt.s32.totalorder %s19, 1
        %s218 = scalar_select %p217, %s19, 1
        %s219 = scalar_lea.vmem %s2, %s218
      $region28: #{downsample_block_forward.3} parent=15 // pred_fallthru
        _
      // Predicated region
      $region29: #{downsample_block_forward.3} parent=15 // pred_check
        %p220 = pneg %p121
      $region30: #{downsample_block_forward.3} parent=15 // pred_check_branch
        %222 = sbr.rel (%p220) target = $region32
      $region31: #{downsample_block_forward.3} parent=15 // pred_region
        %p223 = scmp.lt.s32.totalorder %s19, 1
        %s224 = scalar_select %p223, %s19, 1
        %s225 = smul.addr %s224, 144
        %s226 = smul.addr %s225, 4
        %s227 = scalar_lea.vmem %s3, %s226
      $region32: #{downsample_block_forward.3} parent=15 // pred_fallthru
        _
      // Predicated region
      $region33: #{downsample_block_forward.3} parent=15 // pred_check
        %p228 = pneg %p147
      $region34: #{downsample_block_forward.3} parent=15 // pred_check_branch
        %230 = sbr.rel (%p228) target = $region36
      $region35: #{downsample_block_forward.3} parent=15 // pred_region
        %p231 = scmp.lt.s32.totalorder %s19, 1
        %s232 = scalar_select %p231, %s19, 1
        %s233 = scalar_lea.vmem %s4, %s232
      $region36: #{downsample_block_forward.3} parent=15 // pred_fallthru
        _
    $region16: #{downsample_block_forward.3} parent=5 // pred_fallthru
      _
    %p234 = scmp.le.s32.totalorder 1, %s11
    %p235 = scmp.lt.s32.totalorder %s11, 5
    %p236 = pnand %p234, %p235
    %p237 = pneg %p236
    // Predicated region
    $region37: #{downsample_block_forward.3} parent=5 // pred_check
      _
    $region38: #{downsample_block_forward.3} parent=5 // pred_check_branch
      %239 = sbr.rel (%p236) target = $region40
    $region39: #{downsample_block_forward.3} parent=5 // pred_region
      %s240 = ssub.s32 %s11, 1
      %p241 = scmp.lt.s32.totalorder %s20, 1
      %s242 = scalar_select %p241, %s20, 1
      %s243 = smul.addr %s242, 8
      %s244 = smul.addr %s243, 4
      %s245 = scalar_lea.vmem %s0, %s244
      %p246 = pneg %p49
      %p247 = pneg %p46
      %p248 = scmp.lt.s32.totalorder %s21, 1
      %s249 = scalar_select %p248, %s21, 1
      %s250 = smul.addr %s249, 144
      %s251 = smul.addr %s250, 4
      %s252 = scalar_lea.vmem %s1, %s251
      %p253 = pneg %p75
      %p254 = pneg %p72
      %p255 = scmp.lt.s32.totalorder %s21, 1
      %s256 = scalar_select %p255, %s21, 1
      %s257 = scalar_lea.vmem %s2, %s256
      %p258 = pneg %p101
      %p259 = pneg %p98
      %p260 = scmp.lt.s32.totalorder %s21, 1
      %s261 = scalar_select %p260, %s21, 1
      %s262 = smul.addr %s261, 144
      %s263 = smul.addr %s262, 4
      %s264 = scalar_lea.vmem %s3, %s263
      %p265 = pneg %p127
      %p266 = pneg %p124
      %p267 = scmp.lt.s32.totalorder %s21, 1
      %s268 = scalar_select %p267, %s21, 1
      %s269 = scalar_lea.vmem %s4, %s268
      %p270 = pneg %p153
      %p271 = pneg %p150
      %p272 = pneg %p179
      %p273 = pneg %p176
      %p274 = scmp.lt.s32.totalorder %s20, 1
      %s275 = scalar_select %p274, %s20, 1
      %s276 = smul.addr %s275, 8
      %s277 = smul.addr %s276, 4
      %s278 = scalar_lea.vmem %s5, %s277
      %p279 = scmp.lt.s32.totalorder %s20, 1
      %s280 = scalar_select %p279, %s20, 1
      %s281 = smul.addr %s280, 8
      %s282 = smul.addr %s281, 4
      %s283 = scalar_lea.vmem %s0, %s282
      %p284 = scmp.lt.s32.totalorder %s21, 1
      %s285 = scalar_select %p284, %s21, 1
      %s286 = smul.addr %s285, 144
      %s287 = smul.addr %s286, 4
      %s288 = scalar_lea.vmem %s1, %s287
      %p289 = scmp.lt.s32.totalorder %s21, 1
      %s290 = scalar_select %p289, %s21, 1
      %s291 = scalar_lea.vmem %s2, %s290
      %p292 = scmp.lt.s32.totalorder %s21, 1
      %s293 = scalar_select %p292, %s21, 1
      %s294 = smul.addr %s293, 144
      %s295 = smul.addr %s294, 4
      %s296 = scalar_lea.vmem %s3, %s295
      %p297 = scmp.lt.s32.totalorder %s21, 1
      %s298 = scalar_select %p297, %s21, 1
      %s299 = scalar_lea.vmem %s4, %s298
      %p300 = scmp.lt.s32.totalorder %s20, 1
      %s301 = scalar_select %p300, %s20, 1
      %s302 = smul.addr %s301, 8
      %s303 = smul.addr %s302, 4
      %s304 = scalar_lea.vmem %s5, %s303
      %p306 = scmp.eq.s32.totalorder %s21, 0
      // Predicated region
      $region41: #{downsample_block_forward.3} parent=39 // pred_check
        %p307 = pneg %p306
      $region42: #{downsample_block_forward.3} parent=39 // pred_check_branch
        %309 = sbr.rel (%p307) target = $region44
      $region43: #{downsample_block_forward.3} parent=39 // pred_region
        %310 = vst [vmem:[#allocation2] sm:$0xf] 0
        %311 = vst [vmem:[#allocation2 + $0x4] sm:$0x1] 0
        %s312 = scalar_lea.vmem [#allocation2], 72
        %313 = vst [vmem:[%s312] sm:$0xf] 0
        %314 = vst [vmem:[%s312 + $0x4] sm:$0x1] 0
        %s315 = scalar_lea.vmem [#allocation2], 8
        %vm316 = vcmask 1040384
        %vm317 = vsmask.f32 256
        %vm318 = vmand %vm316, %vm317
        %v319 = vld [vmem:[%s315] sm:$0x1]
        %v320 = vsel %vm318, 0, %v319
        %321 = vst [vmem:[%s315] sm:$0x1] %v320
        %v322 = vld [vmem:[%s315 + $0x8] sm:$0x1]
        %v323 = vsel %vm318, 0, %v322
        %324 = vst [vmem:[%s315 + $0x8] sm:$0x1] %v323
        %v325 = vld [vmem:[%s315 + $0x10] sm:$0x1]
        %v326 = vsel %vm318, 0, %v325
        %327 = vst [vmem:[%s315 + $0x10] sm:$0x1] %v326
        %v328 = vld [vmem:[%s315 + $0x18] sm:$0x1]
        %v329 = vsel %vm318, 0, %v328
        %330 = vst [vmem:[%s315 + $0x18] sm:$0x1] %v329
        %v331 = vld [vmem:[%s315 + $0x20] sm:$0x1]
        %v332 = vsel %vm318, 0, %v331
        %333 = vst [vmem:[%s315 + $0x20] sm:$0x1] %v332
        %v334 = vld [vmem:[%s315 + $0x28] sm:$0x1]
        %v335 = vsel %vm318, 0, %v334
        %336 = vst [vmem:[%s315 + $0x28] sm:$0x1] %v335
        %v337 = vld [vmem:[%s315 + $0x30] sm:$0x1]
        %v338 = vsel %vm318, 0, %v337
        %339 = vst [vmem:[%s315 + $0x30] sm:$0x1] %v338
        %v340 = vld [vmem:[%s315 + $0x38] sm:$0x1]
        %v341 = vsel %vm318, 0, %v340
        %342 = vst [vmem:[%s315 + $0x38] sm:$0x1] %v341
        %vm343 = vsmask.f32 7938
        %vm344 = vmand %vm316, %vm343
        %v345 = vld [vmem:[%s315 + $0x4] sm:$0x1]
        %v346 = vsel %vm344, 0, %v345
        %347 = vst [vmem:[%s315 + $0x4] sm:$0x1] %v346
        %v348 = vld [vmem:[%s315 + $0xc] sm:$0x1]
        %v349 = vsel %vm344, 0, %v348
        %350 = vst [vmem:[%s315 + $0xc] sm:$0x1] %v349
        %v351 = vld [vmem:[%s315 + $0x14] sm:$0x1]
        %v352 = vsel %vm344, 0, %v351
        %353 = vst [vmem:[%s315 + $0x14] sm:$0x1] %v352
        %v354 = vld [vmem:[%s315 + $0x1c] sm:$0x1]
        %v355 = vsel %vm344, 0, %v354
        %356 = vst [vmem:[%s315 + $0x1c] sm:$0x1] %v355
        %v357 = vld [vmem:[%s315 + $0x24] sm:$0x1]
        %v358 = vsel %vm344, 0, %v357
        %359 = vst [vmem:[%s315 + $0x24] sm:$0x1] %v358
        %v360 = vld [vmem:[%s315 + $0x2c] sm:$0x1]
        %v361 = vsel %vm344, 0, %v360
        %362 = vst [vmem:[%s315 + $0x2c] sm:$0x1] %v361
        %v363 = vld [vmem:[%s315 + $0x34] sm:$0x1]
        %v364 = vsel %vm344, 0, %v363
        %365 = vst [vmem:[%s315 + $0x34] sm:$0x1] %v364
        %v366 = vld [vmem:[%s315 + $0x3c] sm:$0x1]
        %v367 = vsel %vm344, 0, %v366
        %368 = vst [vmem:[%s315 + $0x3c] sm:$0x1] %v367
        %369 = vst [vmem:[#allocation3] sm:$0xf] 0
        %370 = vst [vmem:[#allocation3 + $0x4] sm:$0x1] 0
        %s371 = scalar_lea.vmem [#allocation3], 72
        %372 = vst [vmem:[%s371] sm:$0xf] 0
        %373 = vst [vmem:[%s371 + $0x4] sm:$0x1] 0
        %s374 = scalar_lea.vmem [#allocation3], 8
        %v375 = vld [vmem:[%s374] sm:$0x1]
        %v376 = vsel %vm318, 0, %v375
        %377 = vst [vmem:[%s374] sm:$0x1] %v376
        %v378 = vld [vmem:[%s374 + $0x8] sm:$0x1]
        %v379 = vsel %vm318, 0, %v378
        %380 = vst [vmem:[%s374 + $0x8] sm:$0x1] %v379
        %v381 = vld [vmem:[%s374 + $0x10] sm:$0x1]
        %v382 = vsel %vm318, 0, %v381
        %383 = vst [vmem:[%s374 + $0x10] sm:$0x1] %v382
        %v384 = vld [vmem:[%s374 + $0x18] sm:$0x1]
        %v385 = vsel %vm318, 0, %v384
        %386 = vst [vmem:[%s374 + $0x18] sm:$0x1] %v385
        %v387 = vld [vmem:[%s374 + $0x20] sm:$0x1]
        %v388 = vsel %vm318, 0, %v387
        %389 = vst [vmem:[%s374 + $0x20] sm:$0x1] %v388
        %v390 = vld [vmem:[%s374 + $0x28] sm:$0x1]
        %v391 = vsel %vm318, 0, %v390
        %392 = vst [vmem:[%s374 + $0x28] sm:$0x1] %v391
        %v393 = vld [vmem:[%s374 + $0x30] sm:$0x1]
        %v394 = vsel %vm318, 0, %v393
        %395 = vst [vmem:[%s374 + $0x30] sm:$0x1] %v394
        %v396 = vld [vmem:[%s374 + $0x38] sm:$0x1]
        %v397 = vsel %vm318, 0, %v396
        %398 = vst [vmem:[%s374 + $0x38] sm:$0x1] %v397
        %v399 = vld [vmem:[%s374 + $0x4] sm:$0x1]
        %v400 = vsel %vm344, 0, %v399
        %401 = vst [vmem:[%s374 + $0x4] sm:$0x1] %v400
        %v402 = vld [vmem:[%s374 + $0xc] sm:$0x1]
        %v403 = vsel %vm344, 0, %v402
        %404 = vst [vmem:[%s374 + $0xc] sm:$0x1] %v403
        %v405 = vld [vmem:[%s374 + $0x14] sm:$0x1]
        %v406 = vsel %vm344, 0, %v405
        %407 = vst [vmem:[%s374 + $0x14] sm:$0x1] %v406
        %v408 = vld [vmem:[%s374 + $0x1c] sm:$0x1]
        %v409 = vsel %vm344, 0, %v408
        %410 = vst [vmem:[%s374 + $0x1c] sm:$0x1] %v409
        %v411 = vld [vmem:[%s374 + $0x24] sm:$0x1]
        %v412 = vsel %vm344, 0, %v411
        %413 = vst [vmem:[%s374 + $0x24] sm:$0x1] %v412
        %v414 = vld [vmem:[%s374 + $0x2c] sm:$0x1]
        %v415 = vsel %vm344, 0, %v414
        %416 = vst [vmem:[%s374 + $0x2c] sm:$0x1] %v415
        %v417 = vld [vmem:[%s374 + $0x34] sm:$0x1]
        %v418 = vsel %vm344, 0, %v417
        %419 = vst [vmem:[%s374 + $0x34] sm:$0x1] %v418
        %v420 = vld [vmem:[%s374 + $0x3c] sm:$0x1]
        %v421 = vsel %vm344, 0, %v420
        %422 = vst [vmem:[%s374 + $0x3c] sm:$0x1] %v421
        %v423 = vld [vmem:[%s283] sm:$0xf]
        %v424 = vld [vmem:[%s283 + $0x4] sm:$0xf]
        %v425 = vld [vmem:[%s283 + $0x8] sm:$0xf]
        %v426 = vld [vmem:[%s283 + $0xc] sm:$0xf]
        %v427 = vld [vmem:[%s283 + $0x10] sm:$0xf]
        %v428 = vld [vmem:[%s283 + $0x14] sm:$0xf]
        %v429 = vld [vmem:[%s283 + $0x18] sm:$0xf]
        %v430 = vld [vmem:[%s283 + $0x1c] sm:$0xf]
        %v432 = vshrl.u32 %v423, 16
        %v434 = vrot.slane %v432, 7
        %v435 = vshll.u32 %v423, 16
        %v437 = vor.u32 %v434, %v435
        %v438 = vrot.slane %v434, 4
        %v440 = vshrl.u32 %v424, 16
        %v442 = vrot.slane %v440, 7
        %v443 = vshll.u32 %v424, 16
        %v445 = vor.u32 %v442, %v443
        %v446 = vrot.slane %v442, 4
        %v448 = vshrl.u32 %v425, 16
        %v450 = vrot.slane %v448, 7
        %v451 = vshll.u32 %v425, 16
        %v453 = vor.u32 %v450, %v451
        %v454 = vrot.slane %v450, 4
        %v456 = vshrl.u32 %v426, 16
        %v458 = vrot.slane %v456, 7
        %v459 = vshll.u32 %v426, 16
        %v461 = vor.u32 %v458, %v459
        %v462 = vrot.slane %v458, 4
        %v464 = vshrl.u32 %v427, 16
        %v466 = vrot.slane %v464, 7
        %v467 = vshll.u32 %v427, 16
        %v469 = vor.u32 %v466, %v467
        %v470 = vrot.slane %v466, 4
        %v472 = vshrl.u32 %v428, 16
        %v474 = vrot.slane %v472, 7
        %v475 = vshll.u32 %v428, 16
        %v477 = vor.u32 %v474, %v475
        %v478 = vrot.slane %v474, 4
        %v480 = vshrl.u32 %v429, 16
        %v482 = vrot.slane %v480, 7
        %v483 = vshll.u32 %v429, 16
        %v485 = vor.u32 %v482, %v483
        %v486 = vrot.slane %v482, 4
        %v488 = vshrl.u32 %v430, 16
        %v490 = vrot.slane %v488, 7
        %v491 = vshll.u32 %v430, 16
        %v493 = vor.u32 %v490, %v491
        %v494 = vrot.slane %v490, 4
        %vm511 = vcmask 1043456
        %vm512 = vmand %vm511, %vm343
        %v513 = vld [vmem:[%s315] sm:$0xf]
        %v514 = vsel %vm512, %v437, %v513
        %515 = vst [vmem:[%s315] sm:$0xf] %v514
        %v516 = vld [vmem:[%s315 + $0x4] sm:$0x1]
        %v517 = vsel %vm318, %v438, %v516
        %518 = vst [vmem:[%s315 + $0x4] sm:$0x1] %v517
        %v519 = vld [vmem:[%s315 + $0x8] sm:$0xf]
        %v520 = vsel %vm512, %v445, %v519
        %521 = vst [vmem:[%s315 + $0x8] sm:$0xf] %v520
        %v522 = vld [vmem:[%s315 + $0xc] sm:$0x1]
        %v523 = vsel %vm318, %v446, %v522
        %524 = vst [vmem:[%s315 + $0xc] sm:$0x1] %v523
        %v525 = vld [vmem:[%s315 + $0x10] sm:$0xf]
        %v526 = vsel %vm512, %v453, %v525
        %527 = vst [vmem:[%s315 + $0x10] sm:$0xf] %v526
        %v528 = vld [vmem:[%s315 + $0x14] sm:$0x1]
        %v529 = vsel %vm318, %v454, %v528
        %530 = vst [vmem:[%s315 + $0x14] sm:$0x1] %v529
        %v531 = vld [vmem:[%s315 + $0x18] sm:$0xf]
        %v532 = vsel %vm512, %v461, %v531
        %533 = vst [vmem:[%s315 + $0x18] sm:$0xf] %v532
        %v534 = vld [vmem:[%s315 + $0x1c] sm:$0x1]
        %v535 = vsel %vm318, %v462, %v534
        %536 = vst [vmem:[%s315 + $0x1c] sm:$0x1] %v535
        %v537 = vld [vmem:[%s315 + $0x20] sm:$0xf]
        %v538 = vsel %vm512, %v469, %v537
        %539 = vst [vmem:[%s315 + $0x20] sm:$0xf] %v538
        %v540 = vld [vmem:[%s315 + $0x24] sm:$0x1]
        %v541 = vsel %vm318, %v470, %v540
        %542 = vst [vmem:[%s315 + $0x24] sm:$0x1] %v541
        %v543 = vld [vmem:[%s315 + $0x28] sm:$0xf]
        %v544 = vsel %vm512, %v477, %v543
        %545 = vst [vmem:[%s315 + $0x28] sm:$0xf] %v544
        %v546 = vld [vmem:[%s315 + $0x2c] sm:$0x1]
        %v547 = vsel %vm318, %v478, %v546
        %548 = vst [vmem:[%s315 + $0x2c] sm:$0x1] %v547
        %v549 = vld [vmem:[%s315 + $0x30] sm:$0xf]
        %v550 = vsel %vm512, %v485, %v549
        %551 = vst [vmem:[%s315 + $0x30] sm:$0xf] %v550
        %v552 = vld [vmem:[%s315 + $0x34] sm:$0x1]
        %v553 = vsel %vm318, %v486, %v552
        %554 = vst [vmem:[%s315 + $0x34] sm:$0x1] %v553
        %v555 = vld [vmem:[%s315 + $0x38] sm:$0xf]
        %v556 = vsel %vm512, %v493, %v555
        %557 = vst [vmem:[%s315 + $0x38] sm:$0xf] %v556
        %v558 = vld [vmem:[%s315 + $0x3c] sm:$0x1]
        %v559 = vsel %vm318, %v494, %v558
        %560 = vst [vmem:[%s315 + $0x3c] sm:$0x1] %v559
      $region44: #{downsample_block_forward.3} parent=39 // pred_fallthru
        _
      %v561 = vld [vmem:[#allocation2] sm:$0xf]
      %v562 = vld [vmem:[#allocation2 + $0x8] sm:$0xf]
      %v563 = vld [vmem:[#allocation2 + $0x10] sm:$0xf]
      %v564 = vld [vmem:[#allocation2 + $0x18] sm:$0xf]
      %v565 = vld [vmem:[#allocation2 + $0x20] sm:$0xf]
      %v566 = vld [vmem:[#allocation2 + $0x28] sm:$0xf]
      %v567 = vld [vmem:[#allocation2 + $0x30] sm:$0xf]
      %v568 = vld [vmem:[#allocation2 + $0x38] sm:$0xf]
      %v569 = vld [vmem:[%s288] sm:$0xf]
      %v570 = vld [vmem:[%s288 + $0x4] sm:$0xf]
      %v571 = vld [vmem:[%s288 + $0x8] sm:$0xf]
      %v572 = vld [vmem:[%s288 + $0xc] sm:$0xf]
      %v573 = vld [vmem:[%s288 + $0x10] sm:$0xf]
      %v574 = vld [vmem:[%s288 + $0x14] sm:$0xf]
      %v575 = vld [vmem:[%s288 + $0x18] sm:$0xf]
      %v576 = vld [vmem:[%s288 + $0x1c] sm:$0xf]
      %v577 = vld [vmem:[%s288 + $0x20] sm:$0xf]
      %v578 = vld [vmem:[%s288 + $0x24] sm:$0xf]
      %v579 = vld [vmem:[%s288 + $0x28] sm:$0xf]
      %v580 = vld [vmem:[%s288 + $0x2c] sm:$0xf]
      %v581 = vld [vmem:[%s288 + $0x30] sm:$0xf]
      %v582 = vld [vmem:[%s288 + $0x34] sm:$0xf]
      %v583 = vld [vmem:[%s288 + $0x38] sm:$0xf]
      %v584 = vld [vmem:[%s288 + $0x3c] sm:$0xf]
      %v585 = vld [vmem:[#allocation2 + $0x4] sm:$0x1]
      %v586 = vld [vmem:[#allocation2 + $0xc] sm:$0x1]
      %v587 = vld [vmem:[#allocation2 + $0x14] sm:$0x1]
      %v588 = vld [vmem:[#allocation2 + $0x1c] sm:$0x1]
      %v589 = vld [vmem:[#allocation2 + $0x24] sm:$0x1]
      %v590 = vld [vmem:[#allocation2 + $0x2c] sm:$0x1]
      %v591 = vld [vmem:[#allocation2 + $0x34] sm:$0x1]
      %v592 = vld [vmem:[#allocation2 + $0x3c] sm:$0x1]
      %vm593 = vsmask.f32 3328
      %vm594 = vsmask.f32 7440
      %vm595 = vmor %vm593, %vm594
      %v597 = vshrl.u32 %v561, 16
      %v599 = vrot.slane %v597, 4
      %v600 = vshll.u32 %v561, 16
      %v602 = vrot.slane %v600, 5
      %v603 = vor.u32 %v599, %v602
      %v604 = vrot.slane %v603, 4
      %v606 = vshll.u32 %v585, 16
      %v608 = vrot.slane %v606, 5
      %v609 = vsel %vm595, %v604, %v608
      %v611 = vshrl.u32 %v562, 16
      %v613 = vrot.slane %v611, 4
      %v614 = vshll.u32 %v562, 16
      %v616 = vrot.slane %v614, 5
      %v617 = vor.u32 %v613, %v616
      %v618 = vrot.slane %v617, 4
      %v620 = vshll.u32 %v586, 16
      %v622 = vrot.slane %v620, 5
      %v623 = vsel %vm595, %v618, %v622
      %v625 = vshrl.u32 %v563, 16
      %v627 = vrot.slane %v625, 4
      %v628 = vshll.u32 %v563, 16
      %v630 = vrot.slane %v628, 5
      %v631 = vor.u32 %v627, %v630
      %v632 = vrot.slane %v631, 4
      %v634 = vshll.u32 %v587, 16
      %v636 = vrot.slane %v634, 5
      %v637 = vsel %vm595, %v632, %v636
      %v639 = vshrl.u32 %v564, 16
      %v641 = vrot.slane %v639, 4
      %v642 = vshll.u32 %v564, 16
      %v644 = vrot.slane %v642, 5
      %v645 = vor.u32 %v641, %v644
      %v646 = vrot.slane %v645, 4
      %v648 = vshll.u32 %v588, 16
      %v650 = vrot.slane %v648, 5
      %v651 = vsel %vm595, %v646, %v650
      %v653 = vshrl.u32 %v565, 16
      %v655 = vrot.slane %v653, 4
      %v656 = vshll.u32 %v565, 16
      %v658 = vrot.slane %v656, 5
      %v659 = vor.u32 %v655, %v658
      %v660 = vrot.slane %v659, 4
      %v662 = vshll.u32 %v589, 16
      %v664 = vrot.slane %v662, 5
      %v665 = vsel %vm595, %v660, %v664
      %v667 = vshrl.u32 %v566, 16
      %v669 = vrot.slane %v667, 4
      %v670 = vshll.u32 %v566, 16
      %v672 = vrot.slane %v670, 5
      %v673 = vor.u32 %v669, %v672
      %v674 = vrot.slane %v673, 4
      %v676 = vshll.u32 %v590, 16
      %v678 = vrot.slane %v676, 5
      %v679 = vsel %vm595, %v674, %v678
      %v681 = vshrl.u32 %v567, 16
      %v683 = vrot.slane %v681, 4
      %v684 = vshll.u32 %v567, 16
      %v686 = vrot.slane %v684, 5
      %v687 = vor.u32 %v683, %v686
      %v688 = vrot.slane %v687, 4
      %v690 = vshll.u32 %v591, 16
      %v692 = vrot.slane %v690, 5
      %v693 = vsel %vm595, %v688, %v692
      %v695 = vshrl.u32 %v568, 16
      %v697 = vrot.slane %v695, 4
      %v698 = vshll.u32 %v568, 16
      %v700 = vrot.slane %v698, 5
      %v701 = vor.u32 %v697, %v700
      %v702 = vrot.slane %v701, 4
      %v704 = vshll.u32 %v592, 16
      %v706 = vrot.slane %v704, 5
      %v707 = vsel %vm595, %v702, %v706
      %s708 = scalar_lea.vmem %s288, 64
      %v709 = vld [vmem:[%s708] sm:$0xf]
      %v710 = vld [vmem:[%s708 + $0x4] sm:$0xf]
      %v711 = vld [vmem:[%s708 + $0x8] sm:$0xf]
      %v712 = vld [vmem:[%s708 + $0xc] sm:$0xf]
      %v713 = vld [vmem:[%s708 + $0x10] sm:$0xf]
      %v714 = vld [vmem:[%s708 + $0x14] sm:$0xf]
      %v715 = vld [vmem:[%s708 + $0x18] sm:$0xf]
      %v716 = vld [vmem:[%s708 + $0x1c] sm:$0xf]
      %v717 = vld [vmem:[%s708 + $0x20] sm:$0xf]
      %v718 = vld [vmem:[%s708 + $0x24] sm:$0xf]
      %v719 = vld [vmem:[%s708 + $0x28] sm:$0xf]
      %v720 = vld [vmem:[%s708 + $0x2c] sm:$0xf]
      %v721 = vld [vmem:[%s708 + $0x30] sm:$0xf]
      %v722 = vld [vmem:[%s708 + $0x34] sm:$0xf]
      %v723 = vld [vmem:[%s708 + $0x38] sm:$0xf]
      %v724 = vld [vmem:[%s708 + $0x3c] sm:$0xf]
      %v725 = vunpack.c.l.b16 %v609
      %v726 = vunpack.c.l.b16 %v623
      %v727 = vunpack.c.l.b16 %v637
      %v728 = vunpack.c.l.b16 %v651
      %v729 = vunpack.c.l.b16 %v665
      %v730 = vunpack.c.l.b16 %v679
      %v731 = vunpack.c.l.b16 %v693
      %v732 = vunpack.c.l.b16 %v707
      %v733 = vpack.c.b16 %v726, %v725
      %v734 = vpack.c.b16 %v728, %v727
      %v735 = vpack.c.b16 %v730, %v729
      %v736 = vpack.c.b16 %v732, %v731
      %v757 = vunpack.c.l.b16 %v709
      %v758 = vunpack.c.l.b16 %v710
      %v759 = vunpack.c.l.b16 %v711
      %v760 = vunpack.c.l.b16 %v712
      %v761 = vunpack.c.l.b16 %v713
      %v762 = vunpack.c.l.b16 %v714
      %v763 = vunpack.c.l.b16 %v715
      %v764 = vunpack.c.l.b16 %v716
      %v765 = vunpack.c.l.b16 %v717
      %v766 = vunpack.c.l.b16 %v718
      %v767 = vunpack.c.l.b16 %v719
      %v768 = vunpack.c.l.b16 %v720
      %v769 = vunpack.c.l.b16 %v721
      %v770 = vunpack.c.l.b16 %v722
      %v771 = vunpack.c.l.b16 %v723
      %v772 = vunpack.c.l.b16 %v724
      %v773 = vpack.c.b16 %v758, %v757
      %v774 = vpack.c.b16 %v760, %v759
      %v775 = vpack.c.b16 %v762, %v761
      %v776 = vpack.c.b16 %v764, %v763
      %v777 = vpack.c.b16 %v766, %v765
      %v778 = vpack.c.b16 %v768, %v767
      %v779 = vpack.c.b16 %v770, %v769
      %v780 = vpack.c.b16 %v772, %v771
      %789 = vmatprep.subr.bf16.mxu0 0
      %790 = vmatpush1.bf16.msra.mxu0 %v773
      %791 = vmatprep.subr.bf16.mxu0 0
      %792 = vmatpush1.bf16.msra.mxu0 %v774
      %793 = vmatprep.subr.bf16.mxu0 0
      %794 = vmatpush1.bf16.msra.mxu0 %v775
      %795 = vmatprep.subr.bf16.mxu0 0
      %796 = vmatpush1.bf16.msra.mxu0 %v776
      %797 = vmatprep.subr.bf16.mxu0 0
      %798 = vmatpush1.bf16.msra.mxu0 %v777
      %799 = vmatprep.subr.bf16.mxu0 0
      %800 = vmatpush1.bf16.msra.mxu0 %v778
      %801 = vmatprep.subr.bf16.mxu0 0
      %802 = vmatpush1.bf16.msra.mxu0 %v779
      %803 = vmatprep.subr.bf16.mxu0 0
      %804 = vmatpush1.bf16.msra.mxu0 %v780
      %805 = vmatprep.subr.bf16.mxu0 0
      %806 = vmatpush1.bf16.msra.mxu0 0
      %807 = vmatprep.subr.bf16.mxu0 0
      %808 = vmatpush1.bf16.msra.mxu0 0
      %809 = vmatprep.subr.bf16.mxu0 0
      %810 = vmatpush1.bf16.msra.mxu0 0
      %811 = vmatprep.subr.bf16.mxu0 0
      %812 = vmatpush1.bf16.msra.mxu0 0
      %813 = vmatprep.subr.bf16.mxu0 0
      %814 = vmatpush1.bf16.msra.mxu0 0
      %815 = vmatprep.subr.bf16.mxu0 0
      %816 = vmatpush1.bf16.msra.mxu0 0
      %817 = vmatprep.subr.bf16.mxu0 0
      %818 = vmatpush1.bf16.msra.mxu0 0
      %819 = vmatprep.subr.bf16.mxu0 0
      %820 = vmatpush1.bf16.msra.mxu0 0
      %821 = vmatprep.mubr.bf16.mxu0 0
      %822 = vmatmul.mubr.bf16.gmra.mrb[0].mxu0 %v733
      %v823 = vpop.f32.mrb[0].mxu0
      %v824 = vadd.f32 0.0, %v823
      %v825 = vpop.f32.mrb[0].mxu0
      %v826 = vpop.f32.mrb[0].mxu0
      %v827 = vadd.f32 0.0, %v826
      %v828 = vpop.f32.mrb[0].mxu0
      %829 = vmatprep.mubr.bf16.mxu0 0
      %830 = vmatmul.mubr.bf16.gmra.mrb[0].mxu0 %v734
      %v831 = vpop.f32.mrb[0].mxu0
      %v832 = vadd.f32 0.0, %v831
      %v833 = vpop.f32.mrb[0].mxu0
      %v834 = vpop.f32.mrb[0].mxu0
      %v835 = vadd.f32 0.0, %v834
      %v836 = vpop.f32.mrb[0].mxu0
      %837 = vmatprep.mubr.bf16.mxu0 0
      %838 = vmatmul.mubr.bf16.gmra.mrb[0].mxu0 %v735
      %v839 = vpop.f32.mrb[0].mxu0
      %v840 = vadd.f32 0.0, %v839
      %v841 = vpop.f32.mrb[0].mxu0
      %v842 = vpop.f32.mrb[0].mxu0
      %v843 = vadd.f32 0.0, %v842
      %v844 = vpop.f32.mrb[0].mxu0
      %845 = vmatprep.mubr.bf16.mxu0 0
      %846 = vmatmul.mubr.bf16.gmra.mrb[0].mxu0 %v736
      %v847 = vpop.f32.mrb[0].mxu0
      %v848 = vadd.f32 0.0, %v847
      %v849 = vpop.f32.mrb[0].mxu0
      %v850 = vpop.f32.mrb[0].mxu0
      %v851 = vadd.f32 0.0, %v850
      %v852 = vpop.f32.mrb[0].mxu0
      %853 = vdwg.mxu0
      %v862 = vunpack.c.l.b16 %v561
      %v863 = vunpack.c.l.b16 %v562
      %v864 = vunpack.c.l.b16 %v563
      %v865 = vunpack.c.l.b16 %v564
      %v866 = vunpack.c.l.b16 %v565
      %v867 = vunpack.c.l.b16 %v566
      %v868 = vunpack.c.l.b16 %v567
      %v869 = vunpack.c.l.b16 %v568
      %v870 = vpack.c.b16 %v863, %v862
      %v871 = vpack.c.b16 %v865, %v864
      %v872 = vpack.c.b16 %v867, %v866
      %v873 = vpack.c.b16 %v869, %v868
      %v894 = vunpack.c.l.b16 %v569
      %v895 = vunpack.c.l.b16 %v570
      %v896 = vunpack.c.l.b16 %v571
      %v897 = vunpack.c.l.b16 %v572
      %v898 = vunpack.c.l.b16 %v573
      %v899 = vunpack.c.l.b16 %v574
      %v900 = vunpack.c.l.b16 %v575
      %v901 = vunpack.c.l.b16 %v576
      %v902 = vunpack.c.l.b16 %v577
      %v903 = vunpack.c.l.b16 %v578
      %v904 = vunpack.c.l.b16 %v579
      %v905 = vunpack.c.l.b16 %v580
      %v906 = vunpack.c.l.b16 %v581
      %v907 = vunpack.c.l.b16 %v582
      %v908 = vunpack.c.l.b16 %v583
      %v909 = vunpack.c.l.b16 %v584
      %v910 = vpack.c.b16 %v895, %v894
      %v911 = vpack.c.b16 %v897, %v896
      %v912 = vpack.c.b16 %v899, %v898
      %v913 = vpack.c.b16 %v901, %v900
      %v914 = vpack.c.b16 %v903, %v902
      %v915 = vpack.c.b16 %v905, %v904
      %v916 = vpack.c.b16 %v907, %v906
      %v917 = vpack.c.b16 %v909, %v908
      %926 = vmatprep.subr.bf16.mxu0 0
      %927 = vmatpush1.bf16.msra.mxu0 %v910
      %928 = vmatprep.subr.bf16.mxu0 0
      %929 = vmatpush1.bf16.msra.mxu0 %v911
      %930 = vmatprep.subr.bf16.mxu0 0
      %931 = vmatpush1.bf16.msra.mxu0 %v912
      %932 = vmatprep.subr.bf16.mxu0 0
      %933 = vmatpush1.bf16.msra.mxu0 %v913
      %934 = vmatprep.subr.bf16.mxu0 0
      %935 = vmatpush1.bf16.msra.mxu0 %v914
      %936 = vmatprep.subr.bf16.mxu0 0
      %937 = vmatpush1.bf16.msra.mxu0 %v915
      %938 = vmatprep.subr.bf16.mxu0 0
      %939 = vmatpush1.bf16.msra.mxu0 %v916
      %940 = vmatprep.subr.bf16.mxu0 0
      %941 = vmatpush1.bf16.msra.mxu0 %v917
      %942 = vmatprep.subr.bf16.mxu0 0
      %943 = vmatpush1.bf16.msra.mxu0 0
      %944 = vmatprep.subr.bf16.mxu0 0
      %945 = vmatpush1.bf16.msra.mxu0 0
      %946 = vmatprep.subr.bf16.mxu0 0
      %947 = vmatpush1.bf16.msra.mxu0 0
      %948 = vmatprep.subr.bf16.mxu0 0
      %949 = vmatpush1.bf16.msra.mxu0 0
      %950 = vmatprep.subr.bf16.mxu0 0
      %951 = vmatpush1.bf16.msra.mxu0 0
      %952 = vmatprep.subr.bf16.mxu0 0
      %953 = vmatpush1.bf16.msra.mxu0 0
      %954 = vmatprep.subr.bf16.mxu0 0
      %955 = vmatpush1.bf16.msra.mxu0 0
      %956 = vmatprep.subr.bf16.mxu0 0
      %957 = vmatpush1.bf16.msra.mxu0 0
      %958 = vmatprep.mubr.bf16.mxu0 0
      %959 = vmatmul.mubr.bf16.gmra.mrb[0].mxu0 %v870
      %v960 = vpop.f32.mrb[0].mxu0
      %v961 = vadd.f32 %v824, %v960
      %v962 = vpop.f32.mrb[0].mxu0
      %v963 = vpop.f32.mrb[0].mxu0
      %v964 = vadd.f32 %v827, %v963
      %v965 = vpop.f32.mrb[0].mxu0
      %966 = vmatprep.mubr.bf16.mxu0 0
      %967 = vmatmul.mubr.bf16.gmra.mrb[0].mxu0 %v871
      %v968 = vpop.f32.mrb[0].mxu0
      %v969 = vadd.f32 %v832, %v968
      %v970 = vpop.f32.mrb[0].mxu0
      %v971 = vpop.f32.mrb[0].mxu0
      %v972 = vadd.f32 %v835, %v971
      %v973 = vpop.f32.mrb[0].mxu0
      %974 = vmatprep.mubr.bf16.mxu0 0
      %975 = vmatmul.mubr.bf16.gmra.mrb[0].mxu0 %v872
      %v976 = vpop.f32.mrb[0].mxu0
      %v977 = vadd.f32 %v840, %v976
      %v978 = vpop.f32.mrb[0].mxu0
      %v979 = vpop.f32.mrb[0].mxu0
      %v980 = vadd.f32 %v843, %v979
      %v981 = vpop.f32.mrb[0].mxu0
      %982 = vmatprep.mubr.bf16.mxu0 0
      %983 = vmatmul.mubr.bf16.gmra.mrb[0].mxu0 %v873
      %v984 = vpop.f32.mrb[0].mxu0
      %v985 = vadd.f32 %v848, %v984
      %v986 = vpop.f32.mrb[0].mxu0
      %v987 = vpop.f32.mrb[0].mxu0
      %v988 = vadd.f32 %v851, %v987
      %v989 = vpop.f32.mrb[0].mxu0
      %990 = vdwg.mxu0
      %v991 = vld [vmem:[#allocation2] sm:$0xe]
      %v992 = vld [vmem:[#allocation2 + $0x8] sm:$0xe]
      %v993 = vld [vmem:[#allocation2 + $0x10] sm:$0xe]
      %v994 = vld [vmem:[#allocation2 + $0x18] sm:$0xe]
      %v995 = vld [vmem:[#allocation2 + $0x20] sm:$0xe]
      %v996 = vld [vmem:[#allocation2 + $0x28] sm:$0xe]
      %v997 = vld [vmem:[#allocation2 + $0x30] sm:$0xe]
      %v998 = vld [vmem:[#allocation2 + $0x38] sm:$0xe]
      %vm1015 = vcmask 1042432
      %vm1016 = vcmask 1046532
      %vm1017 = vmor %vm1015, %vm1016
      %v1018 = vrot.slane %v991, 5
      %v1019 = vrot.slane %v1018, 4
      %v1020 = vrot.slane %v585, 5
      %v1021 = vsel %vm1017, %v1019, %v1020
      %v1022 = vrot.slane %v992, 5
      %v1023 = vrot.slane %v1022, 4
      %v1024 = vrot.slane %v586, 5
      %v1025 = vsel %vm1017, %v1023, %v1024
      %v1026 = vrot.slane %v993, 5
      %v1027 = vrot.slane %v1026, 4
      %v1028 = vrot.slane %v587, 5
      %v1029 = vsel %vm1017, %v1027, %v1028
      %v1030 = vrot.slane %v994, 5
      %v1031 = vrot.slane %v1030, 4
      %v1032 = vrot.slane %v588, 5
      %v1033 = vsel %vm1017, %v1031, %v1032
      %v1034 = vrot.slane %v995, 5
      %v1035 = vrot.slane %v1034, 4
      %v1036 = vrot.slane %v589, 5
      %v1037 = vsel %vm1017, %v1035, %v1036
      %v1038 = vrot.slane %v996, 5
      %v1039 = vrot.slane %v1038, 4
      %v1040 = vrot.slane %v590, 5
      %v1041 = vsel %vm1017, %v1039, %v1040
      %v1042 = vrot.slane %v997, 5
      %v1043 = vrot.slane %v1042, 4
      %v1044 = vrot.slane %v591, 5
      %v1045 = vsel %vm1017, %v1043, %v1044
      %v1046 = vrot.slane %v998, 5
      %v1047 = vrot.slane %v1046, 4
      %v1048 = vrot.slane %v592, 5
      %v1049 = vsel %vm1017, %v1047, %v1048
      %s1050 = scalar_lea.vmem %s288, 128
      %v1051 = vld [vmem:[%s1050] sm:$0xf]
      %v1052 = vld [vmem:[%s1050 + $0x4] sm:$0xf]
      %v1053 = vld [vmem:[%s1050 + $0x8] sm:$0xf]
      %v1054 = vld [vmem:[%s1050 + $0xc] sm:$0xf]
      %v1055 = vld [vmem:[%s1050 + $0x10] sm:$0xf]
      %v1056 = vld [vmem:[%s1050 + $0x14] sm:$0xf]
      %v1057 = vld [vmem:[%s1050 + $0x18] sm:$0xf]
      %v1058 = vld [vmem:[%s1050 + $0x1c] sm:$0xf]
      %v1059 = vld [vmem:[%s1050 + $0x20] sm:$0xf]
      %v1060 = vld [vmem:[%s1050 + $0x24] sm:$0xf]
      %v1061 = vld [vmem:[%s1050 + $0x28] sm:$0xf]
      %v1062 = vld [vmem:[%s1050 + $0x2c] sm:$0xf]
      %v1063 = vld [vmem:[%s1050 + $0x30] sm:$0xf]
      %v1064 = vld [vmem:[%s1050 + $0x34] sm:$0xf]
      %v1065 = vld [vmem:[%s1050 + $0x38] sm:$0xf]
      %v1066 = vld [vmem:[%s1050 + $0x3c] sm:$0xf]
      %v1067 = vunpack.c.l.b16 %v1021
      %v1068 = vunpack.c.l.b16 %v1025
      %v1069 = vunpack.c.l.b16 %v1029
      %v1070 = vunpack.c.l.b16 %v1033
      %v1071 = vunpack.c.l.b16 %v1037
      %v1072 = vunpack.c.l.b16 %v1041
      %v1073 = vunpack.c.l.b16 %v1045
      %v1074 = vunpack.c.l.b16 %v1049
      %v1075 = vpack.c.b16 %v1068, %v1067
      %v1076 = vpack.c.b16 %v1070, %v1069
      %v1077 = vpack.c.b16 %v1072, %v1071
      %v1078 = vpack.c.b16 %v1074, %v1073
      %v1099 = vunpack.c.l.b16 %v1051
      %v1100 = vunpack.c.l.b16 %v1052
      %v1101 = vunpack.c.l.b16 %v1053
      %v1102 = vunpack.c.l.b16 %v1054
      %v1103 = vunpack.c.l.b16 %v1055
      %v1104 = vunpack.c.l.b16 %v1056
      %v1105 = vunpack.c.l.b16 %v1057
      %v1106 = vunpack.c.l.b16 %v1058
      %v1107 = vunpack.c.l.b16 %v1059
      %v1108 = vunpack.c.l.b16 %v1060
      %v1109 = vunpack.c.l.b16 %v1061
      %v1110 = vunpack.c.l.b16 %v1062
      %v1111 = vunpack.c.l.b16 %v1063
      %v1112 = vunpack.c.l.b16 %v1064
      %v1113 = vunpack.c.l.b16 %v1065
      %v1114 = vunpack.c.l.b16 %v1066
      %v1115 = vpack.c.b16 %v1100, %v1099
      %v1116 = vpack.c.b16 %v1102, %v1101
      %v1117 = vpack.c.b16 %v1104, %v1103
      %v1118 = vpack.c.b16 %v1106, %v1105
      %v1119 = vpack.c.b16 %v1108, %v1107
      %v1120 = vpack.c.b16 %v1110, %v1109
      %v1121 = vpack.c.b16 %v1112, %v1111
      %v1122 = vpack.c.b16 %v1114, %v1113
      %1131 = vmatprep.subr.bf16.mxu0 0
      %1132 = vmatpush1.bf16.msra.mxu0 %v1115
      %1133 = vmatprep.subr.bf16.mxu0 0
      %1134 = vmatpush1.bf16.msra.mxu0 %v1116
      %1135 = vmatprep.subr.bf16.mxu0 0
      %1136 = vmatpush1.bf16.msra.mxu0 %v1117
      %1137 = vmatprep.subr.bf16.mxu0 0
      %1138 = vmatpush1.bf16.msra.mxu0 %v1118
      %1139 = vmatprep.subr.bf16.mxu0 0
      %1140 = vmatpush1.bf16.msra.mxu0 %v1119
      %1141 = vmatprep.subr.bf16.mxu0 0
      %1142 = vmatpush1.bf16.msra.mxu0 %v1120
      %1143 = vmatprep.subr.bf16.mxu0 0
      %1144 = vmatpush1.bf16.msra.mxu0 %v1121
      %1145 = vmatprep.subr.bf16.mxu0 0
      %1146 = vmatpush1.bf16.msra.mxu0 %v1122
      %1147 = vmatprep.subr.bf16.mxu0 0
      %1148 = vmatpush1.bf16.msra.mxu0 0
      %1149 = vmatprep.subr.bf16.mxu0 0
      %1150 = vmatpush1.bf16.msra.mxu0 0
      %1151 = vmatprep.subr.bf16.mxu0 0
      %1152 = vmatpush1.bf16.msra.mxu0 0
      %1153 = vmatprep.subr.bf16.mxu0 0
      %1154 = vmatpush1.bf16.msra.mxu0 0
      %1155 = vmatprep.subr.bf16.mxu0 0
      %1156 = vmatpush1.bf16.msra.mxu0 0
      %1157 = vmatprep.subr.bf16.mxu0 0
      %1158 = vmatpush1.bf16.msra.mxu0 0
      %1159 = vmatprep.subr.bf16.mxu0 0
      %1160 = vmatpush1.bf16.msra.mxu0 0
      %1161 = vmatprep.subr.bf16.mxu0 0
      %1162 = vmatpush1.bf16.msra.mxu0 0
      %1163 = vmatprep.mubr.bf16.mxu0 0
      %1164 = vmatmul.mubr.bf16.gmra.mrb[0].mxu0 %v1075
      %v1165 = vpop.f32.mrb[0].mxu0
      %v1166 = vadd.f32 0.0, %v1165
      %v1167 = vpop.f32.mrb[0].mxu0
      %v1168 = vpop.f32.mrb[0].mxu0
      %v1169 = vadd.f32 0.0, %v1168
      %v1170 = vpop.f32.mrb[0].mxu0
      %1171 = vmatprep.mubr.bf16.mxu0 0
      %1172 = vmatmul.mubr.bf16.gmra.mrb[0].mxu0 %v1076
      %v1173 = vpop.f32.mrb[0].mxu0
      %v1174 = vadd.f32 0.0, %v1173
      %v1175 = vpop.f32.mrb[0].mxu0
      %v1176 = vpop.f32.mrb[0].mxu0
      %v1177 = vadd.f32 0.0, %v1176
      %v1178 = vpop.f32.mrb[0].mxu0
      %1179 = vmatprep.mubr.bf16.mxu0 0
      %1180 = vmatmul.mubr.bf16.gmra.mrb[0].mxu0 %v1077
      %v1181 = vpop.f32.mrb[0].mxu0
      %v1182 = vadd.f32 0.0, %v1181
      %v1183 = vpop.f32.mrb[0].mxu0
      %v1184 = vpop.f32.mrb[0].mxu0
      %v1185 = vadd.f32 0.0, %v1184
      %v1186 = vpop.f32.mrb[0].mxu0
      %1187 = vmatprep.mubr.bf16.mxu0 0
      %1188 = vmatmul.mubr.bf16.gmra.mrb[0].mxu0 %v1078
      %v1189 = vpop.f32.mrb[0].mxu0
      %v1190 = vadd.f32 0.0, %v1189
      %v1191 = vpop.f32.mrb[0].mxu0
      %v1192 = vpop.f32.mrb[0].mxu0
      %v1193 = vadd.f32 0.0, %v1192
      %v1194 = vpop.f32.mrb[0].mxu0
      %1195 = vdwg.mxu0
      %v1196 = vadd.f32 %v961, %v1166
      %v1197 = vadd.f32 %v964, %v1169
      %v1198 = vadd.f32 %v969, %v1174
      %v1199 = vadd.f32 %v972, %v1177
      %v1200 = vadd.f32 %v977, %v1182
      %v1201 = vadd.f32 %v980, %v1185
      %v1202 = vadd.f32 %v985, %v1190
      %v1203 = vadd.f32 %v988, %v1193
      %s1204 = scalar_lea.vmem [#allocation2], 8
      %v1205 = vld [vmem:[%s1204] sm:$0xf]
      %v1206 = vld [vmem:[%s1204 + $0x8] sm:$0xf]
      %v1207 = vld [vmem:[%s1204 + $0x10] sm:$0xf]
      %v1208 = vld [vmem:[%s1204 + $0x18] sm:$0xf]
      %v1209 = vld [vmem:[%s1204 + $0x20] sm:$0xf]
      %v1210 = vld [vmem:[%s1204 + $0x28] sm:$0xf]
      %v1211 = vld [vmem:[%s1204 + $0x30] sm:$0xf]
      %v1212 = vld [vmem:[%s1204 + $0x38] sm:$0xf]
      %s1213 = scalar_lea.vmem %s288, 192
      %v1214 = vld [vmem:[%s1213] sm:$0xf]
      %v1215 = vld [vmem:[%s1213 + $0x4] sm:$0xf]
      %v1216 = vld [vmem:[%s1213 + $0x8] sm:$0xf]
      %v1217 = vld [vmem:[%s1213 + $0xc] sm:$0xf]
      %v1218 = vld [vmem:[%s1213 + $0x10] sm:$0xf]
      %v1219 = vld [vmem:[%s1213 + $0x14] sm:$0xf]
      %v1220 = vld [vmem:[%s1213 + $0x18] sm:$0xf]
      %v1221 = vld [vmem:[%s1213 + $0x1c] sm:$0xf]
      %v1222 = vld [vmem:[%s1213 + $0x20] sm:$0xf]
      %v1223 = vld [vmem:[%s1213 + $0x24] sm:$0xf]
      %v1224 = vld [vmem:[%s1213 + $0x28] sm:$0xf]
      %v1225 = vld [vmem:[%s1213 + $0x2c] sm:$0xf]
      %v1226 = vld [vmem:[%s1213 + $0x30] sm:$0xf]
      %v1227 = vld [vmem:[%s1213 + $0x34] sm:$0xf]
      %v1228 = vld [vmem:[%s1213 + $0x38] sm:$0xf]
      %v1229 = vld [vmem:[%s1213 + $0x3c] sm:$0xf]
      %v1238 = vunpack.c.l.b16 %v1205
      %v1239 = vunpack.c.l.b16 %v1206
      %v1240 = vunpack.c.l.b16 %v1207
      %v1241 = vunpack.c.l.b16 %v1208
      %v1242 = vunpack.c.l.b16 %v1209
      %v1243 = vunpack.c.l.b16 %v1210
      %v1244 = vunpack.c.l.b16 %v1211
      %v1245 = vunpack.c.l.b16 %v1212
      %v1246 = vpack.c.b16 %v1239, %v1238
      %v1247 = vpack.c.b16 %v1241, %v1240
      %v1248 = vpack.c.b16 %v1243, %v1242
      %v1249 = vpack.c.b16 %v1245, %v1244
      %v1270 = vunpack.c.l.b16 %v1214
      %v1271 = vunpack.c.l.b16 %v1215
      %v1272 = vunpack.c.l.b16 %v1216
      %v1273 = vunpack.c.l.b16 %v1217
      %v1274 = vunpack.c.l.b16 %v1218
      %v1275 = vunpack.c.l.b16 %v1219
      %v1276 = vunpack.c.l.b16 %v1220
      %v1277 = vunpack.c.l.b16 %v1221
      %v1278 = vunpack.c.l.b16 %v1222
      %v1279 = vunpack.c.l.b16 %v1223
      %v1280 = vunpack.c.l.b16 %v1224
      %v1281 = vunpack.c.l.b16 %v1225
      %v1282 = vunpack.c.l.b16 %v1226
      %v1283 = vunpack.c.l.b16 %v1227
      %v1284 = vunpack.c.l.b16 %v1228
      %v1285 = vunpack.c.l.b16 %v1229
      %v1286 = vpack.c.b16 %v1271, %v1270
      %v1287 = vpack.c.b16 %v1273, %v1272
      %v1288 = vpack.c.b16 %v1275, %v1274
      %v1289 = vpack.c.b16 %v1277, %v1276
      %v1290 = vpack.c.b16 %v1279, %v1278
      %v1291 = vpack.c.b16 %v1281, %v1280
      %v1292 = vpack.c.b16 %v1283, %v1282
      %v1293 = vpack.c.b16 %v1285, %v1284
      %1302 = vmatprep.subr.bf16.mxu0 0
      %1303 = vmatpush1.bf16.msra.mxu0 %v1286
      %1304 = vmatprep.subr.bf16.mxu0 0
      %1305 = vmatpush1.bf16.msra.mxu0 %v1287
      %1306 = vmatprep.subr.bf16.mxu0 0
      %1307 = vmatpush1.bf16.msra.mxu0 %v1288
      %1308 = vmatprep.subr.bf16.mxu0 0
      %1309 = vmatpush1.bf16.msra.mxu0 %v1289
      %1310 = vmatprep.subr.bf16.mxu0 0
      %1311 = vmatpush1.bf16.msra.mxu0 %v1290
      %1312 = vmatprep.subr.bf16.mxu0 0
      %1313 = vmatpush1.bf16.msra.mxu0 %v1291
      %1314 = vmatprep.subr.bf16.mxu0 0
      %1315 = vmatpush1.bf16.msra.mxu0 %v1292
      %1316 = vmatprep.subr.bf16.mxu0 0
      %1317 = vmatpush1.bf16.msra.mxu0 %v1293
      %1318 = vmatprep.subr.bf16.mxu0 0
      %1319 = vmatpush1.bf16.msra.mxu0 0
      %1320 = vmatprep.subr.bf16.mxu0 0
      %1321 = vmatpush1.bf16.msra.mxu0 0
      %1322 = vmatprep.subr.bf16.mxu0 0
      %1323 = vmatpush1.bf16.msra.mxu0 0
      %1324 = vmatprep.subr.bf16.mxu0 0
      %1325 = vmatpush1.bf16.msra.mxu0 0
      %1326 = vmatprep.subr.bf16.mxu0 0
      %1327 = vmatpush1.bf16.msra.mxu0 0
      %1328 = vmatprep.subr.bf16.mxu0 0
      %1329 = vmatpush1.bf16.msra.mxu0 0
      %1330 = vmatprep.subr.bf16.mxu0 0
      %1331 = vmatpush1.bf16.msra.mxu0 0
      %1332 = vmatprep.subr.bf16.mxu0 0
      %1333 = vmatpush1.bf16.msra.mxu0 0
      %1334 = vmatprep.mubr.bf16.mxu0 0
      %1335 = vmatmul.mubr.bf16.gmra.mrb[0].mxu0 %v1246
      %v1336 = vpop.f32.mrb[0].mxu0
      %v1337 = vadd.f32 0.0, %v1336
      %v1338 = vpop.f32.mrb[0].mxu0
      %v1339 = vpop.f32.mrb[0].mxu0
      %v1340 = vadd.f32 0.0, %v1339
      %v1341 = vpop.f32.mrb[0].mxu0
      %1342 = vmatprep.mubr.bf16.mxu0 0
      %1343 = vmatmul.mubr.bf16.gmra.mrb[0].mxu0 %v1247
      %v1344 = vpop.f32.mrb[0].mxu0
      %v1345 = vadd.f32 0.0, %v1344
      %v1346 = vpop.f32.mrb[0].mxu0
      %v1347 = vpop.f32.mrb[0].mxu0
      %v1348 = vadd.f32 0.0, %v1347
      %v1349 = vpop.f32.mrb[0].mxu0
      %1350 = vmatprep.mubr.bf16.mxu0 0
      %1351 = vmatmul.mubr.bf16.gmra.mrb[0].mxu0 %v1248
      %v1352 = vpop.f32.mrb[0].mxu0
      %v1353 = vadd.f32 0.0, %v1352
      %v1354 = vpop.f32.mrb[0].mxu0
      %v1355 = vpop.f32.mrb[0].mxu0
      %v1356 = vadd.f32 0.0, %v1355
      %v1357 = vpop.f32.mrb[0].mxu0
      %1358 = vmatprep.mubr.bf16.mxu0 0
      %1359 = vmatmul.mubr.bf16.gmra.mrb[0].mxu0 %v1249
      %v1360 = vpop.f32.mrb[0].mxu0
      %v1361 = vadd.f32 0.0, %v1360
      %v1362 = vpop.f32.mrb[0].mxu0
      %v1363 = vpop.f32.mrb[0].mxu0
      %v1364 = vadd.f32 0.0, %v1363
      %v1365 = vpop.f32.mrb[0].mxu0
      %1366 = vdwg.mxu0
      %v1367 = vadd.f32 %v1196, %v1337
      %v1368 = vadd.f32 %v1197, %v1340
      %v1369 = vadd.f32 %v1198, %v1345
      %v1370 = vadd.f32 %v1199, %v1348
      %v1371 = vadd.f32 %v1200, %v1353
      %v1372 = vadd.f32 %v1201, %v1356
      %v1373 = vadd.f32 %v1202, %v1361
      %v1374 = vadd.f32 %v1203, %v1364
      %v1375 = vld [vmem:[%s1204] sm:$0xf]
      %v1376 = vld [vmem:[%s1204 + $0x4] sm:$0x1]
      %v1377 = vld [vmem:[%s1204 + $0x8] sm:$0xf]
      %v1378 = vld [vmem:[%s1204 + $0xc] sm:$0x1]
      %v1379 = vld [vmem:[%s1204 + $0x10] sm:$0xf]
      %v1380 = vld [vmem:[%s1204 + $0x14] sm:$0x1]
      %v1381 = vld [vmem:[%s1204 + $0x18] sm:$0xf]
      %v1382 = vld [vmem:[%s1204 + $0x1c] sm:$0x1]
      %v1383 = vld [vmem:[%s1204 + $0x20] sm:$0xf]
      %v1384 = vld [vmem:[%s1204 + $0x24] sm:$0x1]
      %v1385 = vld [vmem:[%s1204 + $0x28] sm:$0xf]
      %v1386 = vld [vmem:[%s1204 + $0x2c] sm:$0x1]
      %v1387 = vld [vmem:[%s1204 + $0x30] sm:$0xf]
      %v1388 = vld [vmem:[%s1204 + $0x34] sm:$0x1]
      %v1389 = vld [vmem:[%s1204 + $0x38] sm:$0xf]
      %v1390 = vld [vmem:[%s1204 + $0x3c] sm:$0x1]
      %v1392 = vshrl.u32 %v1375, 16
      %v1394 = vrot.slane %v1392, 4
      %v1395 = vshll.u32 %v1375, 16
      %v1397 = vrot.slane %v1395, 5
      %v1398 = vor.u32 %v1394, %v1397
      %v1399 = vrot.slane %v1398, 4
      %v1401 = vshll.u32 %v1376, 16
      %v1403 = vrot.slane %v1401, 5
      %v1404 = vsel %vm595, %v1399, %v1403
      %v1406 = vshrl.u32 %v1377, 16
      %v1408 = vrot.slane %v1406, 4
      %v1409 = vshll.u32 %v1377, 16
      %v1411 = vrot.slane %v1409, 5
      %v1412 = vor.u32 %v1408, %v1411
      %v1413 = vrot.slane %v1412, 4
      %v1415 = vshll.u32 %v1378, 16
      %v1417 = vrot.slane %v1415, 5
      %v1418 = vsel %vm595, %v1413, %v1417
      %v1420 = vshrl.u32 %v1379, 16
      %v1422 = vrot.slane %v1420, 4
      %v1423 = vshll.u32 %v1379, 16
      %v1425 = vrot.slane %v1423, 5
      %v1426 = vor.u32 %v1422, %v1425
      %v1427 = vrot.slane %v1426, 4
      %v1429 = vshll.u32 %v1380, 16
      %v1431 = vrot.slane %v1429, 5
      %v1432 = vsel %vm595, %v1427, %v1431
      %v1434 = vshrl.u32 %v1381, 16
      %v1436 = vrot.slane %v1434, 4
      %v1437 = vshll.u32 %v1381, 16
      %v1439 = vrot.slane %v1437, 5
      %v1440 = vor.u32 %v1436, %v1439
      %v1441 = vrot.slane %v1440, 4
      %v1443 = vshll.u32 %v1382, 16
      %v1445 = vrot.slane %v1443, 5
      %v1446 = vsel %vm595, %v1441, %v1445
      %v1448 = vshrl.u32 %v1383, 16
      %v1450 = vrot.slane %v1448, 4
      %v1451 = vshll.u32 %v1383, 16
      %v1453 = vrot.slane %v1451, 5
      %v1454 = vor.u32 %v1450, %v1453
      %v1455 = vrot.slane %v1454, 4
      %v1457 = vshll.u32 %v1384, 16
      %v1459 = vrot.slane %v1457, 5
      %v1460 = vsel %vm595, %v1455, %v1459
      %v1462 = vshrl.u32 %v1385, 16
      %v1464 = vrot.slane %v1462, 4
      %v1465 = vshll.u32 %v1385, 16
      %v1467 = vrot.slane %v1465, 5
      %v1468 = vor.u32 %v1464, %v1467
      %v1469 = vrot.slane %v1468, 4
      %v1471 = vshll.u32 %v1386, 16
      %v1473 = vrot.slane %v1471, 5
      %v1474 = vsel %vm595, %v1469, %v1473
      %v1476 = vshrl.u32 %v1387, 16
      %v1478 = vrot.slane %v1476, 4
      %v1479 = vshll.u32 %v1387, 16
      %v1481 = vrot.slane %v1479, 5
      %v1482 = vor.u32 %v1478, %v1481
      %v1483 = vrot.slane %v1482, 4
      %v1485 = vshll.u32 %v1388, 16
      %v1487 = vrot.slane %v1485, 5
      %v1488 = vsel %vm595, %v1483, %v1487
      %v1490 = vshrl.u32 %v1389, 16
      %v1492 = vrot.slane %v1490, 4
      %v1493 = vshll.u32 %v1389, 16
      %v1495 = vrot.slane %v1493, 5
      %v1496 = vor.u32 %v1492, %v1495
      %v1497 = vrot.slane %v1496, 4
      %v1499 = vshll.u32 %v1390, 16
      %v1501 = vrot.slane %v1499, 5
      %v1502 = vsel %vm595, %v1497, %v1501
      %s1503 = scalar_lea.vmem %s288, 256
      %v1504 = vld [vmem:[%s1503] sm:$0xf]
      %v1505 = vld [vmem:[%s1503 + $0x4] sm:$0xf]
      %v1506 = vld [vmem:[%s1503 + $0x8] sm:$0xf]
      %v1507 = vld [vmem:[%s1503 + $0xc] sm:$0xf]
      %v1508 = vld [vmem:[%s1503 + $0x10] sm:$0xf]
      %v1509 = vld [vmem:[%s1503 + $0x14] sm:$0xf]
      %v1510 = vld [vmem:[%s1503 + $0x18] sm:$0xf]
      %v1511 = vld [vmem:[%s1503 + $0x1c] sm:$0xf]
      %v1512 = vld [vmem:[%s1503 + $0x20] sm:$0xf]
      %v1513 = vld [vmem:[%s1503 + $0x24] sm:$0xf]
      %v1514 = vld [vmem:[%s1503 + $0x28] sm:$0xf]
      %v1515 = vld [vmem:[%s1503 + $0x2c] sm:$0xf]
      %v1516 = vld [vmem:[%s1503 + $0x30] sm:$0xf]
      %v1517 = vld [vmem:[%s1503 + $0x34] sm:$0xf]
      %v1518 = vld [vmem:[%s1503 + $0x38] sm:$0xf]
      %v1519 = vld [vmem:[%s1503 + $0x3c] sm:$0xf]
      %v1520 = vunpack.c.l.b16 %v1404
      %v1521 = vunpack.c.l.b16 %v1418
      %v1522 = vunpack.c.l.b16 %v1432
      %v1523 = vunpack.c.l.b16 %v1446
      %v1524 = vunpack.c.l.b16 %v1460
      %v1525 = vunpack.c.l.b16 %v1474
      %v1526 = vunpack.c.l.b16 %v1488
      %v1527 = vunpack.c.l.b16 %v1502
      %v1528 = vpack.c.b16 %v1521, %v1520
      %v1529 = vpack.c.b16 %v1523, %v1522
      %v1530 = vpack.c.b16 %v1525, %v1524
      %v1531 = vpack.c.b16 %v1527, %v1526
      %v1552 = vunpack.c.l.b16 %v1504
      %v1553 = vunpack.c.l.b16 %v1505
      %v1554 = vunpack.c.l.b16 %v1506
      %v1555 = vunpack.c.l.b16 %v1507
      %v1556 = vunpack.c.l.b16 %v1508
      %v1557 = vunpack.c.l.b16 %v1509
      %v1558 = vunpack.c.l.b16 %v1510
      %v1559 = vunpack.c.l.b16 %v1511
      %v1560 = vunpack.c.l.b16 %v1512
      %v1561 = vunpack.c.l.b16 %v1513
      %v1562 = vunpack.c.l.b16 %v1514
      %v1563 = vunpack.c.l.b16 %v1515
      %v1564 = vunpack.c.l.b16 %v1516
      %v1565 = vunpack.c.l.b16 %v1517
      %v1566 = vunpack.c.l.b16 %v1518
      %v1567 = vunpack.c.l.b16 %v1519
      %v1568 = vpack.c.b16 %v1553, %v1552
      %v1569 = vpack.c.b16 %v1555, %v1554
      %v1570 = vpack.c.b16 %v1557, %v1556
      %v1571 = vpack.c.b16 %v1559, %v1558
      %v1572 = vpack.c.b16 %v1561, %v1560
      %v1573 = vpack.c.b16 %v1563, %v1562
      %v1574 = vpack.c.b16 %v1565, %v1564
      %v1575 = vpack.c.b16 %v1567, %v1566
      %1584 = vmatprep.subr.bf16.mxu0 0
      %1585 = vmatpush1.bf16.msra.mxu0 %v1568
      %1586 = vmatprep.subr.bf16.mxu0 0
      %1587 = vmatpush1.bf16.msra.mxu0 %v1569
      %1588 = vmatprep.subr.bf16.mxu0 0
      %1589 = vmatpush1.bf16.msra.mxu0 %v1570
      %1590 = vmatprep.subr.bf16.mxu0 0
      %1591 = vmatpush1.bf16.msra.mxu0 %v1571
      %1592 = vmatprep.subr.bf16.mxu0 0
      %1593 = vmatpush1.bf16.msra.mxu0 %v1572
      %1594 = vmatprep.subr.bf16.mxu0 0
      %1595 = vmatpush1.bf16.msra.mxu0 %v1573
      %1596 = vmatprep.subr.bf16.mxu0 0
      %1597 = vmatpush1.bf16.msra.mxu0 %v1574
      %1598 = vmatprep.subr.bf16.mxu0 0
      %1599 = vmatpush1.bf16.msra.mxu0 %v1575
      %1600 = vmatprep.subr.bf16.mxu0 0
      %1601 = vmatpush1.bf16.msra.mxu0 0
      %1602 = vmatprep.subr.bf16.mxu0 0
      %1603 = vmatpush1.bf16.msra.mxu0 0
      %1604 = vmatprep.subr.bf16.mxu0 0
      %1605 = vmatpush1.bf16.msra.mxu0 0
      %1606 = vmatprep.subr.bf16.mxu0 0
      %1607 = vmatpush1.bf16.msra.mxu0 0
      %1608 = vmatprep.subr.bf16.mxu0 0
      %1609 = vmatpush1.bf16.msra.mxu0 0
      %1610 = vmatprep.subr.bf16.mxu0 0
      %1611 = vmatpush1.bf16.msra.mxu0 0
      %1612 = vmatprep.subr.bf16.mxu0 0
      %1613 = vmatpush1.bf16.msra.mxu0 0
      %1614 = vmatprep.subr.bf16.mxu0 0
      %1615 = vmatpush1.bf16.msra.mxu0 0
      %1616 = vmatprep.mubr.bf16.mxu0 0
      %1617 = vmatmul.mubr.bf16.gmra.mrb[0].mxu0 %v1528
      %v1618 = vpop.f32.mrb[0].mxu0
      %v1619 = vadd.f32 0.0, %v1618
      %v1620 = vpop.f32.mrb[0].mxu0
      %v1621 = vpop.f32.mrb[0].mxu0
      %v1622 = vadd.f32 0.0, %v1621
      %v1623 = vpop.f32.mrb[0].mxu0
      %1624 = vmatprep.mubr.bf16.mxu0 0
      %1625 = vmatmul.mubr.bf16.gmra.mrb[0].mxu0 %v1529
      %v1626 = vpop.f32.mrb[0].mxu0
      %v1627 = vadd.f32 0.0, %v1626
      %v1628 = vpop.f32.mrb[0].mxu0
      %v1629 = vpop.f32.mrb[0].mxu0
      %v1630 = vadd.f32 0.0, %v1629
      %v1631 = vpop.f32.mrb[0].mxu0
      %1632 = vmatprep.mubr.bf16.mxu0 0
      %1633 = vmatmul.mubr.bf16.gmra.mrb[0].mxu0 %v1530
      %v1634 = vpop.f32.mrb[0].mxu0
      %v1635 = vadd.f32 0.0, %v1634
      %v1636 = vpop.f32.mrb[0].mxu0
      %v1637 = vpop.f32.mrb[0].mxu0
      %v1638 = vadd.f32 0.0, %v1637
      %v1639 = vpop.f32.mrb[0].mxu0
      %1640 = vmatprep.mubr.bf16.mxu0 0
      %1641 = vmatmul.mubr.bf16.gmra.mrb[0].mxu0 %v1531
      %v1642 = vpop.f32.mrb[0].mxu0
      %v1643 = vadd.f32 0.0, %v1642
      %v1644 = vpop.f32.mrb[0].mxu0
      %v1645 = vpop.f32.mrb[0].mxu0
      %v1646 = vadd.f32 0.0, %v1645
      %v1647 = vpop.f32.mrb[0].mxu0
      %1648 = vdwg.mxu0
      %v1649 = vadd.f32 %v1367, %v1619
      %v1650 = vadd.f32 %v1368, %v1622
      %v1651 = vadd.f32 %v1369, %v1627
      %v1652 = vadd.f32 %v1370, %v1630
      %v1653 = vadd.f32 %v1371, %v1635
      %v1654 = vadd.f32 %v1372, %v1638
      %v1655 = vadd.f32 %v1373, %v1643
      %v1656 = vadd.f32 %v1374, %v1646
      %v1657 = vld [vmem:[%s1204] sm:$0xe]
      %v1658 = vld [vmem:[%s1204 + $0x8] sm:$0xe]
      %v1659 = vld [vmem:[%s1204 + $0x10] sm:$0xe]
      %v1660 = vld [vmem:[%s1204 + $0x18] sm:$0xe]
      %v1661 = vld [vmem:[%s1204 + $0x20] sm:$0xe]
      %v1662 = vld [vmem:[%s1204 + $0x28] sm:$0xe]
      %v1663 = vld [vmem:[%s1204 + $0x30] sm:$0xe]
      %v1664 = vld [vmem:[%s1204 + $0x38] sm:$0xe]
      %v1681 = vrot.slane %v1657, 5
      %v1682 = vrot.slane %v1681, 4
      %v1683 = vrot.slane %v1376, 5
      %v1684 = vsel %vm1017, %v1682, %v1683
      %v1685 = vrot.slane %v1658, 5
      %v1686 = vrot.slane %v1685, 4
      %v1687 = vrot.slane %v1378, 5
      %v1688 = vsel %vm1017, %v1686, %v1687
      %v1689 = vrot.slane %v1659, 5
      %v1690 = vrot.slane %v1689, 4
      %v1691 = vrot.slane %v1380, 5
      %v1692 = vsel %vm1017, %v1690, %v1691
      %v1693 = vrot.slane %v1660, 5
      %v1694 = vrot.slane %v1693, 4
      %v1695 = vrot.slane %v1382, 5
      %v1696 = vsel %vm1017, %v1694, %v1695
      %v1697 = vrot.slane %v1661, 5
      %v1698 = vrot.slane %v1697, 4
      %v1699 = vrot.slane %v1384, 5
      %v1700 = vsel %vm1017, %v1698, %v1699
      %v1701 = vrot.slane %v1662, 5
      %v1702 = vrot.slane %v1701, 4
      %v1703 = vrot.slane %v1386, 5
      %v1704 = vsel %vm1017, %v1702, %v1703
      %v1705 = vrot.slane %v1663, 5
      %v1706 = vrot.slane %v1705, 4
      %v1707 = vrot.slane %v1388, 5
      %v1708 = vsel %vm1017, %v1706, %v1707
      %v1709 = vrot.slane %v1664, 5
      %v1710 = vrot.slane %v1709, 4
      %v1711 = vrot.slane %v1390, 5
      %v1712 = vsel %vm1017, %v1710, %v1711
      %s1713 = scalar_lea.vmem %s288, 320
      %v1714 = vld [vmem:[%s1713] sm:$0xf]
      %v1715 = vld [vmem:[%s1713 + $0x4] sm:$0xf]
      %v1716 = vld [vmem:[%s1713 + $0x8] sm:$0xf]
      %v1717 = vld [vmem:[%s1713 + $0xc] sm:$0xf]
      %v1718 = vld [vmem:[%s1713 + $0x10] sm:$0xf]
      %v1719 = vld [vmem:[%s1713 + $0x14] sm:$0xf]
      %v1720 = vld [vmem:[%s1713 + $0x18] sm:$0xf]
      %v1721 = vld [vmem:[%s1713 + $0x1c] sm:$0xf]
      %v1722 = vld [vmem:[%s1713 + $0x20] sm:$0xf]
      %v1723 = vld [vmem:[%s1713 + $0x24] sm:$0xf]
      %v1724 = vld [vmem:[%s1713 + $0x28] sm:$0xf]
      %v1725 = vld [vmem:[%s1713 + $0x2c] sm:$0xf]
      %v1726 = vld [vmem:[%s1713 + $0x30] sm:$0xf]
      %v1727 = vld [vmem:[%s1713 + $0x34] sm:$0xf]
      %v1728 = vld [vmem:[%s1713 + $0x38] sm:$0xf]
      %v1729 = vld [vmem:[%s1713 + $0x3c] sm:$0xf]
      %v1730 = vunpack.c.l.b16 %v1684
      %v1731 = vunpack.c.l.b16 %v1688
      %v1732 = vunpack.c.l.b16 %v1692
      %v1733 = vunpack.c.l.b16 %v1696
      %v1734 = vunpack.c.l.b16 %v1700
      %v1735 = vunpack.c.l.b16 %v1704
      %v1736 = vunpack.c.l.b16 %v1708
      %v1737 = vunpack.c.l.b16 %v1712
      %v1738 = vpack.c.b16 %v1731, %v1730
      %v1739 = vpack.c.b16 %v1733, %v1732
      %v1740 = vpack.c.b16 %v1735, %v1734
      %v1741 = vpack.c.b16 %v1737, %v1736
      %v1762 = vunpack.c.l.b16 %v1714
      %v1763 = vunpack.c.l.b16 %v1715
      %v1764 = vunpack.c.l.b16 %v1716
      %v1765 = vunpack.c.l.b16 %v1717
      %v1766 = vunpack.c.l.b16 %v1718
      %v1767 = vunpack.c.l.b16 %v1719
      %v1768 = vunpack.c.l.b16 %v1720
      %v1769 = vunpack.c.l.b16 %v1721
      %v1770 = vunpack.c.l.b16 %v1722
      %v1771 = vunpack.c.l.b16 %v1723
      %v1772 = vunpack.c.l.b16 %v1724
      %v1773 = vunpack.c.l.b16 %v1725
      %v1774 = vunpack.c.l.b16 %v1726
      %v1775 = vunpack.c.l.b16 %v1727
      %v1776 = vunpack.c.l.b16 %v1728
      %v1777 = vunpack.c.l.b16 %v1729
      %v1778 = vpack.c.b16 %v1763, %v1762
      %v1779 = vpack.c.b16 %v1765, %v1764
      %v1780 = vpack.c.b16 %v1767, %v1766
      %v1781 = vpack.c.b16 %v1769, %v1768
      %v1782 = vpack.c.b16 %v1771, %v1770
      %v1783 = vpack.c.b16 %v1773, %v1772
      %v1784 = vpack.c.b16 %v1775, %v1774
      %v1785 = vpack.c.b16 %v1777, %v1776
      %1794 = vmatprep.subr.bf16.mxu0 0
      %1795 = vmatpush1.bf16.msra.mxu0 %v1778
      %1796 = vmatprep.subr.bf16.mxu0 0
      %1797 = vmatpush1.bf16.msra.mxu0 %v1779
      %1798 = vmatprep.subr.bf16.mxu0 0
      %1799 = vmatpush1.bf16.msra.mxu0 %v1780
      %1800 = vmatprep.subr.bf16.mxu0 0
      %1801 = vmatpush1.bf16.msra.mxu0 %v1781
      %1802 = vmatprep.subr.bf16.mxu0 0
      %1803 = vmatpush1.bf16.msra.mxu0 %v1782
      %1804 = vmatprep.subr.bf16.mxu0 0
      %1805 = vmatpush1.bf16.msra.mxu0 %v1783
      %1806 = vmatprep.subr.bf16.mxu0 0
      %1807 = vmatpush1.bf16.msra.mxu0 %v1784
      %1808 = vmatprep.subr.bf16.mxu0 0
      %1809 = vmatpush1.bf16.msra.mxu0 %v1785
      %1810 = vmatprep.subr.bf16.mxu0 0
      %1811 = vmatpush1.bf16.msra.mxu0 0
      %1812 = vmatprep.subr.bf16.mxu0 0
      %1813 = vmatpush1.bf16.msra.mxu0 0
      %1814 = vmatprep.subr.bf16.mxu0 0
      %1815 = vmatpush1.bf16.msra.mxu0 0
      %1816 = vmatprep.subr.bf16.mxu0 0
      %1817 = vmatpush1.bf16.msra.mxu0 0
      %1818 = vmatprep.subr.bf16.mxu0 0
      %1819 = vmatpush1.bf16.msra.mxu0 0
      %1820 = vmatprep.subr.bf16.mxu0 0
      %1821 = vmatpush1.bf16.msra.mxu0 0
      %1822 = vmatprep.subr.bf16.mxu0 0
      %1823 = vmatpush1.bf16.msra.mxu0 0
      %1824 = vmatprep.subr.bf16.mxu0 0
      %1825 = vmatpush1.bf16.msra.mxu0 0
      %1826 = vmatprep.mubr.bf16.mxu0 0
      %1827 = vmatmul.mubr.bf16.gmra.mrb[0].mxu0 %v1738
      %v1828 = vpop.f32.mrb[0].mxu0
      %v1829 = vadd.f32 0.0, %v1828
      %v1830 = vpop.f32.mrb[0].mxu0
      %v1831 = vpop.f32.mrb[0].mxu0
      %v1832 = vadd.f32 0.0, %v1831
      %v1833 = vpop.f32.mrb[0].mxu0
      %1834 = vmatprep.mubr.bf16.mxu0 0
      %1835 = vmatmul.mubr.bf16.gmra.mrb[0].mxu0 %v1739
      %v1836 = vpop.f32.mrb[0].mxu0
      %v1837 = vadd.f32 0.0, %v1836
      %v1838 = vpop.f32.mrb[0].mxu0
      %v1839 = vpop.f32.mrb[0].mxu0
      %v1840 = vadd.f32 0.0, %v1839
      %v1841 = vpop.f32.mrb[0].mxu0
      %1842 = vmatprep.mubr.bf16.mxu0 0
      %1843 = vmatmul.mubr.bf16.gmra.mrb[0].mxu0 %v1740
      %v1844 = vpop.f32.mrb[0].mxu0
      %v1845 = vadd.f32 0.0, %v1844
      %v1846 = vpop.f32.mrb[0].mxu0
      %v1847 = vpop.f32.mrb[0].mxu0
      %v1848 = vadd.f32 0.0, %v1847
      %v1849 = vpop.f32.mrb[0].mxu0
      %1850 = vmatprep.mubr.bf16.mxu0 0
      %1851 = vmatmul.mubr.bf16.gmra.mrb[0].mxu0 %v1741
      %v1852 = vpop.f32.mrb[0].mxu0
      %v1853 = vadd.f32 0.0, %v1852
      %v1854 = vpop.f32.mrb[0].mxu0
      %v1855 = vpop.f32.mrb[0].mxu0
      %v1856 = vadd.f32 0.0, %v1855
      %v1857 = vpop.f32.mrb[0].mxu0
      %1858 = vdwg.mxu0
      %v1859 = vadd.f32 %v1649, %v1829
      %v1860 = vadd.f32 %v1650, %v1832
      %v1861 = vadd.f32 %v1651, %v1837
      %v1862 = vadd.f32 %v1652, %v1840
      %v1863 = vadd.f32 %v1653, %v1845
      %v1864 = vadd.f32 %v1654, %v1848
      %v1865 = vadd.f32 %v1655, %v1853
      %v1866 = vadd.f32 %v1656, %v1856
      %s1867 = scalar_lea.vmem [#allocation2], 16
      %v1868 = vld [vmem:[%s1867] sm:$0xf]
      %v1869 = vld [vmem:[%s1867 + $0x8] sm:$0xf]
      %v1870 = vld [vmem:[%s1867 + $0x10] sm:$0xf]
      %v1871 = vld [vmem:[%s1867 + $0x18] sm:$0xf]
      %v1872 = vld [vmem:[%s1867 + $0x20] sm:$0xf]
      %v1873 = vld [vmem:[%s1867 + $0x28] sm:$0xf]
      %v1874 = vld [vmem:[%s1867 + $0x30] sm:$0xf]
      %v1875 = vld [vmem:[%s1867 + $0x38] sm:$0xf]
      %s1876 = scalar_lea.vmem %s288, 384
      %v1877 = vld [vmem:[%s1876] sm:$0xf]
      %v1878 = vld [vmem:[%s1876 + $0x4] sm:$0xf]
      %v1879 = vld [vmem:[%s1876 + $0x8] sm:$0xf]
      %v1880 = vld [vmem:[%s1876 + $0xc] sm:$0xf]
      %v1881 = vld [vmem:[%s1876 + $0x10] sm:$0xf]
      %v1882 = vld [vmem:[%s1876 + $0x14] sm:$0xf]
      %v1883 = vld [vmem:[%s1876 + $0x18] sm:$0xf]
      %v1884 = vld [vmem:[%s1876 + $0x1c] sm:$0xf]
      %v1885 = vld [vmem:[%s1876 + $0x20] sm:$0xf]
      %v1886 = vld [vmem:[%s1876 + $0x24] sm:$0xf]
      %v1887 = vld [vmem:[%s1876 + $0x28] sm:$0xf]
      %v1888 = vld [vmem:[%s1876 + $0x2c] sm:$0xf]
      %v1889 = vld [vmem:[%s1876 + $0x30] sm:$0xf]
      %v1890 = vld [vmem:[%s1876 + $0x34] sm:$0xf]
      %v1891 = vld [vmem:[%s1876 + $0x38] sm:$0xf]
      %v1892 = vld [vmem:[%s1876 + $0x3c] sm:$0xf]
      %v1901 = vunpack.c.l.b16 %v1868
      %v1902 = vunpack.c.l.b16 %v1869
      %v1903 = vunpack.c.l.b16 %v1870
      %v1904 = vunpack.c.l.b16 %v1871
      %v1905 = vunpack.c.l.b16 %v1872
      %v1906 = vunpack.c.l.b16 %v1873
      %v1907 = vunpack.c.l.b16 %v1874
      %v1908 = vunpack.c.l.b16 %v1875
      %v1909 = vpack.c.b16 %v1902, %v1901
      %v1910 = vpack.c.b16 %v1904, %v1903
      %v1911 = vpack.c.b16 %v1906, %v1905
      %v1912 = vpack.c.b16 %v1908, %v1907
      %v1933 = vunpack.c.l.b16 %v1877
      %v1934 = vunpack.c.l.b16 %v1878
      %v1935 = vunpack.c.l.b16 %v1879
      %v1936 = vunpack.c.l.b16 %v1880
      %v1937 = vunpack.c.l.b16 %v1881
      %v1938 = vunpack.c.l.b16 %v1882
      %v1939 = vunpack.c.l.b16 %v1883
      %v1940 = vunpack.c.l.b16 %v1884
      %v1941 = vunpack.c.l.b16 %v1885
      %v1942 = vunpack.c.l.b16 %v1886
      %v1943 = vunpack.c.l.b16 %v1887
      %v1944 = vunpack.c.l.b16 %v1888
      %v1945 = vunpack.c.l.b16 %v1889
      %v1946 = vunpack.c.l.b16 %v1890
      %v1947 = vunpack.c.l.b16 %v1891
      %v1948 = vunpack.c.l.b16 %v1892
      %v1949 = vpack.c.b16 %v1934, %v1933
      %v1950 = vpack.c.b16 %v1936, %v1935
      %v1951 = vpack.c.b16 %v1938, %v1937
      %v1952 = vpack.c.b16 %v1940, %v1939
      %v1953 = vpack.c.b16 %v1942, %v1941
      %v1954 = vpack.c.b16 %v1944, %v1943
      %v1955 = vpack.c.b16 %v1946, %v1945
      %v1956 = vpack.c.b16 %v1948, %v1947
      %1965 = vmatprep.subr.bf16.mxu0 0
      %1966 = vmatpush1.bf16.msra.mxu0 %v1949
      %1967 = vmatprep.subr.bf16.mxu0 0
      %1968 = vmatpush1.bf16.msra.mxu0 %v1950
      %1969 = vmatprep.subr.bf16.mxu0 0
      %1970 = vmatpush1.bf16.msra.mxu0 %v1951
      %1971 = vmatprep.subr.bf16.mxu0 0
      %1972 = vmatpush1.bf16.msra.mxu0 %v1952
      %1973 = vmatprep.subr.bf16.mxu0 0
      %1974 = vmatpush1.bf16.msra.mxu0 %v1953
      %1975 = vmatprep.subr.bf16.mxu0 0
      %1976 = vmatpush1.bf16.msra.mxu0 %v1954
      %1977 = vmatprep.subr.bf16.mxu0 0
      %1978 = vmatpush1.bf16.msra.mxu0 %v1955
      %1979 = vmatprep.subr.bf16.mxu0 0
      %1980 = vmatpush1.bf16.msra.mxu0 %v1956
      %1981 = vmatprep.subr.bf16.mxu0 0
      %1982 = vmatpush1.bf16.msra.mxu0 0
      %1983 = vmatprep.subr.bf16.mxu0 0
      %1984 = vmatpush1.bf16.msra.mxu0 0
      %1985 = vmatprep.subr.bf16.mxu0 0
      %1986 = vmatpush1.bf16.msra.mxu0 0
      %1987 = vmatprep.subr.bf16.mxu0 0
      %1988 = vmatpush1.bf16.msra.mxu0 0
      %1989 = vmatprep.subr.bf16.mxu0 0
      %1990 = vmatpush1.bf16.msra.mxu0 0
      %1991 = vmatprep.subr.bf16.mxu0 0
      %1992 = vmatpush1.bf16.msra.mxu0 0
      %1993 = vmatprep.subr.bf16.mxu0 0
      %1994 = vmatpush1.bf16.msra.mxu0 0
      %1995 = vmatprep.subr.bf16.mxu0 0
      %1996 = vmatpush1.bf16.msra.mxu0 0
      %1997 = vmatprep.mubr.bf16.mxu0 0
      %1998 = vmatmul.mubr.bf16.gmra.mrb[0].mxu0 %v1909
      %v1999 = vpop.f32.mrb[0].mxu0
      %v2000 = vadd.f32 0.0, %v1999
      %v2001 = vpop.f32.mrb[0].mxu0
      %v2002 = vpop.f32.mrb[0].mxu0
      %v2003 = vadd.f32 0.0, %v2002
      %v2004 = vpop.f32.mrb[0].mxu0
      %2005 = vmatprep.mubr.bf16.mxu0 0
      %2006 = vmatmul.mubr.bf16.gmra.mrb[0].mxu0 %v1910
      %v2007 = vpop.f32.mrb[0].mxu0
      %v2008 = vadd.f32 0.0, %v2007
      %v2009 = vpop.f32.mrb[0].mxu0
      %v2010 = vpop.f32.mrb[0].mxu0
      %v2011 = vadd.f32 0.0, %v2010
      %v2012 = vpop.f32.mrb[0].mxu0
      %2013 = vmatprep.mubr.bf16.mxu0 0
      %2014 = vmatmul.mubr.bf16.gmra.mrb[0].mxu0 %v1911
      %v2015 = vpop.f32.mrb[0].mxu0
      %v2016 = vadd.f32 0.0, %v2015
      %v2017 = vpop.f32.mrb[0].mxu0
      %v2018 = vpop.f32.mrb[0].mxu0
      %v2019 = vadd.f32 0.0, %v2018
      %v2020 = vpop.f32.mrb[0].mxu0
      %2021 = vmatprep.mubr.bf16.mxu0 0
      %2022 = vmatmul.mubr.bf16.gmra.mrb[0].mxu0 %v1912
      %v2023 = vpop.f32.mrb[0].mxu0
      %v2024 = vadd.f32 0.0, %v2023
      %v2025 = vpop.f32.mrb[0].mxu0
      %v2026 = vpop.f32.mrb[0].mxu0
      %v2027 = vadd.f32 0.0, %v2026
      %v2028 = vpop.f32.mrb[0].mxu0
      %2029 = vdwg.mxu0
      %v2030 = vadd.f32 %v1859, %v2000
      %v2031 = vadd.f32 %v1860, %v2003
      %v2032 = vadd.f32 %v1861, %v2008
      %v2033 = vadd.f32 %v1862, %v2011
      %v2034 = vadd.f32 %v1863, %v2016
      %v2035 = vadd.f32 %v1864, %v2019
      %v2036 = vadd.f32 %v1865, %v2024
      %v2037 = vadd.f32 %v1866, %v2027
      %v2038 = vld [vmem:[%s1867] sm:$0xf]
      %v2039 = vld [vmem:[%s1867 + $0x4] sm:$0x1]
      %v2040 = vld [vmem:[%s1867 + $0x8] sm:$0xf]
      %v2041 = vld [vmem:[%s1867 + $0xc] sm:$0x1]
      %v2042 = vld [vmem:[%s1867 + $0x10] sm:$0xf]
      %v2043 = vld [vmem:[%s1867 + $0x14] sm:$0x1]
      %v2044 = vld [vmem:[%s1867 + $0x18] sm:$0xf]
      %v2045 = vld [vmem:[%s1867 + $0x1c] sm:$0x1]
      %v2046 = vld [vmem:[%s1867 + $0x20] sm:$0xf]
      %v2047 = vld [vmem:[%s1867 + $0x24] sm:$0x1]
      %v2048 = vld [vmem:[%s1867 + $0x28] sm:$0xf]
      %v2049 = vld [vmem:[%s1867 + $0x2c] sm:$0x1]
      %v2050 = vld [vmem:[%s1867 + $0x30] sm:$0xf]
      %v2051 = vld [vmem:[%s1867 + $0x34] sm:$0x1]
      %v2052 = vld [vmem:[%s1867 + $0x38] sm:$0xf]
      %v2053 = vld [vmem:[%s1867 + $0x3c] sm:$0x1]
      %v2055 = vshrl.u32 %v2038, 16
      %v2057 = vrot.slane %v2055, 4
      %v2058 = vshll.u32 %v2038, 16
      %v2060 = vrot.slane %v2058, 5
      %v2061 = vor.u32 %v2057, %v2060
      %v2062 = vrot.slane %v2061, 4
      %v2064 = vshll.u32 %v2039, 16
      %v2066 = vrot.slane %v2064, 5
      %v2067 = vsel %vm595, %v2062, %v2066
      %v2069 = vshrl.u32 %v2040, 16
      %v2071 = vrot.slane %v2069, 4
      %v2072 = vshll.u32 %v2040, 16
      %v2074 = vrot.slane %v2072, 5
      %v2075 = vor.u32 %v2071, %v2074
      %v2076 = vrot.slane %v2075, 4
      %v2078 = vshll.u32 %v2041, 16
      %v2080 = vrot.slane %v2078, 5
      %v2081 = vsel %vm595, %v2076, %v2080
      %v2083 = vshrl.u32 %v2042, 16
      %v2085 = vrot.slane %v2083, 4
      %v2086 = vshll.u32 %v2042, 16
      %v2088 = vrot.slane %v2086, 5
      %v2089 = vor.u32 %v2085, %v2088
      %v2090 = vrot.slane %v2089, 4
      %v2092 = vshll.u32 %v2043, 16
      %v2094 = vrot.slane %v2092, 5
      %v2095 = vsel %vm595, %v2090, %v2094
      %v2097 = vshrl.u32 %v2044, 16
      %v2099 = vrot.slane %v2097, 4
      %v2100 = vshll.u32 %v2044, 16
      %v2102 = vrot.slane %v2100, 5
      %v2103 = vor.u32 %v2099, %v2102
      %v2104 = vrot.slane %v2103, 4
      %v2106 = vshll.u32 %v2045, 16
      %v2108 = vrot.slane %v2106, 5
      %v2109 = vsel %vm595, %v2104, %v2108
      %v2111 = vshrl.u32 %v2046, 16
      %v2113 = vrot.slane %v2111, 4
      %v2114 = vshll.u32 %v2046, 16
      %v2116 = vrot.slane %v2114, 5
      %v2117 = vor.u32 %v2113, %v2116
      %v2118 = vrot.slane %v2117, 4
      %v2120 = vshll.u32 %v2047, 16
      %v2122 = vrot.slane %v2120, 5
      %v2123 = vsel %vm595, %v2118, %v2122
      %v2125 = vshrl.u32 %v2048, 16
      %v2127 = vrot.slane %v2125, 4
      %v2128 = vshll.u32 %v2048, 16
      %v2130 = vrot.slane %v2128, 5
      %v2131 = vor.u32 %v2127, %v2130
      %v2132 = vrot.slane %v2131, 4
      %v2134 = vshll.u32 %v2049, 16
      %v2136 = vrot.slane %v2134, 5
      %v2137 = vsel %vm595, %v2132, %v2136
      %v2139 = vshrl.u32 %v2050, 16
      %v2141 = vrot.slane %v2139, 4
      %v2142 = vshll.u32 %v2050, 16
      %v2144 = vrot.slane %v2142, 5
      %v2145 = vor.u32 %v2141, %v2144
      %v2146 = vrot.slane %v2145, 4
      %v2148 = vshll.u32 %v2051, 16
      %v2150 = vrot.slane %v2148, 5
      %v2151 = vsel %vm595, %v2146, %v2150
      %v2153 = vshrl.u32 %v2052, 16
      %v2155 = vrot.slane %v2153, 4
      %v2156 = vshll.u32 %v2052, 16
      %v2158 = vrot.slane %v2156, 5
      %v2159 = vor.u32 %v2155, %v2158
      %v2160 = vrot.slane %v2159, 4
      %v2162 = vshll.u32 %v2053, 16
      %v2164 = vrot.slane %v2162, 5
      %v2165 = vsel %vm595, %v2160, %v2164
      %s2166 = scalar_lea.vmem %s288, 448
      %v2167 = vld [vmem:[%s2166] sm:$0xf]
      %v2168 = vld [vmem:[%s2166 + $0x4] sm:$0xf]
      %v2169 = vld [vmem:[%s2166 + $0x8] sm:$0xf]
      %v2170 = vld [vmem:[%s2166 + $0xc] sm:$0xf]
      %v2171 = vld [vmem:[%s2166 + $0x10] sm:$0xf]
      %v2172 = vld [vmem:[%s2166 + $0x14] sm:$0xf]
      %v2173 = vld [vmem:[%s2166 + $0x18] sm:$0xf]
      %v2174 = vld [vmem:[%s2166 + $0x1c] sm:$0xf]
      %v2175 = vld [vmem:[%s2166 + $0x20] sm:$0xf]
      %v2176 = vld [vmem:[%s2166 + $0x24] sm:$0xf]
      %v2177 = vld [vmem:[%s2166 + $0x28] sm:$0xf]
      %v2178 = vld [vmem:[%s2166 + $0x2c] sm:$0xf]
      %v2179 = vld [vmem:[%s2166 + $0x30] sm:$0xf]
      %v2180 = vld [vmem:[%s2166 + $0x34] sm:$0xf]
      %v2181 = vld [vmem:[%s2166 + $0x38] sm:$0xf]
      %v2182 = vld [vmem:[%s2166 + $0x3c] sm:$0xf]
      %v2183 = vunpack.c.l.b16 %v2067
      %v2184 = vunpack.c.l.b16 %v2081
      %v2185 = vunpack.c.l.b16 %v2095
      %v2186 = vunpack.c.l.b16 %v2109
      %v2187 = vunpack.c.l.b16 %v2123
      %v2188 = vunpack.c.l.b16 %v2137
      %v2189 = vunpack.c.l.b16 %v2151
      %v2190 = vunpack.c.l.b16 %v2165
      %v2191 = vpack.c.b16 %v2184, %v2183
      %v2192 = vpack.c.b16 %v2186, %v2185
      %v2193 = vpack.c.b16 %v2188, %v2187
      %v2194 = vpack.c.b16 %v2190, %v2189
      %v2215 = vunpack.c.l.b16 %v2167
      %v2216 = vunpack.c.l.b16 %v2168
      %v2217 = vunpack.c.l.b16 %v2169
      %v2218 = vunpack.c.l.b16 %v2170
      %v2219 = vunpack.c.l.b16 %v2171
      %v2220 = vunpack.c.l.b16 %v2172
      %v2221 = vunpack.c.l.b16 %v2173
      %v2222 = vunpack.c.l.b16 %v2174
      %v2223 = vunpack.c.l.b16 %v2175
      %v2224 = vunpack.c.l.b16 %v2176
      %v2225 = vunpack.c.l.b16 %v2177
      %v2226 = vunpack.c.l.b16 %v2178
      %v2227 = vunpack.c.l.b16 %v2179
      %v2228 = vunpack.c.l.b16 %v2180
      %v2229 = vunpack.c.l.b16 %v2181
      %v2230 = vunpack.c.l.b16 %v2182
      %v2231 = vpack.c.b16 %v2216, %v2215
      %v2232 = vpack.c.b16 %v2218, %v2217
      %v2233 = vpack.c.b16 %v2220, %v2219
      %v2234 = vpack.c.b16 %v2222, %v2221
      %v2235 = vpack.c.b16 %v2224, %v2223
      %v2236 = vpack.c.b16 %v2226, %v2225
      %v2237 = vpack.c.b16 %v2228, %v2227
      %v2238 = vpack.c.b16 %v2230, %v2229
      %2247 = vmatprep.subr.bf16.mxu0 0
      %2248 = vmatpush1.bf16.msra.mxu0 %v2231
      %2249 = vmatprep.subr.bf16.mxu0 0
      %2250 = vmatpush1.bf16.msra.mxu0 %v2232
      %2251 = vmatprep.subr.bf16.mxu0 0
      %2252 = vmatpush1.bf16.msra.mxu0 %v2233
      %2253 = vmatprep.subr.bf16.mxu0 0
      %2254 = vmatpush1.bf16.msra.mxu0 %v2234
      %2255 = vmatprep.subr.bf16.mxu0 0
      %2256 = vmatpush1.bf16.msra.mxu0 %v2235
      %2257 = vmatprep.subr.bf16.mxu0 0
      %2258 = vmatpush1.bf16.msra.mxu0 %v2236
      %2259 = vmatprep.subr.bf16.mxu0 0
      %2260 = vmatpush1.bf16.msra.mxu0 %v2237
      %2261 = vmatprep.subr.bf16.mxu0 0
      %2262 = vmatpush1.bf16.msra.mxu0 %v2238
      %2263 = vmatprep.subr.bf16.mxu0 0
      %2264 = vmatpush1.bf16.msra.mxu0 0
      %2265 = vmatprep.subr.bf16.mxu0 0
      %2266 = vmatpush1.bf16.msra.mxu0 0
      %2267 = vmatprep.subr.bf16.mxu0 0
      %2268 = vmatpush1.bf16.msra.mxu0 0
      %2269 = vmatprep.subr.bf16.mxu0 0
      %2270 = vmatpush1.bf16.msra.mxu0 0
      %2271 = vmatprep.subr.bf16.mxu0 0
      %2272 = vmatpush1.bf16.msra.mxu0 0
      %2273 = vmatprep.subr.bf16.mxu0 0
      %2274 = vmatpush1.bf16.msra.mxu0 0
      %2275 = vmatprep.subr.bf16.mxu0 0
      %2276 = vmatpush1.bf16.msra.mxu0 0
      %2277 = vmatprep.subr.bf16.mxu0 0
      %2278 = vmatpush1.bf16.msra.mxu0 0
      %2279 = vmatprep.mubr.bf16.mxu0 0
      %2280 = vmatmul.mubr.bf16.gmra.mrb[0].mxu0 %v2191
      %v2281 = vpop.f32.mrb[0].mxu0
      %v2282 = vadd.f32 0.0, %v2281
      %v2283 = vpop.f32.mrb[0].mxu0
      %v2284 = vpop.f32.mrb[0].mxu0
      %v2285 = vadd.f32 0.0, %v2284
      %v2286 = vpop.f32.mrb[0].mxu0
      %2287 = vmatprep.mubr.bf16.mxu0 0
      %2288 = vmatmul.mubr.bf16.gmra.mrb[0].mxu0 %v2192
      %v2289 = vpop.f32.mrb[0].mxu0
      %v2290 = vadd.f32 0.0, %v2289
      %v2291 = vpop.f32.mrb[0].mxu0
      %v2292 = vpop.f32.mrb[0].mxu0
      %v2293 = vadd.f32 0.0, %v2292
      %v2294 = vpop.f32.mrb[0].mxu0
      %2295 = vmatprep.mubr.bf16.mxu0 0
      %2296 = vmatmul.mubr.bf16.gmra.mrb[0].mxu0 %v2193
      %v2297 = vpop.f32.mrb[0].mxu0
      %v2298 = vadd.f32 0.0, %v2297
      %v2299 = vpop.f32.mrb[0].mxu0
      %v2300 = vpop.f32.mrb[0].mxu0
      %v2301 = vadd.f32 0.0, %v2300
      %v2302 = vpop.f32.mrb[0].mxu0
      %2303 = vmatprep.mubr.bf16.mxu0 0
      %2304 = vmatmul.mubr.bf16.gmra.mrb[0].mxu0 %v2194
      %v2305 = vpop.f32.mrb[0].mxu0
      %v2306 = vadd.f32 0.0, %v2305
      %v2307 = vpop.f32.mrb[0].mxu0
      %v2308 = vpop.f32.mrb[0].mxu0
      %v2309 = vadd.f32 0.0, %v2308
      %v2310 = vpop.f32.mrb[0].mxu0
      %2311 = vdwg.mxu0
      %v2312 = vadd.f32 %v2030, %v2282
      %v2313 = vadd.f32 %v2031, %v2285
      %v2314 = vadd.f32 %v2032, %v2290
      %v2315 = vadd.f32 %v2033, %v2293
      %v2316 = vadd.f32 %v2034, %v2298
      %v2317 = vadd.f32 %v2035, %v2301
      %v2318 = vadd.f32 %v2036, %v2306
      %v2319 = vadd.f32 %v2037, %v2309
      %v2320 = vld [vmem:[%s1867] sm:$0xe]
      %v2321 = vld [vmem:[%s1867 + $0x8] sm:$0xe]
      %v2322 = vld [vmem:[%s1867 + $0x10] sm:$0xe]
      %v2323 = vld [vmem:[%s1867 + $0x18] sm:$0xe]
      %v2324 = vld [vmem:[%s1867 + $0x20] sm:$0xe]
      %v2325 = vld [vmem:[%s1867 + $0x28] sm:$0xe]
      %v2326 = vld [vmem:[%s1867 + $0x30] sm:$0xe]
      %v2327 = vld [vmem:[%s1867 + $0x38] sm:$0xe]
      %v2344 = vrot.slane %v2320, 5
      %v2345 = vrot.slane %v2344, 4
      %v2346 = vrot.slane %v2039, 5
      %v2347 = vsel %vm1017, %v2345, %v2346
      %v2348 = vrot.slane %v2321, 5
      %v2349 = vrot.slane %v2348, 4
      %v2350 = vrot.slane %v2041, 5
      %v2351 = vsel %vm1017, %v2349, %v2350
      %v2352 = vrot.slane %v2322, 5
      %v2353 = vrot.slane %v2352, 4
      %v2354 = vrot.slane %v2043, 5
      %v2355 = vsel %vm1017, %v2353, %v2354
      %v2356 = vrot.slane %v2323, 5
      %v2357 = vrot.slane %v2356, 4
      %v2358 = vrot.slane %v2045, 5
      %v2359 = vsel %vm1017, %v2357, %v2358
      %v2360 = vrot.slane %v2324, 5
      %v2361 = vrot.slane %v2360, 4
      %v2362 = vrot.slane %v2047, 5
      %v2363 = vsel %vm1017, %v2361, %v2362
      %v2364 = vrot.slane %v2325, 5
      %v2365 = vrot.slane %v2364, 4
      %v2366 = vrot.slane %v2049, 5
      %v2367 = vsel %vm1017, %v2365, %v2366
      %v2368 = vrot.slane %v2326, 5
      %v2369 = vrot.slane %v2368, 4
      %v2370 = vrot.slane %v2051, 5
      %v2371 = vsel %vm1017, %v2369, %v2370
      %v2372 = vrot.slane %v2327, 5
      %v2373 = vrot.slane %v2372, 4
      %v2374 = vrot.slane %v2053, 5
      %v2375 = vsel %vm1017, %v2373, %v2374
      %s2376 = scalar_lea.vmem %s288, 512
      %v2377 = vld [vmem:[%s2376] sm:$0xf]
      %v2378 = vld [vmem:[%s2376 + $0x4] sm:$0xf]
      %v2379 = vld [vmem:[%s2376 + $0x8] sm:$0xf]
      %v2380 = vld [vmem:[%s2376 + $0xc] sm:$0xf]
      %v2381 = vld [vmem:[%s2376 + $0x10] sm:$0xf]
      %v2382 = vld [vmem:[%s2376 + $0x14] sm:$0xf]
      %v2383 = vld [vmem:[%s2376 + $0x18] sm:$0xf]
      %v2384 = vld [vmem:[%s2376 + $0x1c] sm:$0xf]
      %v2385 = vld [vmem:[%s2376 + $0x20] sm:$0xf]
      %v2386 = vld [vmem:[%s2376 + $0x24] sm:$0xf]
      %v2387 = vld [vmem:[%s2376 + $0x28] sm:$0xf]
      %v2388 = vld [vmem:[%s2376 + $0x2c] sm:$0xf]
      %v2389 = vld [vmem:[%s2376 + $0x30] sm:$0xf]
      %v2390 = vld [vmem:[%s2376 + $0x34] sm:$0xf]
      %v2391 = vld [vmem:[%s2376 + $0x38] sm:$0xf]
      %v2392 = vld [vmem:[%s2376 + $0x3c] sm:$0xf]
      %v2393 = vunpack.c.l.b16 %v2347
      %v2394 = vunpack.c.l.b16 %v2351
      %v2395 = vunpack.c.l.b16 %v2355
      %v2396 = vunpack.c.l.b16 %v2359
      %v2397 = vunpack.c.l.b16 %v2363
      %v2398 = vunpack.c.l.b16 %v2367
      %v2399 = vunpack.c.l.b16 %v2371
      %v2400 = vunpack.c.l.b16 %v2375
      %v2401 = vpack.c.b16 %v2394, %v2393
      %v2402 = vpack.c.b16 %v2396, %v2395
      %v2403 = vpack.c.b16 %v2398, %v2397
      %v2404 = vpack.c.b16 %v2400, %v2399
      %v2425 = vunpack.c.l.b16 %v2377
      %v2426 = vunpack.c.l.b16 %v2378
      %v2427 = vunpack.c.l.b16 %v2379
      %v2428 = vunpack.c.l.b16 %v2380
      %v2429 = vunpack.c.l.b16 %v2381
      %v2430 = vunpack.c.l.b16 %v2382
      %v2431 = vunpack.c.l.b16 %v2383
      %v2432 = vunpack.c.l.b16 %v2384
      %v2433 = vunpack.c.l.b16 %v2385
      %v2434 = vunpack.c.l.b16 %v2386
      %v2435 = vunpack.c.l.b16 %v2387
      %v2436 = vunpack.c.l.b16 %v2388
      %v2437 = vunpack.c.l.b16 %v2389
      %v2438 = vunpack.c.l.b16 %v2390
      %v2439 = vunpack.c.l.b16 %v2391
      %v2440 = vunpack.c.l.b16 %v2392
      %v2441 = vpack.c.b16 %v2426, %v2425
      %v2442 = vpack.c.b16 %v2428, %v2427
      %v2443 = vpack.c.b16 %v2430, %v2429
      %v2444 = vpack.c.b16 %v2432, %v2431
      %v2445 = vpack.c.b16 %v2434, %v2433
      %v2446 = vpack.c.b16 %v2436, %v2435
      %v2447 = vpack.c.b16 %v2438, %v2437
      %v2448 = vpack.c.b16 %v2440, %v2439
      %2457 = vmatprep.subr.bf16.mxu0 0
      %2458 = vmatpush1.bf16.msra.mxu0 %v2441
      %2459 = vmatprep.subr.bf16.mxu0 0
      %2460 = vmatpush1.bf16.msra.mxu0 %v2442
      %2461 = vmatprep.subr.bf16.mxu0 0
      %2462 = vmatpush1.bf16.msra.mxu0 %v2443
      %2463 = vmatprep.subr.bf16.mxu0 0
      %2464 = vmatpush1.bf16.msra.mxu0 %v2444
      %2465 = vmatprep.subr.bf16.mxu0 0
      %2466 = vmatpush1.bf16.msra.mxu0 %v2445
      %2467 = vmatprep.subr.bf16.mxu0 0
      %2468 = vmatpush1.bf16.msra.mxu0 %v2446
      %2469 = vmatprep.subr.bf16.mxu0 0
      %2470 = vmatpush1.bf16.msra.mxu0 %v2447
      %2471 = vmatprep.subr.bf16.mxu0 0
      %2472 = vmatpush1.bf16.msra.mxu0 %v2448
      %2473 = vmatprep.subr.bf16.mxu0 0
      %2474 = vmatpush1.bf16.msra.mxu0 0
      %2475 = vmatprep.subr.bf16.mxu0 0
      %2476 = vmatpush1.bf16.msra.mxu0 0
      %2477 = vmatprep.subr.bf16.mxu0 0
      %2478 = vmatpush1.bf16.msra.mxu0 0
      %2479 = vmatprep.subr.bf16.mxu0 0
      %2480 = vmatpush1.bf16.msra.mxu0 0
      %2481 = vmatprep.subr.bf16.mxu0 0
      %2482 = vmatpush1.bf16.msra.mxu0 0
      %2483 = vmatprep.subr.bf16.mxu0 0
      %2484 = vmatpush1.bf16.msra.mxu0 0
      %2485 = vmatprep.subr.bf16.mxu0 0
      %2486 = vmatpush1.bf16.msra.mxu0 0
      %2487 = vmatprep.subr.bf16.mxu0 0
      %2488 = vmatpush1.bf16.msra.mxu0 0
      %2489 = vmatprep.mubr.bf16.mxu0 0
      %2490 = vmatmul.mubr.bf16.gmra.mrb[0].mxu0 %v2401
      %v2491 = vpop.f32.mrb[0].mxu0
      %v2492 = vadd.f32 0.0, %v2491
      %v2493 = vpop.f32.mrb[0].mxu0
      %v2494 = vpop.f32.mrb[0].mxu0
      %v2495 = vadd.f32 0.0, %v2494
      %v2496 = vpop.f32.mrb[0].mxu0
      %2497 = vmatprep.mubr.bf16.mxu0 0
      %2498 = vmatmul.mubr.bf16.gmra.mrb[0].mxu0 %v2402
      %v2499 = vpop.f32.mrb[0].mxu0
      %v2500 = vadd.f32 0.0, %v2499
      %v2501 = vpop.f32.mrb[0].mxu0
      %v2502 = vpop.f32.mrb[0].mxu0
      %v2503 = vadd.f32 0.0, %v2502
      %v2504 = vpop.f32.mrb[0].mxu0
      %2505 = vmatprep.mubr.bf16.mxu0 0
      %2506 = vmatmul.mubr.bf16.gmra.mrb[0].mxu0 %v2403
      %v2507 = vpop.f32.mrb[0].mxu0
      %v2508 = vadd.f32 0.0, %v2507
      %v2509 = vpop.f32.mrb[0].mxu0
      %v2510 = vpop.f32.mrb[0].mxu0
      %v2511 = vadd.f32 0.0, %v2510
      %v2512 = vpop.f32.mrb[0].mxu0
      %2513 = vmatprep.mubr.bf16.mxu0 0
      %2514 = vmatmul.mubr.bf16.gmra.mrb[0].mxu0 %v2404
      %v2515 = vpop.f32.mrb[0].mxu0
      %v2516 = vadd.f32 0.0, %v2515
      %v2517 = vpop.f32.mrb[0].mxu0
      %v2518 = vpop.f32.mrb[0].mxu0
      %v2519 = vadd.f32 0.0, %v2518
      %v2520 = vpop.f32.mrb[0].mxu0
      %2521 = vdwg.mxu0
      %v2522 = vadd.f32 %v2312, %v2492
      %v2523 = vadd.f32 %v2313, %v2495
      %v2524 = vadd.f32 %v2314, %v2500
      %v2525 = vadd.f32 %v2315, %v2503
      %v2526 = vadd.f32 %v2316, %v2508
      %v2527 = vadd.f32 %v2317, %v2511
      %v2528 = vadd.f32 %v2318, %v2516
      %v2529 = vadd.f32 %v2319, %v2519
      %v2530 = vld [vmem:[%s291] sm:$0x1]
      %v2532 = vlaneseq
      %v2533 = vshrl.u32 %v2532, 7
      %v2534 = vsub.s32 0, %v2533
      %v2535 = vrot.slane %v2530, %v2534
      %v2537 = vadd.f32 %v2522, %v2535
      %v2538 = vadd.f32 %v2523, %v2535
      %v2539 = vadd.f32 %v2524, %v2535
      %v2540 = vadd.f32 %v2525, %v2535
      %v2541 = vadd.f32 %v2526, %v2535
      %v2542 = vadd.f32 %v2527, %v2535
      %v2543 = vadd.f32 %v2528, %v2535
      %v2544 = vadd.f32 %v2529, %v2535
      %v2545 = vmax.f32 %v2537, 0.0
      %v2546 = vmax.f32 %v2538, 0.0
      %v2547 = vmax.f32 %v2539, 0.0
      %v2548 = vmax.f32 %v2540, 0.0
      %v2549 = vmax.f32 %v2541, 0.0
      %v2550 = vmax.f32 %v2542, 0.0
      %v2551 = vmax.f32 %v2543, 0.0
      %v2552 = vmax.f32 %v2544, 0.0
      %v2553 = vpack.c.bf16 %v2545, %v2545
      %v2554 = vpack.c.bf16 %v2546, %v2546
      %v2555 = vpack.c.bf16 %v2547, %v2547
      %v2556 = vpack.c.bf16 %v2548, %v2548
      %v2557 = vpack.c.bf16 %v2549, %v2549
      %v2558 = vpack.c.bf16 %v2550, %v2550
      %v2559 = vpack.c.bf16 %v2551, %v2551
      %v2560 = vpack.c.bf16 %v2552, %v2552
      %v2569 = vunpack.c.l.b16 %v2553
      %v2570 = vunpack.c.l.b16 %v2554
      %v2571 = vunpack.c.l.b16 %v2555
      %v2572 = vunpack.c.l.b16 %v2556
      %v2573 = vunpack.c.l.b16 %v2557
      %v2574 = vunpack.c.l.b16 %v2558
      %v2575 = vunpack.c.l.b16 %v2559
      %v2576 = vunpack.c.l.b16 %v2560
      %v2577 = vpack.c.b16 %v2569, %v2569
      %v2578 = vpack.c.b16 %v2570, %v2570
      %v2579 = vpack.c.b16 %v2571, %v2571
      %v2580 = vpack.c.b16 %v2572, %v2572
      %v2581 = vpack.c.b16 %v2573, %v2573
      %v2582 = vpack.c.b16 %v2574, %v2574
      %v2583 = vpack.c.b16 %v2575, %v2575
      %v2584 = vpack.c.b16 %v2576, %v2576
      %v2586 = vshrl.u32 %v2577, 16
      %v2588 = vrot.slane %v2586, 7
      %v2589 = vshll.u32 %v2577, 16
      %v2591 = vor.u32 %v2588, %v2589
      %v2592 = vrot.slane %v2588, 4
      %v2594 = vshrl.u32 %v2578, 16
      %v2596 = vrot.slane %v2594, 7
      %v2597 = vshll.u32 %v2578, 16
      %v2599 = vor.u32 %v2596, %v2597
      %v2600 = vrot.slane %v2596, 4
      %v2602 = vshrl.u32 %v2579, 16
      %v2604 = vrot.slane %v2602, 7
      %v2605 = vshll.u32 %v2579, 16
      %v2607 = vor.u32 %v2604, %v2605
      %v2608 = vrot.slane %v2604, 4
      %v2610 = vshrl.u32 %v2580, 16
      %v2612 = vrot.slane %v2610, 7
      %v2613 = vshll.u32 %v2580, 16
      %v2615 = vor.u32 %v2612, %v2613
      %v2616 = vrot.slane %v2612, 4
      %v2618 = vshrl.u32 %v2581, 16
      %v2620 = vrot.slane %v2618, 7
      %v2621 = vshll.u32 %v2581, 16
      %v2623 = vor.u32 %v2620, %v2621
      %v2624 = vrot.slane %v2620, 4
      %v2626 = vshrl.u32 %v2582, 16
      %v2628 = vrot.slane %v2626, 7
      %v2629 = vshll.u32 %v2582, 16
      %v2631 = vor.u32 %v2628, %v2629
      %v2632 = vrot.slane %v2628, 4
      %v2634 = vshrl.u32 %v2583, 16
      %v2636 = vrot.slane %v2634, 7
      %v2637 = vshll.u32 %v2583, 16
      %v2639 = vor.u32 %v2636, %v2637
      %v2640 = vrot.slane %v2636, 4
      %v2642 = vshrl.u32 %v2584, 16
      %v2644 = vrot.slane %v2642, 7
      %v2645 = vshll.u32 %v2584, 16
      %v2647 = vor.u32 %v2644, %v2645
      %v2648 = vrot.slane %v2644, 4
      %s2665 = scalar_lea.vmem [#allocation3], 8
      %vm2666 = vcmask 1043456
      %vm2667 = vsmask.f32 7938
      %vm2668 = vmand %vm2666, %vm2667
      %v2669 = vld [vmem:[%s2665] sm:$0xf]
      %v2670 = vsel %vm2668, %v2591, %v2669
      %2671 = vst [vmem:[%s2665] sm:$0xf] %v2670
      %vm2672 = vcmask 1040384
      %vm2673 = vsmask.f32 256
      %vm2674 = vmand %vm2672, %vm2673
      %v2675 = vld [vmem:[%s2665 + $0x4] sm:$0x1]
      %v2676 = vsel %vm2674, %v2592, %v2675
      %2677 = vst [vmem:[%s2665 + $0x4] sm:$0x1] %v2676
      %v2678 = vld [vmem:[%s2665 + $0x8] sm:$0xf]
      %v2679 = vsel %vm2668, %v2599, %v2678
      %2680 = vst [vmem:[%s2665 + $0x8] sm:$0xf] %v2679
      %v2681 = vld [vmem:[%s2665 + $0xc] sm:$0x1]
      %v2682 = vsel %vm2674, %v2600, %v2681
      %2683 = vst [vmem:[%s2665 + $0xc] sm:$0x1] %v2682
      %v2684 = vld [vmem:[%s2665 + $0x10] sm:$0xf]
      %v2685 = vsel %vm2668, %v2607, %v2684
      %2686 = vst [vmem:[%s2665 + $0x10] sm:$0xf] %v2685
      %v2687 = vld [vmem:[%s2665 + $0x14] sm:$0x1]
      %v2688 = vsel %vm2674, %v2608, %v2687
      %2689 = vst [vmem:[%s2665 + $0x14] sm:$0x1] %v2688
      %v2690 = vld [vmem:[%s2665 + $0x18] sm:$0xf]
      %v2691 = vsel %vm2668, %v2615, %v2690
      %2692 = vst [vmem:[%s2665 + $0x18] sm:$0xf] %v2691
      %v2693 = vld [vmem:[%s2665 + $0x1c] sm:$0x1]
      %v2694 = vsel %vm2674, %v2616, %v2693
      %2695 = vst [vmem:[%s2665 + $0x1c] sm:$0x1] %v2694
      %v2696 = vld [vmem:[%s2665 + $0x20] sm:$0xf]
      %v2697 = vsel %vm2668, %v2623, %v2696
      %2698 = vst [vmem:[%s2665 + $0x20] sm:$0xf] %v2697
      %v2699 = vld [vmem:[%s2665 + $0x24] sm:$0x1]
      %v2700 = vsel %vm2674, %v2624, %v2699
      %2701 = vst [vmem:[%s2665 + $0x24] sm:$0x1] %v2700
      %v2702 = vld [vmem:[%s2665 + $0x28] sm:$0xf]
      %v2703 = vsel %vm2668, %v2631, %v2702
      %2704 = vst [vmem:[%s2665 + $0x28] sm:$0xf] %v2703
      %v2705 = vld [vmem:[%s2665 + $0x2c] sm:$0x1]
      %v2706 = vsel %vm2674, %v2632, %v2705
      %2707 = vst [vmem:[%s2665 + $0x2c] sm:$0x1] %v2706
      %v2708 = vld [vmem:[%s2665 + $0x30] sm:$0xf]
      %v2709 = vsel %vm2668, %v2639, %v2708
      %2710 = vst [vmem:[%s2665 + $0x30] sm:$0xf] %v2709
      %v2711 = vld [vmem:[%s2665 + $0x34] sm:$0x1]
      %v2712 = vsel %vm2674, %v2640, %v2711
      %2713 = vst [vmem:[%s2665 + $0x34] sm:$0x1] %v2712
      %v2714 = vld [vmem:[%s2665 + $0x38] sm:$0xf]
      %v2715 = vsel %vm2668, %v2647, %v2714
      %2716 = vst [vmem:[%s2665 + $0x38] sm:$0xf] %v2715
      %v2717 = vld [vmem:[%s2665 + $0x3c] sm:$0x1]
      %v2718 = vsel %vm2674, %v2648, %v2717
      %2719 = vst [vmem:[%s2665 + $0x3c] sm:$0x1] %v2718
      %v2720 = vld [vmem:[#allocation3] sm:$0xf]
      %v2721 = vld [vmem:[#allocation3 + $0x8] sm:$0xf]
      %v2722 = vld [vmem:[#allocation3 + $0x10] sm:$0xf]
      %v2723 = vld [vmem:[#allocation3 + $0x18] sm:$0xf]
      %v2724 = vld [vmem:[#allocation3 + $0x20] sm:$0xf]
      %v2725 = vld [vmem:[#allocation3 + $0x28] sm:$0xf]
      %v2726 = vld [vmem:[#allocation3 + $0x30] sm:$0xf]
      %v2727 = vld [vmem:[#allocation3 + $0x38] sm:$0xf]
      %v2728 = vld [vmem:[%s296] sm:$0xf]
      %v2729 = vld [vmem:[%s296 + $0x4] sm:$0xf]
      %v2730 = vld [vmem:[%s296 + $0x8] sm:$0xf]
      %v2731 = vld [vmem:[%s296 + $0xc] sm:$0xf]
      %v2732 = vld [vmem:[%s296 + $0x10] sm:$0xf]
      %v2733 = vld [vmem:[%s296 + $0x14] sm:$0xf]
      %v2734 = vld [vmem:[%s296 + $0x18] sm:$0xf]
      %v2735 = vld [vmem:[%s296 + $0x1c] sm:$0xf]
      %v2736 = vld [vmem:[%s296 + $0x20] sm:$0xf]
      %v2737 = vld [vmem:[%s296 + $0x24] sm:$0xf]
      %v2738 = vld [vmem:[%s296 + $0x28] sm:$0xf]
      %v2739 = vld [vmem:[%s296 + $0x2c] sm:$0xf]
      %v2740 = vld [vmem:[%s296 + $0x30] sm:$0xf]
      %v2741 = vld [vmem:[%s296 + $0x34] sm:$0xf]
      %v2742 = vld [vmem:[%s296 + $0x38] sm:$0xf]
      %v2743 = vld [vmem:[%s296 + $0x3c] sm:$0xf]
      %v2744 = vld [vmem:[#allocation3 + $0x4] sm:$0x1]
      %v2745 = vld [vmem:[#allocation3 + $0xc] sm:$0x1]
      %v2746 = vld [vmem:[#allocation3 + $0x14] sm:$0x1]
      %v2747 = vld [vmem:[#allocation3 + $0x1c] sm:$0x1]
      %v2748 = vld [vmem:[#allocation3 + $0x24] sm:$0x1]
      %v2749 = vld [vmem:[#allocation3 + $0x2c] sm:$0x1]
      %v2750 = vld [vmem:[#allocation3 + $0x34] sm:$0x1]
      %v2751 = vld [vmem:[#allocation3 + $0x3c] sm:$0x1]
      %v2753 = vshrl.u32 %v2720, 16
      %v2755 = vrot.slane %v2753, 4
      %v2756 = vshll.u32 %v2720, 16
      %v2758 = vrot.slane %v2756, 5
      %v2759 = vor.u32 %v2755, %v2758
      %v2760 = vrot.slane %v2759, 4
      %v2762 = vshll.u32 %v2744, 16
      %v2764 = vrot.slane %v2762, 5
      %v2765 = vsel %vm595, %v2760, %v2764
      %v2767 = vshrl.u32 %v2721, 16
      %v2769 = vrot.slane %v2767, 4
      %v2770 = vshll.u32 %v2721, 16
      %v2772 = vrot.slane %v2770, 5
      %v2773 = vor.u32 %v2769, %v2772
      %v2774 = vrot.slane %v2773, 4
      %v2776 = vshll.u32 %v2745, 16
      %v2778 = vrot.slane %v2776, 5
      %v2779 = vsel %vm595, %v2774, %v2778
      %v2781 = vshrl.u32 %v2722, 16
      %v2783 = vrot.slane %v2781, 4
      %v2784 = vshll.u32 %v2722, 16
      %v2786 = vrot.slane %v2784, 5
      %v2787 = vor.u32 %v2783, %v2786
      %v2788 = vrot.slane %v2787, 4
      %v2790 = vshll.u32 %v2746, 16
      %v2792 = vrot.slane %v2790, 5
      %v2793 = vsel %vm595, %v2788, %v2792
      %v2795 = vshrl.u32 %v2723, 16
      %v2797 = vrot.slane %v2795, 4
      %v2798 = vshll.u32 %v2723, 16
      %v2800 = vrot.slane %v2798, 5
      %v2801 = vor.u32 %v2797, %v2800
      %v2802 = vrot.slane %v2801, 4
      %v2804 = vshll.u32 %v2747, 16
      %v2806 = vrot.slane %v2804, 5
      %v2807 = vsel %vm595, %v2802, %v2806
      %v2809 = vshrl.u32 %v2724, 16
      %v2811 = vrot.slane %v2809, 4
      %v2812 = vshll.u32 %v2724, 16
      %v2814 = vrot.slane %v2812, 5
      %v2815 = vor.u32 %v2811, %v2814
      %v2816 = vrot.slane %v2815, 4
      %v2818 = vshll.u32 %v2748, 16
      %v2820 = vrot.slane %v2818, 5
      %v2821 = vsel %vm595, %v2816, %v2820
      %v2823 = vshrl.u32 %v2725, 16
      %v2825 = vrot.slane %v2823, 4
      %v2826 = vshll.u32 %v2725, 16
      %v2828 = vrot.slane %v2826, 5
      %v2829 = vor.u32 %v2825, %v2828
      %v2830 = vrot.slane %v2829, 4
      %v2832 = vshll.u32 %v2749, 16
      %v2834 = vrot.slane %v2832, 5
      %v2835 = vsel %vm595, %v2830, %v2834
      %v2837 = vshrl.u32 %v2726, 16
      %v2839 = vrot.slane %v2837, 4
      %v2840 = vshll.u32 %v2726, 16
      %v2842 = vrot.slane %v2840, 5
      %v2843 = vor.u32 %v2839, %v2842
      %v2844 = vrot.slane %v2843, 4
      %v2846 = vshll.u32 %v2750, 16
      %v2848 = vrot.slane %v2846, 5
      %v2849 = vsel %vm595, %v2844, %v2848
      %v2851 = vshrl.u32 %v2727, 16
      %v2853 = vrot.slane %v2851, 4
      %v2854 = vshll.u32 %v2727, 16
      %v2856 = vrot.slane %v2854, 5
      %v2857 = vor.u32 %v2853, %v2856
      %v2858 = vrot.slane %v2857, 4
      %v2860 = vshll.u32 %v2751, 16
      %v2862 = vrot.slane %v2860, 5
      %v2863 = vsel %vm595, %v2858, %v2862
      %s2864 = scalar_lea.vmem %s296, 64
      %v2865 = vld [vmem:[%s2864] sm:$0xf]
      %v2866 = vld [vmem:[%s2864 + $0x4] sm:$0xf]
      %v2867 = vld [vmem:[%s2864 + $0x8] sm:$0xf]
      %v2868 = vld [vmem:[%s2864 + $0xc] sm:$0xf]
      %v2869 = vld [vmem:[%s2864 + $0x10] sm:$0xf]
      %v2870 = vld [vmem:[%s2864 + $0x14] sm:$0xf]
      %v2871 = vld [vmem:[%s2864 + $0x18] sm:$0xf]
      %v2872 = vld [vmem:[%s2864 + $0x1c] sm:$0xf]
      %v2873 = vld [vmem:[%s2864 + $0x20] sm:$0xf]
      %v2874 = vld [vmem:[%s2864 + $0x24] sm:$0xf]
      %v2875 = vld [vmem:[%s2864 + $0x28] sm:$0xf]
      %v2876 = vld [vmem:[%s2864 + $0x2c] sm:$0xf]
      %v2877 = vld [vmem:[%s2864 + $0x30] sm:$0xf]
      %v2878 = vld [vmem:[%s2864 + $0x34] sm:$0xf]
      %v2879 = vld [vmem:[%s2864 + $0x38] sm:$0xf]
      %v2880 = vld [vmem:[%s2864 + $0x3c] sm:$0xf]
      %v2881 = vunpack.c.l.b16 %v2765
      %v2882 = vunpack.c.l.b16 %v2779
      %v2883 = vunpack.c.l.b16 %v2793
      %v2884 = vunpack.c.l.b16 %v2807
      %v2885 = vunpack.c.l.b16 %v2821
      %v2886 = vunpack.c.l.b16 %v2835
      %v2887 = vunpack.c.l.b16 %v2849
      %v2888 = vunpack.c.l.b16 %v2863
      %v2889 = vpack.c.b16 %v2882, %v2881
      %v2890 = vpack.c.b16 %v2884, %v2883
      %v2891 = vpack.c.b16 %v2886, %v2885
      %v2892 = vpack.c.b16 %v2888, %v2887
      %v2913 = vunpack.c.l.b16 %v2865
      %v2914 = vunpack.c.l.b16 %v2866
      %v2915 = vunpack.c.l.b16 %v2867
      %v2916 = vunpack.c.l.b16 %v2868
      %v2917 = vunpack.c.l.b16 %v2869
      %v2918 = vunpack.c.l.b16 %v2870
      %v2919 = vunpack.c.l.b16 %v2871
      %v2920 = vunpack.c.l.b16 %v2872
      %v2921 = vunpack.c.l.b16 %v2873
      %v2922 = vunpack.c.l.b16 %v2874
      %v2923 = vunpack.c.l.b16 %v2875
      %v2924 = vunpack.c.l.b16 %v2876
      %v2925 = vunpack.c.l.b16 %v2877
      %v2926 = vunpack.c.l.b16 %v2878
      %v2927 = vunpack.c.l.b16 %v2879
      %v2928 = vunpack.c.l.b16 %v2880
      %v2929 = vpack.c.b16 %v2914, %v2913
      %v2930 = vpack.c.b16 %v2916, %v2915
      %v2931 = vpack.c.b16 %v2918, %v2917
      %v2932 = vpack.c.b16 %v2920, %v2919
      %v2933 = vpack.c.b16 %v2922, %v2921
      %v2934 = vpack.c.b16 %v2924, %v2923
      %v2935 = vpack.c.b16 %v2926, %v2925
      %v2936 = vpack.c.b16 %v2928, %v2927
      %2945 = vmatprep.subr.bf16.mxu0 0
      %2946 = vmatpush1.bf16.msra.mxu0 %v2929
      %2947 = vmatprep.subr.bf16.mxu0 0
      %2948 = vmatpush1.bf16.msra.mxu0 %v2930
      %2949 = vmatprep.subr.bf16.mxu0 0
      %2950 = vmatpush1.bf16.msra.mxu0 %v2931
      %2951 = vmatprep.subr.bf16.mxu0 0
      %2952 = vmatpush1.bf16.msra.mxu0 %v2932
      %2953 = vmatprep.subr.bf16.mxu0 0
      %2954 = vmatpush1.bf16.msra.mxu0 %v2933
      %2955 = vmatprep.subr.bf16.mxu0 0
      %2956 = vmatpush1.bf16.msra.mxu0 %v2934
      %2957 = vmatprep.subr.bf16.mxu0 0
      %2958 = vmatpush1.bf16.msra.mxu0 %v2935
      %2959 = vmatprep.subr.bf16.mxu0 0
      %2960 = vmatpush1.bf16.msra.mxu0 %v2936
      %2961 = vmatprep.subr.bf16.mxu0 0
      %2962 = vmatpush1.bf16.msra.mxu0 0
      %2963 = vmatprep.subr.bf16.mxu0 0
      %2964 = vmatpush1.bf16.msra.mxu0 0
      %2965 = vmatprep.subr.bf16.mxu0 0
      %2966 = vmatpush1.bf16.msra.mxu0 0
      %2967 = vmatprep.subr.bf16.mxu0 0
      %2968 = vmatpush1.bf16.msra.mxu0 0
      %2969 = vmatprep.subr.bf16.mxu0 0
      %2970 = vmatpush1.bf16.msra.mxu0 0
      %2971 = vmatprep.subr.bf16.mxu0 0
      %2972 = vmatpush1.bf16.msra.mxu0 0
      %2973 = vmatprep.subr.bf16.mxu0 0
      %2974 = vmatpush1.bf16.msra.mxu0 0
      %2975 = vmatprep.subr.bf16.mxu0 0
      %2976 = vmatpush1.bf16.msra.mxu0 0
      %2977 = vmatprep.mubr.bf16.mxu0 0
      %2978 = vmatmul.mubr.bf16.gmra.mrb[0].mxu0 %v2889
      %v2979 = vpop.f32.mrb[0].mxu0
      %v2980 = vadd.f32 0.0, %v2979
      %v2981 = vpop.f32.mrb[0].mxu0
      %v2982 = vpop.f32.mrb[0].mxu0
      %v2983 = vadd.f32 0.0, %v2982
      %v2984 = vpop.f32.mrb[0].mxu0
      %2985 = vmatprep.mubr.bf16.mxu0 0
      %2986 = vmatmul.mubr.bf16.gmra.mrb[0].mxu0 %v2890
      %v2987 = vpop.f32.mrb[0].mxu0
      %v2988 = vadd.f32 0.0, %v2987
      %v2989 = vpop.f32.mrb[0].mxu0
      %v2990 = vpop.f32.mrb[0].mxu0
      %v2991 = vadd.f32 0.0, %v2990
      %v2992 = vpop.f32.mrb[0].mxu0
      %2993 = vmatprep.mubr.bf16.mxu0 0
      %2994 = vmatmul.mubr.bf16.gmra.mrb[0].mxu0 %v2891
      %v2995 = vpop.f32.mrb[0].mxu0
      %v2996 = vadd.f32 0.0, %v2995
      %v2997 = vpop.f32.mrb[0].mxu0
      %v2998 = vpop.f32.mrb[0].mxu0
      %v2999 = vadd.f32 0.0, %v2998
      %v3000 = vpop.f32.mrb[0].mxu0
      %3001 = vmatprep.mubr.bf16.mxu0 0
      %3002 = vmatmul.mubr.bf16.gmra.mrb[0].mxu0 %v2892
      %v3003 = vpop.f32.mrb[0].mxu0
      %v3004 = vadd.f32 0.0, %v3003
      %v3005 = vpop.f32.mrb[0].mxu0
      %v3006 = vpop.f32.mrb[0].mxu0
      %v3007 = vadd.f32 0.0, %v3006
      %v3008 = vpop.f32.mrb[0].mxu0
      %3009 = vdwg.mxu0
      %v3018 = vunpack.c.l.b16 %v2720
      %v3019 = vunpack.c.l.b16 %v2721
      %v3020 = vunpack.c.l.b16 %v2722
      %v3021 = vunpack.c.l.b16 %v2723
      %v3022 = vunpack.c.l.b16 %v2724
      %v3023 = vunpack.c.l.b16 %v2725
      %v3024 = vunpack.c.l.b16 %v2726
      %v3025 = vunpack.c.l.b16 %v2727
      %v3026 = vpack.c.b16 %v3019, %v3018
      %v3027 = vpack.c.b16 %v3021, %v3020
      %v3028 = vpack.c.b16 %v3023, %v3022
      %v3029 = vpack.c.b16 %v3025, %v3024
      %v3050 = vunpack.c.l.b16 %v2728
      %v3051 = vunpack.c.l.b16 %v2729
      %v3052 = vunpack.c.l.b16 %v2730
      %v3053 = vunpack.c.l.b16 %v2731
      %v3054 = vunpack.c.l.b16 %v2732
      %v3055 = vunpack.c.l.b16 %v2733
      %v3056 = vunpack.c.l.b16 %v2734
      %v3057 = vunpack.c.l.b16 %v2735
      %v3058 = vunpack.c.l.b16 %v2736
      %v3059 = vunpack.c.l.b16 %v2737
      %v3060 = vunpack.c.l.b16 %v2738
      %v3061 = vunpack.c.l.b16 %v2739
      %v3062 = vunpack.c.l.b16 %v2740
      %v3063 = vunpack.c.l.b16 %v2741
      %v3064 = vunpack.c.l.b16 %v2742
      %v3065 = vunpack.c.l.b16 %v2743
      %v3066 = vpack.c.b16 %v3051, %v3050
      %v3067 = vpack.c.b16 %v3053, %v3052
      %v3068 = vpack.c.b16 %v3055, %v3054
      %v3069 = vpack.c.b16 %v3057, %v3056
      %v3070 = vpack.c.b16 %v3059, %v3058
      %v3071 = vpack.c.b16 %v3061, %v3060
      %v3072 = vpack.c.b16 %v3063, %v3062
      %v3073 = vpack.c.b16 %v3065, %v3064
      %3082 = vmatprep.subr.bf16.mxu0 0
      %3083 = vmatpush1.bf16.msra.mxu0 %v3066
      %3084 = vmatprep.subr.bf16.mxu0 0
      %3085 = vmatpush1.bf16.msra.mxu0 %v3067
      %3086 = vmatprep.subr.bf16.mxu0 0
      %3087 = vmatpush1.bf16.msra.mxu0 %v3068
      %3088 = vmatprep.subr.bf16.mxu0 0
      %3089 = vmatpush1.bf16.msra.mxu0 %v3069
      %3090 = vmatprep.subr.bf16.mxu0 0
      %3091 = vmatpush1.bf16.msra.mxu0 %v3070
      %3092 = vmatprep.subr.bf16.mxu0 0
      %3093 = vmatpush1.bf16.msra.mxu0 %v3071
      %3094 = vmatprep.subr.bf16.mxu0 0
      %3095 = vmatpush1.bf16.msra.mxu0 %v3072
      %3096 = vmatprep.subr.bf16.mxu0 0
      %3097 = vmatpush1.bf16.msra.mxu0 %v3073
      %3098 = vmatprep.subr.bf16.mxu0 0
      %3099 = vmatpush1.bf16.msra.mxu0 0
      %3100 = vmatprep.subr.bf16.mxu0 0
      %3101 = vmatpush1.bf16.msra.mxu0 0
      %3102 = vmatprep.subr.bf16.mxu0 0
      %3103 = vmatpush1.bf16.msra.mxu0 0
      %3104 = vmatprep.subr.bf16.mxu0 0
      %3105 = vmatpush1.bf16.msra.mxu0 0
      %3106 = vmatprep.subr.bf16.mxu0 0
      %3107 = vmatpush1.bf16.msra.mxu0 0
      %3108 = vmatprep.subr.bf16.mxu0 0
      %3109 = vmatpush1.bf16.msra.mxu0 0
      %3110 = vmatprep.subr.bf16.mxu0 0
      %3111 = vmatpush1.bf16.msra.mxu0 0
      %3112 = vmatprep.subr.bf16.mxu0 0
      %3113 = vmatpush1.bf16.msra.mxu0 0
      %3114 = vmatprep.mubr.bf16.mxu0 0
      %3115 = vmatmul.mubr.bf16.gmra.mrb[0].mxu0 %v3026
      %v3116 = vpop.f32.mrb[0].mxu0
      %v3117 = vadd.f32 %v2980, %v3116
      %v3118 = vpop.f32.mrb[0].mxu0
      %v3119 = vpop.f32.mrb[0].mxu0
      %v3120 = vadd.f32 %v2983, %v3119
      %v3121 = vpop.f32.mrb[0].mxu0
      %3122 = vmatprep.mubr.bf16.mxu0 0
      %3123 = vmatmul.mubr.bf16.gmra.mrb[0].mxu0 %v3027
      %v3124 = vpop.f32.mrb[0].mxu0
      %v3125 = vadd.f32 %v2988, %v3124
      %v3126 = vpop.f32.mrb[0].mxu0
      %v3127 = vpop.f32.mrb[0].mxu0
      %v3128 = vadd.f32 %v2991, %v3127
      %v3129 = vpop.f32.mrb[0].mxu0
      %3130 = vmatprep.mubr.bf16.mxu0 0
      %3131 = vmatmul.mubr.bf16.gmra.mrb[0].mxu0 %v3028
      %v3132 = vpop.f32.mrb[0].mxu0
      %v3133 = vadd.f32 %v2996, %v3132
      %v3134 = vpop.f32.mrb[0].mxu0
      %v3135 = vpop.f32.mrb[0].mxu0
      %v3136 = vadd.f32 %v2999, %v3135
      %v3137 = vpop.f32.mrb[0].mxu0
      %3138 = vmatprep.mubr.bf16.mxu0 0
      %3139 = vmatmul.mubr.bf16.gmra.mrb[0].mxu0 %v3029
      %v3140 = vpop.f32.mrb[0].mxu0
      %v3141 = vadd.f32 %v3004, %v3140
      %v3142 = vpop.f32.mrb[0].mxu0
      %v3143 = vpop.f32.mrb[0].mxu0
      %v3144 = vadd.f32 %v3007, %v3143
      %v3145 = vpop.f32.mrb[0].mxu0
      %3146 = vdwg.mxu0
      %v3147 = vld [vmem:[#allocation3] sm:$0xe]
      %v3148 = vld [vmem:[#allocation3 + $0x8] sm:$0xe]
      %v3149 = vld [vmem:[#allocation3 + $0x10] sm:$0xe]
      %v3150 = vld [vmem:[#allocation3 + $0x18] sm:$0xe]
      %v3151 = vld [vmem:[#allocation3 + $0x20] sm:$0xe]
      %v3152 = vld [vmem:[#allocation3 + $0x28] sm:$0xe]
      %v3153 = vld [vmem:[#allocation3 + $0x30] sm:$0xe]
      %v3154 = vld [vmem:[#allocation3 + $0x38] sm:$0xe]
      %v3171 = vrot.slane %v3147, 5
      %v3172 = vrot.slane %v3171, 4
      %v3173 = vrot.slane %v2744, 5
      %v3174 = vsel %vm1017, %v3172, %v3173
      %v3175 = vrot.slane %v3148, 5
      %v3176 = vrot.slane %v3175, 4
      %v3177 = vrot.slane %v2745, 5
      %v3178 = vsel %vm1017, %v3176, %v3177
      %v3179 = vrot.slane %v3149, 5
      %v3180 = vrot.slane %v3179, 4
      %v3181 = vrot.slane %v2746, 5
      %v3182 = vsel %vm1017, %v3180, %v3181
      %v3183 = vrot.slane %v3150, 5
      %v3184 = vrot.slane %v3183, 4
      %v3185 = vrot.slane %v2747, 5
      %v3186 = vsel %vm1017, %v3184, %v3185
      %v3187 = vrot.slane %v3151, 5
      %v3188 = vrot.slane %v3187, 4
      %v3189 = vrot.slane %v2748, 5
      %v3190 = vsel %vm1017, %v3188, %v3189
      %v3191 = vrot.slane %v3152, 5
      %v3192 = vrot.slane %v3191, 4
      %v3193 = vrot.slane %v2749, 5
      %v3194 = vsel %vm1017, %v3192, %v3193
      %v3195 = vrot.slane %v3153, 5
      %v3196 = vrot.slane %v3195, 4
      %v3197 = vrot.slane %v2750, 5
      %v3198 = vsel %vm1017, %v3196, %v3197
      %v3199 = vrot.slane %v3154, 5
      %v3200 = vrot.slane %v3199, 4
      %v3201 = vrot.slane %v2751, 5
      %v3202 = vsel %vm1017, %v3200, %v3201
      %s3203 = scalar_lea.vmem %s296, 128
      %v3204 = vld [vmem:[%s3203] sm:$0xf]
      %v3205 = vld [vmem:[%s3203 + $0x4] sm:$0xf]
      %v3206 = vld [vmem:[%s3203 + $0x8] sm:$0xf]
      %v3207 = vld [vmem:[%s3203 + $0xc] sm:$0xf]
      %v3208 = vld [vmem:[%s3203 + $0x10] sm:$0xf]
      %v3209 = vld [vmem:[%s3203 + $0x14] sm:$0xf]
      %v3210 = vld [vmem:[%s3203 + $0x18] sm:$0xf]
      %v3211 = vld [vmem:[%s3203 + $0x1c] sm:$0xf]
      %v3212 = vld [vmem:[%s3203 + $0x20] sm:$0xf]
      %v3213 = vld [vmem:[%s3203 + $0x24] sm:$0xf]
      %v3214 = vld [vmem:[%s3203 + $0x28] sm:$0xf]
      %v3215 = vld [vmem:[%s3203 + $0x2c] sm:$0xf]
      %v3216 = vld [vmem:[%s3203 + $0x30] sm:$0xf]
      %v3217 = vld [vmem:[%s3203 + $0x34] sm:$0xf]
      %v3218 = vld [vmem:[%s3203 + $0x38] sm:$0xf]
      %v3219 = vld [vmem:[%s3203 + $0x3c] sm:$0xf]
      %v3220 = vunpack.c.l.b16 %v3174
      %v3221 = vunpack.c.l.b16 %v3178
      %v3222 = vunpack.c.l.b16 %v3182
      %v3223 = vunpack.c.l.b16 %v3186
      %v3224 = vunpack.c.l.b16 %v3190
      %v3225 = vunpack.c.l.b16 %v3194
      %v3226 = vunpack.c.l.b16 %v3198
      %v3227 = vunpack.c.l.b16 %v3202
      %v3228 = vpack.c.b16 %v3221, %v3220
      %v3229 = vpack.c.b16 %v3223, %v3222
      %v3230 = vpack.c.b16 %v3225, %v3224
      %v3231 = vpack.c.b16 %v3227, %v3226
      %v3252 = vunpack.c.l.b16 %v3204
      %v3253 = vunpack.c.l.b16 %v3205
      %v3254 = vunpack.c.l.b16 %v3206
      %v3255 = vunpack.c.l.b16 %v3207
      %v3256 = vunpack.c.l.b16 %v3208
      %v3257 = vunpack.c.l.b16 %v3209
      %v3258 = vunpack.c.l.b16 %v3210
      %v3259 = vunpack.c.l.b16 %v3211
      %v3260 = vunpack.c.l.b16 %v3212
      %v3261 = vunpack.c.l.b16 %v3213
      %v3262 = vunpack.c.l.b16 %v3214
      %v3263 = vunpack.c.l.b16 %v3215
      %v3264 = vunpack.c.l.b16 %v3216
      %v3265 = vunpack.c.l.b16 %v3217
      %v3266 = vunpack.c.l.b16 %v3218
      %v3267 = vunpack.c.l.b16 %v3219
      %v3268 = vpack.c.b16 %v3253, %v3252
      %v3269 = vpack.c.b16 %v3255, %v3254
      %v3270 = vpack.c.b16 %v3257, %v3256
      %v3271 = vpack.c.b16 %v3259, %v3258
      %v3272 = vpack.c.b16 %v3261, %v3260
      %v3273 = vpack.c.b16 %v3263, %v3262
      %v3274 = vpack.c.b16 %v3265, %v3264
      %v3275 = vpack.c.b16 %v3267, %v3266
      %3284 = vmatprep.subr.bf16.mxu0 0
      %3285 = vmatpush1.bf16.msra.mxu0 %v3268
      %3286 = vmatprep.subr.bf16.mxu0 0
      %3287 = vmatpush1.bf16.msra.mxu0 %v3269
      %3288 = vmatprep.subr.bf16.mxu0 0
      %3289 = vmatpush1.bf16.msra.mxu0 %v3270
      %3290 = vmatprep.subr.bf16.mxu0 0
      %3291 = vmatpush1.bf16.msra.mxu0 %v3271
      %3292 = vmatprep.subr.bf16.mxu0 0
      %3293 = vmatpush1.bf16.msra.mxu0 %v3272
      %3294 = vmatprep.subr.bf16.mxu0 0
      %3295 = vmatpush1.bf16.msra.mxu0 %v3273
      %3296 = vmatprep.subr.bf16.mxu0 0
      %3297 = vmatpush1.bf16.msra.mxu0 %v3274
      %3298 = vmatprep.subr.bf16.mxu0 0
      %3299 = vmatpush1.bf16.msra.mxu0 %v3275
      %3300 = vmatprep.subr.bf16.mxu0 0
      %3301 = vmatpush1.bf16.msra.mxu0 0
      %3302 = vmatprep.subr.bf16.mxu0 0
      %3303 = vmatpush1.bf16.msra.mxu0 0
      %3304 = vmatprep.subr.bf16.mxu0 0
      %3305 = vmatpush1.bf16.msra.mxu0 0
      %3306 = vmatprep.subr.bf16.mxu0 0
      %3307 = vmatpush1.bf16.msra.mxu0 0
      %3308 = vmatprep.subr.bf16.mxu0 0
      %3309 = vmatpush1.bf16.msra.mxu0 0
      %3310 = vmatprep.subr.bf16.mxu0 0
      %3311 = vmatpush1.bf16.msra.mxu0 0
      %3312 = vmatprep.subr.bf16.mxu0 0
      %3313 = vmatpush1.bf16.msra.mxu0 0
      %3314 = vmatprep.subr.bf16.mxu0 0
      %3315 = vmatpush1.bf16.msra.mxu0 0
      %3316 = vmatprep.mubr.bf16.mxu0 0
      %3317 = vmatmul.mubr.bf16.gmra.mrb[0].mxu0 %v3228
      %v3318 = vpop.f32.mrb[0].mxu0
      %v3319 = vadd.f32 0.0, %v3318
      %v3320 = vpop.f32.mrb[0].mxu0
      %v3321 = vpop.f32.mrb[0].mxu0
      %v3322 = vadd.f32 0.0, %v3321
      %v3323 = vpop.f32.mrb[0].mxu0
      %3324 = vmatprep.mubr.bf16.mxu0 0
      %3325 = vmatmul.mubr.bf16.gmra.mrb[0].mxu0 %v3229
      %v3326 = vpop.f32.mrb[0].mxu0
      %v3327 = vadd.f32 0.0, %v3326
      %v3328 = vpop.f32.mrb[0].mxu0
      %v3329 = vpop.f32.mrb[0].mxu0
      %v3330 = vadd.f32 0.0, %v3329
      %v3331 = vpop.f32.mrb[0].mxu0
      %3332 = vmatprep.mubr.bf16.mxu0 0
      %3333 = vmatmul.mubr.bf16.gmra.mrb[0].mxu0 %v3230
      %v3334 = vpop.f32.mrb[0].mxu0
      %v3335 = vadd.f32 0.0, %v3334
      %v3336 = vpop.f32.mrb[0].mxu0
      %v3337 = vpop.f32.mrb[0].mxu0
      %v3338 = vadd.f32 0.0, %v3337
      %v3339 = vpop.f32.mrb[0].mxu0
      %3340 = vmatprep.mubr.bf16.mxu0 0
      %3341 = vmatmul.mubr.bf16.gmra.mrb[0].mxu0 %v3231
      %v3342 = vpop.f32.mrb[0].mxu0
      %v3343 = vadd.f32 0.0, %v3342
      %v3344 = vpop.f32.mrb[0].mxu0
      %v3345 = vpop.f32.mrb[0].mxu0
      %v3346 = vadd.f32 0.0, %v3345
      %v3347 = vpop.f32.mrb[0].mxu0
      %3348 = vdwg.mxu0
      %v3349 = vadd.f32 %v3117, %v3319
      %v3350 = vadd.f32 %v3120, %v3322
      %v3351 = vadd.f32 %v3125, %v3327
      %v3352 = vadd.f32 %v3128, %v3330
      %v3353 = vadd.f32 %v3133, %v3335
      %v3354 = vadd.f32 %v3136, %v3338
      %v3355 = vadd.f32 %v3141, %v3343
      %v3356 = vadd.f32 %v3144, %v3346
      %v3357 = vld [vmem:[%s2665] sm:$0xf]
      %v3358 = vld [vmem:[%s2665 + $0x8] sm:$0xf]
      %v3359 = vld [vmem:[%s2665 + $0x10] sm:$0xf]
      %v3360 = vld [vmem:[%s2665 + $0x18] sm:$0xf]
      %v3361 = vld [vmem:[%s2665 + $0x20] sm:$0xf]
      %v3362 = vld [vmem:[%s2665 + $0x28] sm:$0xf]
      %v3363 = vld [vmem:[%s2665 + $0x30] sm:$0xf]
      %v3364 = vld [vmem:[%s2665 + $0x38] sm:$0xf]
      %s3365 = scalar_lea.vmem %s296, 192
      %v3366 = vld [vmem:[%s3365] sm:$0xf]
      %v3367 = vld [vmem:[%s3365 + $0x4] sm:$0xf]
      %v3368 = vld [vmem:[%s3365 + $0x8] sm:$0xf]
      %v3369 = vld [vmem:[%s3365 + $0xc] sm:$0xf]
      %v3370 = vld [vmem:[%s3365 + $0x10] sm:$0xf]
      %v3371 = vld [vmem:[%s3365 + $0x14] sm:$0xf]
      %v3372 = vld [vmem:[%s3365 + $0x18] sm:$0xf]
      %v3373 = vld [vmem:[%s3365 + $0x1c] sm:$0xf]
      %v3374 = vld [vmem:[%s3365 + $0x20] sm:$0xf]
      %v3375 = vld [vmem:[%s3365 + $0x24] sm:$0xf]
      %v3376 = vld [vmem:[%s3365 + $0x28] sm:$0xf]
      %v3377 = vld [vmem:[%s3365 + $0x2c] sm:$0xf]
      %v3378 = vld [vmem:[%s3365 + $0x30] sm:$0xf]
      %v3379 = vld [vmem:[%s3365 + $0x34] sm:$0xf]
      %v3380 = vld [vmem:[%s3365 + $0x38] sm:$0xf]
      %v3381 = vld [vmem:[%s3365 + $0x3c] sm:$0xf]
      %v3390 = vunpack.c.l.b16 %v3357
      %v3391 = vunpack.c.l.b16 %v3358
      %v3392 = vunpack.c.l.b16 %v3359
      %v3393 = vunpack.c.l.b16 %v3360
      %v3394 = vunpack.c.l.b16 %v3361
      %v3395 = vunpack.c.l.b16 %v3362
      %v3396 = vunpack.c.l.b16 %v3363
      %v3397 = vunpack.c.l.b16 %v3364
      %v3398 = vpack.c.b16 %v3391, %v3390
      %v3399 = vpack.c.b16 %v3393, %v3392
      %v3400 = vpack.c.b16 %v3395, %v3394
      %v3401 = vpack.c.b16 %v3397, %v3396
      %v3422 = vunpack.c.l.b16 %v3366
      %v3423 = vunpack.c.l.b16 %v3367
      %v3424 = vunpack.c.l.b16 %v3368
      %v3425 = vunpack.c.l.b16 %v3369
      %v3426 = vunpack.c.l.b16 %v3370
      %v3427 = vunpack.c.l.b16 %v3371
      %v3428 = vunpack.c.l.b16 %v3372
      %v3429 = vunpack.c.l.b16 %v3373
      %v3430 = vunpack.c.l.b16 %v3374
      %v3431 = vunpack.c.l.b16 %v3375
      %v3432 = vunpack.c.l.b16 %v3376
      %v3433 = vunpack.c.l.b16 %v3377
      %v3434 = vunpack.c.l.b16 %v3378
      %v3435 = vunpack.c.l.b16 %v3379
      %v3436 = vunpack.c.l.b16 %v3380
      %v3437 = vunpack.c.l.b16 %v3381
      %v3438 = vpack.c.b16 %v3423, %v3422
      %v3439 = vpack.c.b16 %v3425, %v3424
      %v3440 = vpack.c.b16 %v3427, %v3426
      %v3441 = vpack.c.b16 %v3429, %v3428
      %v3442 = vpack.c.b16 %v3431, %v3430
      %v3443 = vpack.c.b16 %v3433, %v3432
      %v3444 = vpack.c.b16 %v3435, %v3434
      %v3445 = vpack.c.b16 %v3437, %v3436
      %3454 = vmatprep.subr.bf16.mxu0 0
      %3455 = vmatpush1.bf16.msra.mxu0 %v3438
      %3456 = vmatprep.subr.bf16.mxu0 0
      %3457 = vmatpush1.bf16.msra.mxu0 %v3439
      %3458 = vmatprep.subr.bf16.mxu0 0
      %3459 = vmatpush1.bf16.msra.mxu0 %v3440
      %3460 = vmatprep.subr.bf16.mxu0 0
      %3461 = vmatpush1.bf16.msra.mxu0 %v3441
      %3462 = vmatprep.subr.bf16.mxu0 0
      %3463 = vmatpush1.bf16.msra.mxu0 %v3442
      %3464 = vmatprep.subr.bf16.mxu0 0
      %3465 = vmatpush1.bf16.msra.mxu0 %v3443
      %3466 = vmatprep.subr.bf16.mxu0 0
      %3467 = vmatpush1.bf16.msra.mxu0 %v3444
      %3468 = vmatprep.subr.bf16.mxu0 0
      %3469 = vmatpush1.bf16.msra.mxu0 %v3445
      %3470 = vmatprep.subr.bf16.mxu0 0
      %3471 = vmatpush1.bf16.msra.mxu0 0
      %3472 = vmatprep.subr.bf16.mxu0 0
      %3473 = vmatpush1.bf16.msra.mxu0 0
      %3474 = vmatprep.subr.bf16.mxu0 0
      %3475 = vmatpush1.bf16.msra.mxu0 0
      %3476 = vmatprep.subr.bf16.mxu0 0
      %3477 = vmatpush1.bf16.msra.mxu0 0
      %3478 = vmatprep.subr.bf16.mxu0 0
      %3479 = vmatpush1.bf16.msra.mxu0 0
      %3480 = vmatprep.subr.bf16.mxu0 0
      %3481 = vmatpush1.bf16.msra.mxu0 0
      %3482 = vmatprep.subr.bf16.mxu0 0
      %3483 = vmatpush1.bf16.msra.mxu0 0
      %3484 = vmatprep.subr.bf16.mxu0 0
      %3485 = vmatpush1.bf16.msra.mxu0 0
      %3486 = vmatprep.mubr.bf16.mxu0 0
      %3487 = vmatmul.mubr.bf16.gmra.mrb[0].mxu0 %v3398
      %v3488 = vpop.f32.mrb[0].mxu0
      %v3489 = vadd.f32 0.0, %v3488
      %v3490 = vpop.f32.mrb[0].mxu0
      %v3491 = vpop.f32.mrb[0].mxu0
      %v3492 = vadd.f32 0.0, %v3491
      %v3493 = vpop.f32.mrb[0].mxu0
      %3494 = vmatprep.mubr.bf16.mxu0 0
      %3495 = vmatmul.mubr.bf16.gmra.mrb[0].mxu0 %v3399
      %v3496 = vpop.f32.mrb[0].mxu0
      %v3497 = vadd.f32 0.0, %v3496
      %v3498 = vpop.f32.mrb[0].mxu0
      %v3499 = vpop.f32.mrb[0].mxu0
      %v3500 = vadd.f32 0.0, %v3499
      %v3501 = vpop.f32.mrb[0].mxu0
      %3502 = vmatprep.mubr.bf16.mxu0 0
      %3503 = vmatmul.mubr.bf16.gmra.mrb[0].mxu0 %v3400
      %v3504 = vpop.f32.mrb[0].mxu0
      %v3505 = vadd.f32 0.0, %v3504
      %v3506 = vpop.f32.mrb[0].mxu0
      %v3507 = vpop.f32.mrb[0].mxu0
      %v3508 = vadd.f32 0.0, %v3507
      %v3509 = vpop.f32.mrb[0].mxu0
      %3510 = vmatprep.mubr.bf16.mxu0 0
      %3511 = vmatmul.mubr.bf16.gmra.mrb[0].mxu0 %v3401
      %v3512 = vpop.f32.mrb[0].mxu0
      %v3513 = vadd.f32 0.0, %v3512
      %v3514 = vpop.f32.mrb[0].mxu0
      %v3515 = vpop.f32.mrb[0].mxu0
      %v3516 = vadd.f32 0.0, %v3515
      %v3517 = vpop.f32.mrb[0].mxu0
      %3518 = vdwg.mxu0
      %v3519 = vadd.f32 %v3349, %v3489
      %v3520 = vadd.f32 %v3350, %v3492
      %v3521 = vadd.f32 %v3351, %v3497
      %v3522 = vadd.f32 %v3352, %v3500
      %v3523 = vadd.f32 %v3353, %v3505
      %v3524 = vadd.f32 %v3354, %v3508
      %v3525 = vadd.f32 %v3355, %v3513
      %v3526 = vadd.f32 %v3356, %v3516
      %v3527 = vld [vmem:[%s2665] sm:$0xf]
      %v3528 = vld [vmem:[%s2665 + $0x4] sm:$0x1]
      %v3529 = vld [vmem:[%s2665 + $0x8] sm:$0xf]
      %v3530 = vld [vmem:[%s2665 + $0xc] sm:$0x1]
      %v3531 = vld [vmem:[%s2665 + $0x10] sm:$0xf]
      %v3532 = vld [vmem:[%s2665 + $0x14] sm:$0x1]
      %v3533 = vld [vmem:[%s2665 + $0x18] sm:$0xf]
      %v3534 = vld [vmem:[%s2665 + $0x1c] sm:$0x1]
      %v3535 = vld [vmem:[%s2665 + $0x20] sm:$0xf]
      %v3536 = vld [vmem:[%s2665 + $0x24] sm:$0x1]
      %v3537 = vld [vmem:[%s2665 + $0x28] sm:$0xf]
      %v3538 = vld [vmem:[%s2665 + $0x2c] sm:$0x1]
      %v3539 = vld [vmem:[%s2665 + $0x30] sm:$0xf]
      %v3540 = vld [vmem:[%s2665 + $0x34] sm:$0x1]
      %v3541 = vld [vmem:[%s2665 + $0x38] sm:$0xf]
      %v3542 = vld [vmem:[%s2665 + $0x3c] sm:$0x1]
      %v3544 = vshrl.u32 %v3527, 16
      %v3546 = vrot.slane %v3544, 4
      %v3547 = vshll.u32 %v3527, 16
      %v3549 = vrot.slane %v3547, 5
      %v3550 = vor.u32 %v3546, %v3549
      %v3551 = vrot.slane %v3550, 4
      %v3553 = vshll.u32 %v3528, 16
      %v3555 = vrot.slane %v3553, 5
      %v3556 = vsel %vm595, %v3551, %v3555
      %v3558 = vshrl.u32 %v3529, 16
      %v3560 = vrot.slane %v3558, 4
      %v3561 = vshll.u32 %v3529, 16
      %v3563 = vrot.slane %v3561, 5
      %v3564 = vor.u32 %v3560, %v3563
      %v3565 = vrot.slane %v3564, 4
      %v3567 = vshll.u32 %v3530, 16
      %v3569 = vrot.slane %v3567, 5
      %v3570 = vsel %vm595, %v3565, %v3569
      %v3572 = vshrl.u32 %v3531, 16
      %v3574 = vrot.slane %v3572, 4
      %v3575 = vshll.u32 %v3531, 16
      %v3577 = vrot.slane %v3575, 5
      %v3578 = vor.u32 %v3574, %v3577
      %v3579 = vrot.slane %v3578, 4
      %v3581 = vshll.u32 %v3532, 16
      %v3583 = vrot.slane %v3581, 5
      %v3584 = vsel %vm595, %v3579, %v3583
      %v3586 = vshrl.u32 %v3533, 16
      %v3588 = vrot.slane %v3586, 4
      %v3589 = vshll.u32 %v3533, 16
      %v3591 = vrot.slane %v3589, 5
      %v3592 = vor.u32 %v3588, %v3591
      %v3593 = vrot.slane %v3592, 4
      %v3595 = vshll.u32 %v3534, 16
      %v3597 = vrot.slane %v3595, 5
      %v3598 = vsel %vm595, %v3593, %v3597
      %v3600 = vshrl.u32 %v3535, 16
      %v3602 = vrot.slane %v3600, 4
      %v3603 = vshll.u32 %v3535, 16
      %v3605 = vrot.slane %v3603, 5
      %v3606 = vor.u32 %v3602, %v3605
      %v3607 = vrot.slane %v3606, 4
      %v3609 = vshll.u32 %v3536, 16
      %v3611 = vrot.slane %v3609, 5
      %v3612 = vsel %vm595, %v3607, %v3611
      %v3614 = vshrl.u32 %v3537, 16
      %v3616 = vrot.slane %v3614, 4
      %v3617 = vshll.u32 %v3537, 16
      %v3619 = vrot.slane %v3617, 5
      %v3620 = vor.u32 %v3616, %v3619
      %v3621 = vrot.slane %v3620, 4
      %v3623 = vshll.u32 %v3538, 16
      %v3625 = vrot.slane %v3623, 5
      %v3626 = vsel %vm595, %v3621, %v3625
      %v3628 = vshrl.u32 %v3539, 16
      %v3630 = vrot.slane %v3628, 4
      %v3631 = vshll.u32 %v3539, 16
      %v3633 = vrot.slane %v3631, 5
      %v3634 = vor.u32 %v3630, %v3633
      %v3635 = vrot.slane %v3634, 4
      %v3637 = vshll.u32 %v3540, 16
      %v3639 = vrot.slane %v3637, 5
      %v3640 = vsel %vm595, %v3635, %v3639
      %v3642 = vshrl.u32 %v3541, 16
      %v3644 = vrot.slane %v3642, 4
      %v3645 = vshll.u32 %v3541, 16
      %v3647 = vrot.slane %v3645, 5
      %v3648 = vor.u32 %v3644, %v3647
      %v3649 = vrot.slane %v3648, 4
      %v3651 = vshll.u32 %v3542, 16
      %v3653 = vrot.slane %v3651, 5
      %v3654 = vsel %vm595, %v3649, %v3653
      %s3655 = scalar_lea.vmem %s296, 256
      %v3656 = vld [vmem:[%s3655] sm:$0xf]
      %v3657 = vld [vmem:[%s3655 + $0x4] sm:$0xf]
      %v3658 = vld [vmem:[%s3655 + $0x8] sm:$0xf]
      %v3659 = vld [vmem:[%s3655 + $0xc] sm:$0xf]
      %v3660 = vld [vmem:[%s3655 + $0x10] sm:$0xf]
      %v3661 = vld [vmem:[%s3655 + $0x14] sm:$0xf]
      %v3662 = vld [vmem:[%s3655 + $0x18] sm:$0xf]
      %v3663 = vld [vmem:[%s3655 + $0x1c] sm:$0xf]
      %v3664 = vld [vmem:[%s3655 + $0x20] sm:$0xf]
      %v3665 = vld [vmem:[%s3655 + $0x24] sm:$0xf]
      %v3666 = vld [vmem:[%s3655 + $0x28] sm:$0xf]
      %v3667 = vld [vmem:[%s3655 + $0x2c] sm:$0xf]
      %v3668 = vld [vmem:[%s3655 + $0x30] sm:$0xf]
      %v3669 = vld [vmem:[%s3655 + $0x34] sm:$0xf]
      %v3670 = vld [vmem:[%s3655 + $0x38] sm:$0xf]
      %v3671 = vld [vmem:[%s3655 + $0x3c] sm:$0xf]
      %v3672 = vunpack.c.l.b16 %v3556
      %v3673 = vunpack.c.l.b16 %v3570
      %v3674 = vunpack.c.l.b16 %v3584
      %v3675 = vunpack.c.l.b16 %v3598
      %v3676 = vunpack.c.l.b16 %v3612
      %v3677 = vunpack.c.l.b16 %v3626
      %v3678 = vunpack.c.l.b16 %v3640
      %v3679 = vunpack.c.l.b16 %v3654
      %v3680 = vpack.c.b16 %v3673, %v3672
      %v3681 = vpack.c.b16 %v3675, %v3674
      %v3682 = vpack.c.b16 %v3677, %v3676
      %v3683 = vpack.c.b16 %v3679, %v3678
      %v3704 = vunpack.c.l.b16 %v3656
      %v3705 = vunpack.c.l.b16 %v3657
      %v3706 = vunpack.c.l.b16 %v3658
      %v3707 = vunpack.c.l.b16 %v3659
      %v3708 = vunpack.c.l.b16 %v3660
      %v3709 = vunpack.c.l.b16 %v3661
      %v3710 = vunpack.c.l.b16 %v3662
      %v3711 = vunpack.c.l.b16 %v3663
      %v3712 = vunpack.c.l.b16 %v3664
      %v3713 = vunpack.c.l.b16 %v3665
      %v3714 = vunpack.c.l.b16 %v3666
      %v3715 = vunpack.c.l.b16 %v3667
      %v3716 = vunpack.c.l.b16 %v3668
      %v3717 = vunpack.c.l.b16 %v3669
      %v3718 = vunpack.c.l.b16 %v3670
      %v3719 = vunpack.c.l.b16 %v3671
      %v3720 = vpack.c.b16 %v3705, %v3704
      %v3721 = vpack.c.b16 %v3707, %v3706
      %v3722 = vpack.c.b16 %v3709, %v3708
      %v3723 = vpack.c.b16 %v3711, %v3710
      %v3724 = vpack.c.b16 %v3713, %v3712
      %v3725 = vpack.c.b16 %v3715, %v3714
      %v3726 = vpack.c.b16 %v3717, %v3716
      %v3727 = vpack.c.b16 %v3719, %v3718
      %3736 = vmatprep.subr.bf16.mxu0 0
      %3737 = vmatpush1.bf16.msra.mxu0 %v3720
      %3738 = vmatprep.subr.bf16.mxu0 0
      %3739 = vmatpush1.bf16.msra.mxu0 %v3721
      %3740 = vmatprep.subr.bf16.mxu0 0
      %3741 = vmatpush1.bf16.msra.mxu0 %v3722
      %3742 = vmatprep.subr.bf16.mxu0 0
      %3743 = vmatpush1.bf16.msra.mxu0 %v3723
      %3744 = vmatprep.subr.bf16.mxu0 0
      %3745 = vmatpush1.bf16.msra.mxu0 %v3724
      %3746 = vmatprep.subr.bf16.mxu0 0
      %3747 = vmatpush1.bf16.msra.mxu0 %v3725
      %3748 = vmatprep.subr.bf16.mxu0 0
      %3749 = vmatpush1.bf16.msra.mxu0 %v3726
      %3750 = vmatprep.subr.bf16.mxu0 0
      %3751 = vmatpush1.bf16.msra.mxu0 %v3727
      %3752 = vmatprep.subr.bf16.mxu0 0
      %3753 = vmatpush1.bf16.msra.mxu0 0
      %3754 = vmatprep.subr.bf16.mxu0 0
      %3755 = vmatpush1.bf16.msra.mxu0 0
      %3756 = vmatprep.subr.bf16.mxu0 0
      %3757 = vmatpush1.bf16.msra.mxu0 0
      %3758 = vmatprep.subr.bf16.mxu0 0
      %3759 = vmatpush1.bf16.msra.mxu0 0
      %3760 = vmatprep.subr.bf16.mxu0 0
      %3761 = vmatpush1.bf16.msra.mxu0 0
      %3762 = vmatprep.subr.bf16.mxu0 0
      %3763 = vmatpush1.bf16.msra.mxu0 0
      %3764 = vmatprep.subr.bf16.mxu0 0
      %3765 = vmatpush1.bf16.msra.mxu0 0
      %3766 = vmatprep.subr.bf16.mxu0 0
      %3767 = vmatpush1.bf16.msra.mxu0 0
      %3768 = vmatprep.mubr.bf16.mxu0 0
      %3769 = vmatmul.mubr.bf16.gmra.mrb[0].mxu0 %v3680
      %v3770 = vpop.f32.mrb[0].mxu0
      %v3771 = vadd.f32 0.0, %v3770
      %v3772 = vpop.f32.mrb[0].mxu0
      %v3773 = vpop.f32.mrb[0].mxu0
      %v3774 = vadd.f32 0.0, %v3773
      %v3775 = vpop.f32.mrb[0].mxu0
      %3776 = vmatprep.mubr.bf16.mxu0 0
      %3777 = vmatmul.mubr.bf16.gmra.mrb[0].mxu0 %v3681
      %v3778 = vpop.f32.mrb[0].mxu0
      %v3779 = vadd.f32 0.0, %v3778
      %v3780 = vpop.f32.mrb[0].mxu0
      %v3781 = vpop.f32.mrb[0].mxu0
      %v3782 = vadd.f32 0.0, %v3781
      %v3783 = vpop.f32.mrb[0].mxu0
      %3784 = vmatprep.mubr.bf16.mxu0 0
      %3785 = vmatmul.mubr.bf16.gmra.mrb[0].mxu0 %v3682
      %v3786 = vpop.f32.mrb[0].mxu0
      %v3787 = vadd.f32 0.0, %v3786
      %v3788 = vpop.f32.mrb[0].mxu0
      %v3789 = vpop.f32.mrb[0].mxu0
      %v3790 = vadd.f32 0.0, %v3789
      %v3791 = vpop.f32.mrb[0].mxu0
      %3792 = vmatprep.mubr.bf16.mxu0 0
      %3793 = vmatmul.mubr.bf16.gmra.mrb[0].mxu0 %v3683
      %v3794 = vpop.f32.mrb[0].mxu0
      %v3795 = vadd.f32 0.0, %v3794
      %v3796 = vpop.f32.mrb[0].mxu0
      %v3797 = vpop.f32.mrb[0].mxu0
      %v3798 = vadd.f32 0.0, %v3797
      %v3799 = vpop.f32.mrb[0].mxu0
      %3800 = vdwg.mxu0
      %v3801 = vadd.f32 %v3519, %v3771
      %v3802 = vadd.f32 %v3520, %v3774
      %v3803 = vadd.f32 %v3521, %v3779
      %v3804 = vadd.f32 %v3522, %v3782
      %v3805 = vadd.f32 %v3523, %v3787
      %v3806 = vadd.f32 %v3524, %v3790
      %v3807 = vadd.f32 %v3525, %v3795
      %v3808 = vadd.f32 %v3526, %v3798
      %v3809 = vld [vmem:[%s2665] sm:$0xe]
      %v3810 = vld [vmem:[%s2665 + $0x8] sm:$0xe]
      %v3811 = vld [vmem:[%s2665 + $0x10] sm:$0xe]
      %v3812 = vld [vmem:[%s2665 + $0x18] sm:$0xe]
      %v3813 = vld [vmem:[%s2665 + $0x20] sm:$0xe]
      %v3814 = vld [vmem:[%s2665 + $0x28] sm:$0xe]
      %v3815 = vld [vmem:[%s2665 + $0x30] sm:$0xe]
      %v3816 = vld [vmem:[%s2665 + $0x38] sm:$0xe]
      %v3833 = vrot.slane %v3809, 5
      %v3834 = vrot.slane %v3833, 4
      %v3835 = vrot.slane %v3528, 5
      %v3836 = vsel %vm1017, %v3834, %v3835
      %v3837 = vrot.slane %v3810, 5
      %v3838 = vrot.slane %v3837, 4
      %v3839 = vrot.slane %v3530, 5
      %v3840 = vsel %vm1017, %v3838, %v3839
      %v3841 = vrot.slane %v3811, 5
      %v3842 = vrot.slane %v3841, 4
      %v3843 = vrot.slane %v3532, 5
      %v3844 = vsel %vm1017, %v3842, %v3843
      %v3845 = vrot.slane %v3812, 5
      %v3846 = vrot.slane %v3845, 4
      %v3847 = vrot.slane %v3534, 5
      %v3848 = vsel %vm1017, %v3846, %v3847
      %v3849 = vrot.slane %v3813, 5
      %v3850 = vrot.slane %v3849, 4
      %v3851 = vrot.slane %v3536, 5
      %v3852 = vsel %vm1017, %v3850, %v3851
      %v3853 = vrot.slane %v3814, 5
      %v3854 = vrot.slane %v3853, 4
      %v3855 = vrot.slane %v3538, 5
      %v3856 = vsel %vm1017, %v3854, %v3855
      %v3857 = vrot.slane %v3815, 5
      %v3858 = vrot.slane %v3857, 4
      %v3859 = vrot.slane %v3540, 5
      %v3860 = vsel %vm1017, %v3858, %v3859
      %v3861 = vrot.slane %v3816, 5
      %v3862 = vrot.slane %v3861, 4
      %v3863 = vrot.slane %v3542, 5
      %v3864 = vsel %vm1017, %v3862, %v3863
      %s3865 = scalar_lea.vmem %s296, 320
      %v3866 = vld [vmem:[%s3865] sm:$0xf]
      %v3867 = vld [vmem:[%s3865 + $0x4] sm:$0xf]
      %v3868 = vld [vmem:[%s3865 + $0x8] sm:$0xf]
      %v3869 = vld [vmem:[%s3865 + $0xc] sm:$0xf]
      %v3870 = vld [vmem:[%s3865 + $0x10] sm:$0xf]
      %v3871 = vld [vmem:[%s3865 + $0x14] sm:$0xf]
      %v3872 = vld [vmem:[%s3865 + $0x18] sm:$0xf]
      %v3873 = vld [vmem:[%s3865 + $0x1c] sm:$0xf]
      %v3874 = vld [vmem:[%s3865 + $0x20] sm:$0xf]
      %v3875 = vld [vmem:[%s3865 + $0x24] sm:$0xf]
      %v3876 = vld [vmem:[%s3865 + $0x28] sm:$0xf]
      %v3877 = vld [vmem:[%s3865 + $0x2c] sm:$0xf]
      %v3878 = vld [vmem:[%s3865 + $0x30] sm:$0xf]
      %v3879 = vld [vmem:[%s3865 + $0x34] sm:$0xf]
      %v3880 = vld [vmem:[%s3865 + $0x38] sm:$0xf]
      %v3881 = vld [vmem:[%s3865 + $0x3c] sm:$0xf]
      %v3882 = vunpack.c.l.b16 %v3836
      %v3883 = vunpack.c.l.b16 %v3840
      %v3884 = vunpack.c.l.b16 %v3844
      %v3885 = vunpack.c.l.b16 %v3848
      %v3886 = vunpack.c.l.b16 %v3852
      %v3887 = vunpack.c.l.b16 %v3856
      %v3888 = vunpack.c.l.b16 %v3860
      %v3889 = vunpack.c.l.b16 %v3864
      %v3890 = vpack.c.b16 %v3883, %v3882
      %v3891 = vpack.c.b16 %v3885, %v3884
      %v3892 = vpack.c.b16 %v3887, %v3886
      %v3893 = vpack.c.b16 %v3889, %v3888
      %v3914 = vunpack.c.l.b16 %v3866
      %v3915 = vunpack.c.l.b16 %v3867
      %v3916 = vunpack.c.l.b16 %v3868
      %v3917 = vunpack.c.l.b16 %v3869
      %v3918 = vunpack.c.l.b16 %v3870
      %v3919 = vunpack.c.l.b16 %v3871
      %v3920 = vunpack.c.l.b16 %v3872
      %v3921 = vunpack.c.l.b16 %v3873
      %v3922 = vunpack.c.l.b16 %v3874
      %v3923 = vunpack.c.l.b16 %v3875
      %v3924 = vunpack.c.l.b16 %v3876
      %v3925 = vunpack.c.l.b16 %v3877
      %v3926 = vunpack.c.l.b16 %v3878
      %v3927 = vunpack.c.l.b16 %v3879
      %v3928 = vunpack.c.l.b16 %v3880
      %v3929 = vunpack.c.l.b16 %v3881
      %v3930 = vpack.c.b16 %v3915, %v3914
      %v3931 = vpack.c.b16 %v3917, %v3916
      %v3932 = vpack.c.b16 %v3919, %v3918
      %v3933 = vpack.c.b16 %v3921, %v3920
      %v3934 = vpack.c.b16 %v3923, %v3922
      %v3935 = vpack.c.b16 %v3925, %v3924
      %v3936 = vpack.c.b16 %v3927, %v3926
      %v3937 = vpack.c.b16 %v3929, %v3928
      %3946 = vmatprep.subr.bf16.mxu0 0
      %3947 = vmatpush1.bf16.msra.mxu0 %v3930
      %3948 = vmatprep.subr.bf16.mxu0 0
      %3949 = vmatpush1.bf16.msra.mxu0 %v3931
      %3950 = vmatprep.subr.bf16.mxu0 0
      %3951 = vmatpush1.bf16.msra.mxu0 %v3932
      %3952 = vmatprep.subr.bf16.mxu0 0
      %3953 = vmatpush1.bf16.msra.mxu0 %v3933
      %3954 = vmatprep.subr.bf16.mxu0 0
      %3955 = vmatpush1.bf16.msra.mxu0 %v3934
      %3956 = vmatprep.subr.bf16.mxu0 0
      %3957 = vmatpush1.bf16.msra.mxu0 %v3935
      %3958 = vmatprep.subr.bf16.mxu0 0
      %3959 = vmatpush1.bf16.msra.mxu0 %v3936
      %3960 = vmatprep.subr.bf16.mxu0 0
      %3961 = vmatpush1.bf16.msra.mxu0 %v3937
      %3962 = vmatprep.subr.bf16.mxu0 0
      %3963 = vmatpush1.bf16.msra.mxu0 0
      %3964 = vmatprep.subr.bf16.mxu0 0
      %3965 = vmatpush1.bf16.msra.mxu0 0
      %3966 = vmatprep.subr.bf16.mxu0 0
      %3967 = vmatpush1.bf16.msra.mxu0 0
      %3968 = vmatprep.subr.bf16.mxu0 0
      %3969 = vmatpush1.bf16.msra.mxu0 0
      %3970 = vmatprep.subr.bf16.mxu0 0
      %3971 = vmatpush1.bf16.msra.mxu0 0
      %3972 = vmatprep.subr.bf16.mxu0 0
      %3973 = vmatpush1.bf16.msra.mxu0 0
      %3974 = vmatprep.subr.bf16.mxu0 0
      %3975 = vmatpush1.bf16.msra.mxu0 0
      %3976 = vmatprep.subr.bf16.mxu0 0
      %3977 = vmatpush1.bf16.msra.mxu0 0
      %3978 = vmatprep.mubr.bf16.mxu0 0
      %3979 = vmatmul.mubr.bf16.gmra.mrb[0].mxu0 %v3890
      %v3980 = vpop.f32.mrb[0].mxu0
      %v3981 = vadd.f32 0.0, %v3980
      %v3982 = vpop.f32.mrb[0].mxu0
      %v3983 = vpop.f32.mrb[0].mxu0
      %v3984 = vadd.f32 0.0, %v3983
      %v3985 = vpop.f32.mrb[0].mxu0
      %3986 = vmatprep.mubr.bf16.mxu0 0
      %3987 = vmatmul.mubr.bf16.gmra.mrb[0].mxu0 %v3891
      %v3988 = vpop.f32.mrb[0].mxu0
      %v3989 = vadd.f32 0.0, %v3988
      %v3990 = vpop.f32.mrb[0].mxu0
      %v3991 = vpop.f32.mrb[0].mxu0
      %v3992 = vadd.f32 0.0, %v3991
      %v3993 = vpop.f32.mrb[0].mxu0
      %3994 = vmatprep.mubr.bf16.mxu0 0
      %3995 = vmatmul.mubr.bf16.gmra.mrb[0].mxu0 %v3892
      %v3996 = vpop.f32.mrb[0].mxu0
      %v3997 = vadd.f32 0.0, %v3996
      %v3998 = vpop.f32.mrb[0].mxu0
      %v3999 = vpop.f32.mrb[0].mxu0
      %v4000 = vadd.f32 0.0, %v3999
      %v4001 = vpop.f32.mrb[0].mxu0
      %4002 = vmatprep.mubr.bf16.mxu0 0
      %4003 = vmatmul.mubr.bf16.gmra.mrb[0].mxu0 %v3893
      %v4004 = vpop.f32.mrb[0].mxu0
      %v4005 = vadd.f32 0.0, %v4004
      %v4006 = vpop.f32.mrb[0].mxu0
      %v4007 = vpop.f32.mrb[0].mxu0
      %v4008 = vadd.f32 0.0, %v4007
      %v4009 = vpop.f32.mrb[0].mxu0
      %4010 = vdwg.mxu0
      %v4011 = vadd.f32 %v3801, %v3981
      %v4012 = vadd.f32 %v3802, %v3984
      %v4013 = vadd.f32 %v3803, %v3989
      %v4014 = vadd.f32 %v3804, %v3992
      %v4015 = vadd.f32 %v3805, %v3997
      %v4016 = vadd.f32 %v3806, %v4000
      %v4017 = vadd.f32 %v3807, %v4005
      %v4018 = vadd.f32 %v3808, %v4008
      %s4019 = scalar_lea.vmem [#allocation3], 16
      %v4020 = vld [vmem:[%s4019] sm:$0xf]
      %v4021 = vld [vmem:[%s4019 + $0x8] sm:$0xf]
      %v4022 = vld [vmem:[%s4019 + $0x10] sm:$0xf]
      %v4023 = vld [vmem:[%s4019 + $0x18] sm:$0xf]
      %v4024 = vld [vmem:[%s4019 + $0x20] sm:$0xf]
      %v4025 = vld [vmem:[%s4019 + $0x28] sm:$0xf]
      %v4026 = vld [vmem:[%s4019 + $0x30] sm:$0xf]
      %v4027 = vld [vmem:[%s4019 + $0x38] sm:$0xf]
      %s4028 = scalar_lea.vmem %s296, 384
      %v4029 = vld [vmem:[%s4028] sm:$0xf]
      %v4030 = vld [vmem:[%s4028 + $0x4] sm:$0xf]
      %v4031 = vld [vmem:[%s4028 + $0x8] sm:$0xf]
      %v4032 = vld [vmem:[%s4028 + $0xc] sm:$0xf]
      %v4033 = vld [vmem:[%s4028 + $0x10] sm:$0xf]
      %v4034 = vld [vmem:[%s4028 + $0x14] sm:$0xf]
      %v4035 = vld [vmem:[%s4028 + $0x18] sm:$0xf]
      %v4036 = vld [vmem:[%s4028 + $0x1c] sm:$0xf]
      %v4037 = vld [vmem:[%s4028 + $0x20] sm:$0xf]
      %v4038 = vld [vmem:[%s4028 + $0x24] sm:$0xf]
      %v4039 = vld [vmem:[%s4028 + $0x28] sm:$0xf]
      %v4040 = vld [vmem:[%s4028 + $0x2c] sm:$0xf]
      %v4041 = vld [vmem:[%s4028 + $0x30] sm:$0xf]
      %v4042 = vld [vmem:[%s4028 + $0x34] sm:$0xf]
      %v4043 = vld [vmem:[%s4028 + $0x38] sm:$0xf]
      %v4044 = vld [vmem:[%s4028 + $0x3c] sm:$0xf]
      %v4053 = vunpack.c.l.b16 %v4020
      %v4054 = vunpack.c.l.b16 %v4021
      %v4055 = vunpack.c.l.b16 %v4022
      %v4056 = vunpack.c.l.b16 %v4023
      %v4057 = vunpack.c.l.b16 %v4024
      %v4058 = vunpack.c.l.b16 %v4025
      %v4059 = vunpack.c.l.b16 %v4026
      %v4060 = vunpack.c.l.b16 %v4027
      %v4061 = vpack.c.b16 %v4054, %v4053
      %v4062 = vpack.c.b16 %v4056, %v4055
      %v4063 = vpack.c.b16 %v4058, %v4057
      %v4064 = vpack.c.b16 %v4060, %v4059
      %v4085 = vunpack.c.l.b16 %v4029
      %v4086 = vunpack.c.l.b16 %v4030
      %v4087 = vunpack.c.l.b16 %v4031
      %v4088 = vunpack.c.l.b16 %v4032
      %v4089 = vunpack.c.l.b16 %v4033
      %v4090 = vunpack.c.l.b16 %v4034
      %v4091 = vunpack.c.l.b16 %v4035
      %v4092 = vunpack.c.l.b16 %v4036
      %v4093 = vunpack.c.l.b16 %v4037
      %v4094 = vunpack.c.l.b16 %v4038
      %v4095 = vunpack.c.l.b16 %v4039
      %v4096 = vunpack.c.l.b16 %v4040
      %v4097 = vunpack.c.l.b16 %v4041
      %v4098 = vunpack.c.l.b16 %v4042
      %v4099 = vunpack.c.l.b16 %v4043
      %v4100 = vunpack.c.l.b16 %v4044
      %v4101 = vpack.c.b16 %v4086, %v4085
      %v4102 = vpack.c.b16 %v4088, %v4087
      %v4103 = vpack.c.b16 %v4090, %v4089
      %v4104 = vpack.c.b16 %v4092, %v4091
      %v4105 = vpack.c.b16 %v4094, %v4093
      %v4106 = vpack.c.b16 %v4096, %v4095
      %v4107 = vpack.c.b16 %v4098, %v4097
      %v4108 = vpack.c.b16 %v4100, %v4099
      %4117 = vmatprep.subr.bf16.mxu0 0
      %4118 = vmatpush1.bf16.msra.mxu0 %v4101
      %4119 = vmatprep.subr.bf16.mxu0 0
      %4120 = vmatpush1.bf16.msra.mxu0 %v4102
      %4121 = vmatprep.subr.bf16.mxu0 0
      %4122 = vmatpush1.bf16.msra.mxu0 %v4103
      %4123 = vmatprep.subr.bf16.mxu0 0
      %4124 = vmatpush1.bf16.msra.mxu0 %v4104
      %4125 = vmatprep.subr.bf16.mxu0 0
      %4126 = vmatpush1.bf16.msra.mxu0 %v4105
      %4127 = vmatprep.subr.bf16.mxu0 0
      %4128 = vmatpush1.bf16.msra.mxu0 %v4106
      %4129 = vmatprep.subr.bf16.mxu0 0
      %4130 = vmatpush1.bf16.msra.mxu0 %v4107
      %4131 = vmatprep.subr.bf16.mxu0 0
      %4132 = vmatpush1.bf16.msra.mxu0 %v4108
      %4133 = vmatprep.subr.bf16.mxu0 0
      %4134 = vmatpush1.bf16.msra.mxu0 0
      %4135 = vmatprep.subr.bf16.mxu0 0
      %4136 = vmatpush1.bf16.msra.mxu0 0
      %4137 = vmatprep.subr.bf16.mxu0 0
      %4138 = vmatpush1.bf16.msra.mxu0 0
      %4139 = vmatprep.subr.bf16.mxu0 0
      %4140 = vmatpush1.bf16.msra.mxu0 0
      %4141 = vmatprep.subr.bf16.mxu0 0
      %4142 = vmatpush1.bf16.msra.mxu0 0
      %4143 = vmatprep.subr.bf16.mxu0 0
      %4144 = vmatpush1.bf16.msra.mxu0 0
      %4145 = vmatprep.subr.bf16.mxu0 0
      %4146 = vmatpush1.bf16.msra.mxu0 0
      %4147 = vmatprep.subr.bf16.mxu0 0
      %4148 = vmatpush1.bf16.msra.mxu0 0
      %4149 = vmatprep.mubr.bf16.mxu0 0
      %4150 = vmatmul.mubr.bf16.gmra.mrb[0].mxu0 %v4061
      %v4151 = vpop.f32.mrb[0].mxu0
      %v4152 = vadd.f32 0.0, %v4151
      %v4153 = vpop.f32.mrb[0].mxu0
      %v4154 = vpop.f32.mrb[0].mxu0
      %v4155 = vadd.f32 0.0, %v4154
      %v4156 = vpop.f32.mrb[0].mxu0
      %4157 = vmatprep.mubr.bf16.mxu0 0
      %4158 = vmatmul.mubr.bf16.gmra.mrb[0].mxu0 %v4062
      %v4159 = vpop.f32.mrb[0].mxu0
      %v4160 = vadd.f32 0.0, %v4159
      %v4161 = vpop.f32.mrb[0].mxu0
      %v4162 = vpop.f32.mrb[0].mxu0
      %v4163 = vadd.f32 0.0, %v4162
      %v4164 = vpop.f32.mrb[0].mxu0
      %4165 = vmatprep.mubr.bf16.mxu0 0
      %4166 = vmatmul.mubr.bf16.gmra.mrb[0].mxu0 %v4063
      %v4167 = vpop.f32.mrb[0].mxu0
      %v4168 = vadd.f32 0.0, %v4167
      %v4169 = vpop.f32.mrb[0].mxu0
      %v4170 = vpop.f32.mrb[0].mxu0
      %v4171 = vadd.f32 0.0, %v4170
      %v4172 = vpop.f32.mrb[0].mxu0
      %4173 = vmatprep.mubr.bf16.mxu0 0
      %4174 = vmatmul.mubr.bf16.gmra.mrb[0].mxu0 %v4064
      %v4175 = vpop.f32.mrb[0].mxu0
      %v4176 = vadd.f32 0.0, %v4175
      %v4177 = vpop.f32.mrb[0].mxu0
      %v4178 = vpop.f32.mrb[0].mxu0
      %v4179 = vadd.f32 0.0, %v4178
      %v4180 = vpop.f32.mrb[0].mxu0
      %4181 = vdwg.mxu0
      %v4182 = vadd.f32 %v4011, %v4152
      %v4183 = vadd.f32 %v4012, %v4155
      %v4184 = vadd.f32 %v4013, %v4160
      %v4185 = vadd.f32 %v4014, %v4163
      %v4186 = vadd.f32 %v4015, %v4168
      %v4187 = vadd.f32 %v4016, %v4171
      %v4188 = vadd.f32 %v4017, %v4176
      %v4189 = vadd.f32 %v4018, %v4179
      %v4190 = vld [vmem:[%s4019] sm:$0xf]
      %v4191 = vld [vmem:[%s4019 + $0x4] sm:$0x1]
      %v4192 = vld [vmem:[%s4019 + $0x8] sm:$0xf]
      %v4193 = vld [vmem:[%s4019 + $0xc] sm:$0x1]
      %v4194 = vld [vmem:[%s4019 + $0x10] sm:$0xf]
      %v4195 = vld [vmem:[%s4019 + $0x14] sm:$0x1]
      %v4196 = vld [vmem:[%s4019 + $0x18] sm:$0xf]
      %v4197 = vld [vmem:[%s4019 + $0x1c] sm:$0x1]
      %v4198 = vld [vmem:[%s4019 + $0x20] sm:$0xf]
      %v4199 = vld [vmem:[%s4019 + $0x24] sm:$0x1]
      %v4200 = vld [vmem:[%s4019 + $0x28] sm:$0xf]
      %v4201 = vld [vmem:[%s4019 + $0x2c] sm:$0x1]
      %v4202 = vld [vmem:[%s4019 + $0x30] sm:$0xf]
      %v4203 = vld [vmem:[%s4019 + $0x34] sm:$0x1]
      %v4204 = vld [vmem:[%s4019 + $0x38] sm:$0xf]
      %v4205 = vld [vmem:[%s4019 + $0x3c] sm:$0x1]
      %v4207 = vshrl.u32 %v4190, 16
      %v4209 = vrot.slane %v4207, 4
      %v4210 = vshll.u32 %v4190, 16
      %v4212 = vrot.slane %v4210, 5
      %v4213 = vor.u32 %v4209, %v4212
      %v4214 = vrot.slane %v4213, 4
      %v4216 = vshll.u32 %v4191, 16
      %v4218 = vrot.slane %v4216, 5
      %v4219 = vsel %vm595, %v4214, %v4218
      %v4221 = vshrl.u32 %v4192, 16
      %v4223 = vrot.slane %v4221, 4
      %v4224 = vshll.u32 %v4192, 16
      %v4226 = vrot.slane %v4224, 5
      %v4227 = vor.u32 %v4223, %v4226
      %v4228 = vrot.slane %v4227, 4
      %v4230 = vshll.u32 %v4193, 16
      %v4232 = vrot.slane %v4230, 5
      %v4233 = vsel %vm595, %v4228, %v4232
      %v4235 = vshrl.u32 %v4194, 16
      %v4237 = vrot.slane %v4235, 4
      %v4238 = vshll.u32 %v4194, 16
      %v4240 = vrot.slane %v4238, 5
      %v4241 = vor.u32 %v4237, %v4240
      %v4242 = vrot.slane %v4241, 4
      %v4244 = vshll.u32 %v4195, 16
      %v4246 = vrot.slane %v4244, 5
      %v4247 = vsel %vm595, %v4242, %v4246
      %v4249 = vshrl.u32 %v4196, 16
      %v4251 = vrot.slane %v4249, 4
      %v4252 = vshll.u32 %v4196, 16
      %v4254 = vrot.slane %v4252, 5
      %v4255 = vor.u32 %v4251, %v4254
      %v4256 = vrot.slane %v4255, 4
      %v4258 = vshll.u32 %v4197, 16
      %v4260 = vrot.slane %v4258, 5
      %v4261 = vsel %vm595, %v4256, %v4260
      %v4263 = vshrl.u32 %v4198, 16
      %v4265 = vrot.slane %v4263, 4
      %v4266 = vshll.u32 %v4198, 16
      %v4268 = vrot.slane %v4266, 5
      %v4269 = vor.u32 %v4265, %v4268
      %v4270 = vrot.slane %v4269, 4
      %v4272 = vshll.u32 %v4199, 16
      %v4274 = vrot.slane %v4272, 5
      %v4275 = vsel %vm595, %v4270, %v4274
      %v4277 = vshrl.u32 %v4200, 16
      %v4279 = vrot.slane %v4277, 4
      %v4280 = vshll.u32 %v4200, 16
      %v4282 = vrot.slane %v4280, 5
      %v4283 = vor.u32 %v4279, %v4282
      %v4284 = vrot.slane %v4283, 4
      %v4286 = vshll.u32 %v4201, 16
      %v4288 = vrot.slane %v4286, 5
      %v4289 = vsel %vm595, %v4284, %v4288
      %v4291 = vshrl.u32 %v4202, 16
      %v4293 = vrot.slane %v4291, 4
      %v4294 = vshll.u32 %v4202, 16
      %v4296 = vrot.slane %v4294, 5
      %v4297 = vor.u32 %v4293, %v4296
      %v4298 = vrot.slane %v4297, 4
      %v4300 = vshll.u32 %v4203, 16
      %v4302 = vrot.slane %v4300, 5
      %v4303 = vsel %vm595, %v4298, %v4302
      %v4305 = vshrl.u32 %v4204, 16
      %v4307 = vrot.slane %v4305, 4
      %v4308 = vshll.u32 %v4204, 16
      %v4310 = vrot.slane %v4308, 5
      %v4311 = vor.u32 %v4307, %v4310
      %v4312 = vrot.slane %v4311, 4
      %v4314 = vshll.u32 %v4205, 16
      %v4316 = vrot.slane %v4314, 5
      %v4317 = vsel %vm595, %v4312, %v4316
      %s4318 = scalar_lea.vmem %s296, 448
      %v4319 = vld [vmem:[%s4318] sm:$0xf]
      %v4320 = vld [vmem:[%s4318 + $0x4] sm:$0xf]
      %v4321 = vld [vmem:[%s4318 + $0x8] sm:$0xf]
      %v4322 = vld [vmem:[%s4318 + $0xc] sm:$0xf]
      %v4323 = vld [vmem:[%s4318 + $0x10] sm:$0xf]
      %v4324 = vld [vmem:[%s4318 + $0x14] sm:$0xf]
      %v4325 = vld [vmem:[%s4318 + $0x18] sm:$0xf]
      %v4326 = vld [vmem:[%s4318 + $0x1c] sm:$0xf]
      %v4327 = vld [vmem:[%s4318 + $0x20] sm:$0xf]
      %v4328 = vld [vmem:[%s4318 + $0x24] sm:$0xf]
      %v4329 = vld [vmem:[%s4318 + $0x28] sm:$0xf]
      %v4330 = vld [vmem:[%s4318 + $0x2c] sm:$0xf]
      %v4331 = vld [vmem:[%s4318 + $0x30] sm:$0xf]
      %v4332 = vld [vmem:[%s4318 + $0x34] sm:$0xf]
      %v4333 = vld [vmem:[%s4318 + $0x38] sm:$0xf]
      %v4334 = vld [vmem:[%s4318 + $0x3c] sm:$0xf]
      %v4335 = vunpack.c.l.b16 %v4219
      %v4336 = vunpack.c.l.b16 %v4233
      %v4337 = vunpack.c.l.b16 %v4247
      %v4338 = vunpack.c.l.b16 %v4261
      %v4339 = vunpack.c.l.b16 %v4275
      %v4340 = vunpack.c.l.b16 %v4289
      %v4341 = vunpack.c.l.b16 %v4303
      %v4342 = vunpack.c.l.b16 %v4317
      %v4343 = vpack.c.b16 %v4336, %v4335
      %v4344 = vpack.c.b16 %v4338, %v4337
      %v4345 = vpack.c.b16 %v4340, %v4339
      %v4346 = vpack.c.b16 %v4342, %v4341
      %v4367 = vunpack.c.l.b16 %v4319
      %v4368 = vunpack.c.l.b16 %v4320
      %v4369 = vunpack.c.l.b16 %v4321
      %v4370 = vunpack.c.l.b16 %v4322
      %v4371 = vunpack.c.l.b16 %v4323
      %v4372 = vunpack.c.l.b16 %v4324
      %v4373 = vunpack.c.l.b16 %v4325
      %v4374 = vunpack.c.l.b16 %v4326
      %v4375 = vunpack.c.l.b16 %v4327
      %v4376 = vunpack.c.l.b16 %v4328
      %v4377 = vunpack.c.l.b16 %v4329
      %v4378 = vunpack.c.l.b16 %v4330
      %v4379 = vunpack.c.l.b16 %v4331
      %v4380 = vunpack.c.l.b16 %v4332
      %v4381 = vunpack.c.l.b16 %v4333
      %v4382 = vunpack.c.l.b16 %v4334
      %v4383 = vpack.c.b16 %v4368, %v4367
      %v4384 = vpack.c.b16 %v4370, %v4369
      %v4385 = vpack.c.b16 %v4372, %v4371
      %v4386 = vpack.c.b16 %v4374, %v4373
      %v4387 = vpack.c.b16 %v4376, %v4375
      %v4388 = vpack.c.b16 %v4378, %v4377
      %v4389 = vpack.c.b16 %v4380, %v4379
      %v4390 = vpack.c.b16 %v4382, %v4381
      %4399 = vmatprep.subr.bf16.mxu0 0
      %4400 = vmatpush1.bf16.msra.mxu0 %v4383
      %4401 = vmatprep.subr.bf16.mxu0 0
      %4402 = vmatpush1.bf16.msra.mxu0 %v4384
      %4403 = vmatprep.subr.bf16.mxu0 0
      %4404 = vmatpush1.bf16.msra.mxu0 %v4385
      %4405 = vmatprep.subr.bf16.mxu0 0
      %4406 = vmatpush1.bf16.msra.mxu0 %v4386
      %4407 = vmatprep.subr.bf16.mxu0 0
      %4408 = vmatpush1.bf16.msra.mxu0 %v4387
      %4409 = vmatprep.subr.bf16.mxu0 0
      %4410 = vmatpush1.bf16.msra.mxu0 %v4388
      %4411 = vmatprep.subr.bf16.mxu0 0
      %4412 = vmatpush1.bf16.msra.mxu0 %v4389
      %4413 = vmatprep.subr.bf16.mxu0 0
      %4414 = vmatpush1.bf16.msra.mxu0 %v4390
      %4415 = vmatprep.subr.bf16.mxu0 0
      %4416 = vmatpush1.bf16.msra.mxu0 0
      %4417 = vmatprep.subr.bf16.mxu0 0
      %4418 = vmatpush1.bf16.msra.mxu0 0
      %4419 = vmatprep.subr.bf16.mxu0 0
      %4420 = vmatpush1.bf16.msra.mxu0 0
      %4421 = vmatprep.subr.bf16.mxu0 0
      %4422 = vmatpush1.bf16.msra.mxu0 0
      %4423 = vmatprep.subr.bf16.mxu0 0
      %4424 = vmatpush1.bf16.msra.mxu0 0
      %4425 = vmatprep.subr.bf16.mxu0 0
      %4426 = vmatpush1.bf16.msra.mxu0 0
      %4427 = vmatprep.subr.bf16.mxu0 0
      %4428 = vmatpush1.bf16.msra.mxu0 0
      %4429 = vmatprep.subr.bf16.mxu0 0
      %4430 = vmatpush1.bf16.msra.mxu0 0
      %4431 = vmatprep.mubr.bf16.mxu0 0
      %4432 = vmatmul.mubr.bf16.gmra.mrb[0].mxu0 %v4343
      %v4433 = vpop.f32.mrb[0].mxu0
      %v4434 = vadd.f32 0.0, %v4433
      %v4435 = vpop.f32.mrb[0].mxu0
      %v4436 = vpop.f32.mrb[0].mxu0
      %v4437 = vadd.f32 0.0, %v4436
      %v4438 = vpop.f32.mrb[0].mxu0
      %4439 = vmatprep.mubr.bf16.mxu0 0
      %4440 = vmatmul.mubr.bf16.gmra.mrb[0].mxu0 %v4344
      %v4441 = vpop.f32.mrb[0].mxu0
      %v4442 = vadd.f32 0.0, %v4441
      %v4443 = vpop.f32.mrb[0].mxu0
      %v4444 = vpop.f32.mrb[0].mxu0
      %v4445 = vadd.f32 0.0, %v4444
      %v4446 = vpop.f32.mrb[0].mxu0
      %4447 = vmatprep.mubr.bf16.mxu0 0
      %4448 = vmatmul.mubr.bf16.gmra.mrb[0].mxu0 %v4345
      %v4449 = vpop.f32.mrb[0].mxu0
      %v4450 = vadd.f32 0.0, %v4449
      %v4451 = vpop.f32.mrb[0].mxu0
      %v4452 = vpop.f32.mrb[0].mxu0
      %v4453 = vadd.f32 0.0, %v4452
      %v4454 = vpop.f32.mrb[0].mxu0
      %4455 = vmatprep.mubr.bf16.mxu0 0
      %4456 = vmatmul.mubr.bf16.gmra.mrb[0].mxu0 %v4346
      %v4457 = vpop.f32.mrb[0].mxu0
      %v4458 = vadd.f32 0.0, %v4457
      %v4459 = vpop.f32.mrb[0].mxu0
      %v4460 = vpop.f32.mrb[0].mxu0
      %v4461 = vadd.f32 0.0, %v4460
      %v4462 = vpop.f32.mrb[0].mxu0
      %4463 = vdwg.mxu0
      %v4464 = vadd.f32 %v4182, %v4434
      %v4465 = vadd.f32 %v4183, %v4437
      %v4466 = vadd.f32 %v4184, %v4442
      %v4467 = vadd.f32 %v4185, %v4445
      %v4468 = vadd.f32 %v4186, %v4450
      %v4469 = vadd.f32 %v4187, %v4453
      %v4470 = vadd.f32 %v4188, %v4458
      %v4471 = vadd.f32 %v4189, %v4461
      %v4472 = vld [vmem:[%s4019] sm:$0xe]
      %v4473 = vld [vmem:[%s4019 + $0x8] sm:$0xe]
      %v4474 = vld [vmem:[%s4019 + $0x10] sm:$0xe]
      %v4475 = vld [vmem:[%s4019 + $0x18] sm:$0xe]
      %v4476 = vld [vmem:[%s4019 + $0x20] sm:$0xe]
      %v4477 = vld [vmem:[%s4019 + $0x28] sm:$0xe]
      %v4478 = vld [vmem:[%s4019 + $0x30] sm:$0xe]
      %v4479 = vld [vmem:[%s4019 + $0x38] sm:$0xe]
      %v4496 = vrot.slane %v4472, 5
      %v4497 = vrot.slane %v4496, 4
      %v4498 = vrot.slane %v4191, 5
      %v4499 = vsel %vm1017, %v4497, %v4498
      %v4500 = vrot.slane %v4473, 5
      %v4501 = vrot.slane %v4500, 4
      %v4502 = vrot.slane %v4193, 5
      %v4503 = vsel %vm1017, %v4501, %v4502
      %v4504 = vrot.slane %v4474, 5
      %v4505 = vrot.slane %v4504, 4
      %v4506 = vrot.slane %v4195, 5
      %v4507 = vsel %vm1017, %v4505, %v4506
      %v4508 = vrot.slane %v4475, 5
      %v4509 = vrot.slane %v4508, 4
      %v4510 = vrot.slane %v4197, 5
      %v4511 = vsel %vm1017, %v4509, %v4510
      %v4512 = vrot.slane %v4476, 5
      %v4513 = vrot.slane %v4512, 4
      %v4514 = vrot.slane %v4199, 5
      %v4515 = vsel %vm1017, %v4513, %v4514
      %v4516 = vrot.slane %v4477, 5
      %v4517 = vrot.slane %v4516, 4
      %v4518 = vrot.slane %v4201, 5
      %v4519 = vsel %vm1017, %v4517, %v4518
      %v4520 = vrot.slane %v4478, 5
      %v4521 = vrot.slane %v4520, 4
      %v4522 = vrot.slane %v4203, 5
      %v4523 = vsel %vm1017, %v4521, %v4522
      %v4524 = vrot.slane %v4479, 5
      %v4525 = vrot.slane %v4524, 4
      %v4526 = vrot.slane %v4205, 5
      %v4527 = vsel %vm1017, %v4525, %v4526
      %s4528 = scalar_lea.vmem %s296, 512
      %v4529 = vld [vmem:[%s4528] sm:$0xf]
      %v4530 = vld [vmem:[%s4528 + $0x4] sm:$0xf]
      %v4531 = vld [vmem:[%s4528 + $0x8] sm:$0xf]
      %v4532 = vld [vmem:[%s4528 + $0xc] sm:$0xf]
      %v4533 = vld [vmem:[%s4528 + $0x10] sm:$0xf]
      %v4534 = vld [vmem:[%s4528 + $0x14] sm:$0xf]
      %v4535 = vld [vmem:[%s4528 + $0x18] sm:$0xf]
      %v4536 = vld [vmem:[%s4528 + $0x1c] sm:$0xf]
      %v4537 = vld [vmem:[%s4528 + $0x20] sm:$0xf]
      %v4538 = vld [vmem:[%s4528 + $0x24] sm:$0xf]
      %v4539 = vld [vmem:[%s4528 + $0x28] sm:$0xf]
      %v4540 = vld [vmem:[%s4528 + $0x2c] sm:$0xf]
      %v4541 = vld [vmem:[%s4528 + $0x30] sm:$0xf]
      %v4542 = vld [vmem:[%s4528 + $0x34] sm:$0xf]
      %v4543 = vld [vmem:[%s4528 + $0x38] sm:$0xf]
      %v4544 = vld [vmem:[%s4528 + $0x3c] sm:$0xf]
      %v4545 = vunpack.c.l.b16 %v4499
      %v4546 = vunpack.c.l.b16 %v4503
      %v4547 = vunpack.c.l.b16 %v4507
      %v4548 = vunpack.c.l.b16 %v4511
      %v4549 = vunpack.c.l.b16 %v4515
      %v4550 = vunpack.c.l.b16 %v4519
      %v4551 = vunpack.c.l.b16 %v4523
      %v4552 = vunpack.c.l.b16 %v4527
      %v4553 = vpack.c.b16 %v4546, %v4545
      %v4554 = vpack.c.b16 %v4548, %v4547
      %v4555 = vpack.c.b16 %v4550, %v4549
      %v4556 = vpack.c.b16 %v4552, %v4551
      %v4577 = vunpack.c.l.b16 %v4529
      %v4578 = vunpack.c.l.b16 %v4530
      %v4579 = vunpack.c.l.b16 %v4531
      %v4580 = vunpack.c.l.b16 %v4532
      %v4581 = vunpack.c.l.b16 %v4533
      %v4582 = vunpack.c.l.b16 %v4534
      %v4583 = vunpack.c.l.b16 %v4535
      %v4584 = vunpack.c.l.b16 %v4536
      %v4585 = vunpack.c.l.b16 %v4537
      %v4586 = vunpack.c.l.b16 %v4538
      %v4587 = vunpack.c.l.b16 %v4539
      %v4588 = vunpack.c.l.b16 %v4540
      %v4589 = vunpack.c.l.b16 %v4541
      %v4590 = vunpack.c.l.b16 %v4542
      %v4591 = vunpack.c.l.b16 %v4543
      %v4592 = vunpack.c.l.b16 %v4544
      %v4593 = vpack.c.b16 %v4578, %v4577
      %v4594 = vpack.c.b16 %v4580, %v4579
      %v4595 = vpack.c.b16 %v4582, %v4581
      %v4596 = vpack.c.b16 %v4584, %v4583
      %v4597 = vpack.c.b16 %v4586, %v4585
      %v4598 = vpack.c.b16 %v4588, %v4587
      %v4599 = vpack.c.b16 %v4590, %v4589
      %v4600 = vpack.c.b16 %v4592, %v4591
      %4609 = vmatprep.subr.bf16.mxu0 0
      %4610 = vmatpush1.bf16.msra.mxu0 %v4593
      %4611 = vmatprep.subr.bf16.mxu0 0
      %4612 = vmatpush1.bf16.msra.mxu0 %v4594
      %4613 = vmatprep.subr.bf16.mxu0 0
      %4614 = vmatpush1.bf16.msra.mxu0 %v4595
      %4615 = vmatprep.subr.bf16.mxu0 0
      %4616 = vmatpush1.bf16.msra.mxu0 %v4596
      %4617 = vmatprep.subr.bf16.mxu0 0
      %4618 = vmatpush1.bf16.msra.mxu0 %v4597
      %4619 = vmatprep.subr.bf16.mxu0 0
      %4620 = vmatpush1.bf16.msra.mxu0 %v4598
      %4621 = vmatprep.subr.bf16.mxu0 0
      %4622 = vmatpush1.bf16.msra.mxu0 %v4599
      %4623 = vmatprep.subr.bf16.mxu0 0
      %4624 = vmatpush1.bf16.msra.mxu0 %v4600
      %4625 = vmatprep.subr.bf16.mxu0 0
      %4626 = vmatpush1.bf16.msra.mxu0 0
      %4627 = vmatprep.subr.bf16.mxu0 0
      %4628 = vmatpush1.bf16.msra.mxu0 0
      %4629 = vmatprep.subr.bf16.mxu0 0
      %4630 = vmatpush1.bf16.msra.mxu0 0
      %4631 = vmatprep.subr.bf16.mxu0 0
      %4632 = vmatpush1.bf16.msra.mxu0 0
      %4633 = vmatprep.subr.bf16.mxu0 0
      %4634 = vmatpush1.bf16.msra.mxu0 0
      %4635 = vmatprep.subr.bf16.mxu0 0
      %4636 = vmatpush1.bf16.msra.mxu0 0
      %4637 = vmatprep.subr.bf16.mxu0 0
      %4638 = vmatpush1.bf16.msra.mxu0 0
      %4639 = vmatprep.subr.bf16.mxu0 0
      %4640 = vmatpush1.bf16.msra.mxu0 0
      %4641 = vmatprep.mubr.bf16.mxu0 0
      %4642 = vmatmul.mubr.bf16.gmra.mrb[0].mxu0 %v4553
      %v4643 = vpop.f32.mrb[0].mxu0
      %v4644 = vadd.f32 0.0, %v4643
      %v4645 = vpop.f32.mrb[0].mxu0
      %v4646 = vpop.f32.mrb[0].mxu0
      %v4647 = vadd.f32 0.0, %v4646
      %v4648 = vpop.f32.mrb[0].mxu0
      %4649 = vmatprep.mubr.bf16.mxu0 0
      %4650 = vmatmul.mubr.bf16.gmra.mrb[0].mxu0 %v4554
      %v4651 = vpop.f32.mrb[0].mxu0
      %v4652 = vadd.f32 0.0, %v4651
      %v4653 = vpop.f32.mrb[0].mxu0
      %v4654 = vpop.f32.mrb[0].mxu0
      %v4655 = vadd.f32 0.0, %v4654
      %v4656 = vpop.f32.mrb[0].mxu0
      %4657 = vmatprep.mubr.bf16.mxu0 0
      %4658 = vmatmul.mubr.bf16.gmra.mrb[0].mxu0 %v4555
      %v4659 = vpop.f32.mrb[0].mxu0
      %v4660 = vadd.f32 0.0, %v4659
      %v4661 = vpop.f32.mrb[0].mxu0
      %v4662 = vpop.f32.mrb[0].mxu0
      %v4663 = vadd.f32 0.0, %v4662
      %v4664 = vpop.f32.mrb[0].mxu0
      %4665 = vmatprep.mubr.bf16.mxu0 0
      %4666 = vmatmul.mubr.bf16.gmra.mrb[0].mxu0 %v4556
      %v4667 = vpop.f32.mrb[0].mxu0
      %v4668 = vadd.f32 0.0, %v4667
      %v4669 = vpop.f32.mrb[0].mxu0
      %v4670 = vpop.f32.mrb[0].mxu0
      %v4671 = vadd.f32 0.0, %v4670
      %v4672 = vpop.f32.mrb[0].mxu0
      %4673 = vdwg.mxu0
      %v4674 = vadd.f32 %v4464, %v4644
      %v4675 = vadd.f32 %v4465, %v4647
      %v4676 = vadd.f32 %v4466, %v4652
      %v4677 = vadd.f32 %v4467, %v4655
      %v4678 = vadd.f32 %v4468, %v4660
      %v4679 = vadd.f32 %v4469, %v4663
      %v4680 = vadd.f32 %v4470, %v4668
      %v4681 = vadd.f32 %v4471, %v4671
      %v4682 = vld [vmem:[%s1204] sm:$0xf]
      %v4683 = vld [vmem:[%s1204 + $0x4] sm:$0x1]
      %v4684 = vld [vmem:[%s1204 + $0x8] sm:$0xf]
      %v4685 = vld [vmem:[%s1204 + $0xc] sm:$0x1]
      %v4686 = vld [vmem:[%s1204 + $0x10] sm:$0xf]
      %v4687 = vld [vmem:[%s1204 + $0x14] sm:$0x1]
      %v4688 = vld [vmem:[%s1204 + $0x18] sm:$0xf]
      %v4689 = vld [vmem:[%s1204 + $0x1c] sm:$0x1]
      %v4690 = vld [vmem:[%s1204 + $0x20] sm:$0xf]
      %v4691 = vld [vmem:[%s1204 + $0x24] sm:$0x1]
      %v4692 = vld [vmem:[%s1204 + $0x28] sm:$0xf]
      %v4693 = vld [vmem:[%s1204 + $0x2c] sm:$0x1]
      %v4694 = vld [vmem:[%s1204 + $0x30] sm:$0xf]
      %v4695 = vld [vmem:[%s1204 + $0x34] sm:$0x1]
      %v4696 = vld [vmem:[%s1204 + $0x38] sm:$0xf]
      %v4697 = vld [vmem:[%s1204 + $0x3c] sm:$0x1]
      %v4698 = vunpack.c.l.bf16 %v4682
      %v4699 = vunpack.c.l.bf16 %v4683
      %v4700 = vunpack.c.l.bf16 %v4684
      %v4701 = vunpack.c.l.bf16 %v4685
      %v4702 = vunpack.c.l.bf16 %v4686
      %v4703 = vunpack.c.l.bf16 %v4687
      %v4704 = vunpack.c.l.bf16 %v4688
      %v4705 = vunpack.c.l.bf16 %v4689
      %v4706 = vunpack.c.l.bf16 %v4690
      %v4707 = vunpack.c.l.bf16 %v4691
      %v4708 = vunpack.c.l.bf16 %v4692
      %v4709 = vunpack.c.l.bf16 %v4693
      %v4710 = vunpack.c.l.bf16 %v4694
      %v4711 = vunpack.c.l.bf16 %v4695
      %v4712 = vunpack.c.l.bf16 %v4696
      %v4713 = vunpack.c.l.bf16 %v4697
      %vm4730 = vcmask 1046528
      %v4731 = vrot.slane %v4698, 1
      %v4732 = vrot.slane %v4699, 1
      %v4733 = vsel %vm4730, %v4731, %v4732
      %v4734 = vrot.slane %v4700, 1
      %v4735 = vrot.slane %v4701, 1
      %v4736 = vsel %vm4730, %v4734, %v4735
      %v4737 = vrot.slane %v4702, 1
      %v4738 = vrot.slane %v4703, 1
      %v4739 = vsel %vm4730, %v4737, %v4738
      %v4740 = vrot.slane %v4704, 1
      %v4741 = vrot.slane %v4705, 1
      %v4742 = vsel %vm4730, %v4740, %v4741
      %v4743 = vrot.slane %v4706, 1
      %v4744 = vrot.slane %v4707, 1
      %v4745 = vsel %vm4730, %v4743, %v4744
      %v4746 = vrot.slane %v4708, 1
      %v4747 = vrot.slane %v4709, 1
      %v4748 = vsel %vm4730, %v4746, %v4747
      %v4749 = vrot.slane %v4710, 1
      %v4750 = vrot.slane %v4711, 1
      %v4751 = vsel %vm4730, %v4749, %v4750
      %v4752 = vrot.slane %v4712, 1
      %v4753 = vrot.slane %v4713, 1
      %v4754 = vsel %vm4730, %v4752, %v4753
      %v4763 = vld [vmem:[%s299] sm:$0x1]
      %v4765 = vlaneseq
      %v4766 = vshrl.u32 %v4765, 7
      %v4767 = vsub.s32 0, %v4766
      %v4768 = vrot.slane %v4763, %v4767
      %v4770 = vadd.f32 %v4674, %v4768
      %v4771 = vadd.f32 %v4675, %v4768
      %v4772 = vadd.f32 %v4676, %v4768
      %v4773 = vadd.f32 %v4677, %v4768
      %v4774 = vadd.f32 %v4678, %v4768
      %v4775 = vadd.f32 %v4679, %v4768
      %v4776 = vadd.f32 %v4680, %v4768
      %v4777 = vadd.f32 %v4681, %v4768
      %v4778 = vadd.f32 %v4770, %v4733
      %v4779 = vadd.f32 %v4771, %v4736
      %v4780 = vadd.f32 %v4772, %v4739
      %v4781 = vadd.f32 %v4773, %v4742
      %v4782 = vadd.f32 %v4774, %v4745
      %v4783 = vadd.f32 %v4775, %v4748
      %v4784 = vadd.f32 %v4776, %v4751
      %v4785 = vadd.f32 %v4777, %v4754
      %v4786 = vmax.f32 %v4778, 0.0
      %v4787 = vmax.f32 %v4779, 0.0
      %v4788 = vmax.f32 %v4780, 0.0
      %v4789 = vmax.f32 %v4781, 0.0
      %v4790 = vmax.f32 %v4782, 0.0
      %v4791 = vmax.f32 %v4783, 0.0
      %v4792 = vmax.f32 %v4784, 0.0
      %v4793 = vmax.f32 %v4785, 0.0
      %v4794 = vpack.c.bf16 %v4786, %v4786
      %v4795 = vpack.c.bf16 %v4787, %v4787
      %v4796 = vpack.c.bf16 %v4788, %v4788
      %v4797 = vpack.c.bf16 %v4789, %v4789
      %v4798 = vpack.c.bf16 %v4790, %v4790
      %v4799 = vpack.c.bf16 %v4791, %v4791
      %v4800 = vpack.c.bf16 %v4792, %v4792
      %v4801 = vpack.c.bf16 %v4793, %v4793
      %p4802 = scmp.lt.s32.totalorder %s21, 1
      // Predicated region
      $region45: #{downsample_block_forward.3} parent=39 // pred_check
        %p4803 = pneg %p4802
      $region46: #{downsample_block_forward.3} parent=39 // pred_check_branch
        %4805 = sbr.rel (%p4803) target = $region48
      $region47: #{downsample_block_forward.3} parent=39 // pred_region
        %v4814 = vunpack.c.l.b16 %v4794
        %v4815 = vunpack.c.l.b16 %v4795
        %v4816 = vunpack.c.l.b16 %v4796
        %v4817 = vunpack.c.l.b16 %v4797
        %v4818 = vunpack.c.l.b16 %v4798
        %v4819 = vunpack.c.l.b16 %v4799
        %v4820 = vunpack.c.l.b16 %v4800
        %v4821 = vunpack.c.l.b16 %v4801
        %v4822 = vpack.c.b16 %v4814, %v4814
        %v4823 = vpack.c.b16 %v4815, %v4815
        %v4824 = vpack.c.b16 %v4816, %v4816
        %v4825 = vpack.c.b16 %v4817, %v4817
        %v4826 = vpack.c.b16 %v4818, %v4818
        %v4827 = vpack.c.b16 %v4819, %v4819
        %v4828 = vpack.c.b16 %v4820, %v4820
        %v4829 = vpack.c.b16 %v4821, %v4821
        %v4831 = vshrl.u32 %v4822, 16
        %v4833 = vrot.slane %v4831, 7
        %v4834 = vshll.u32 %v4822, 16
        %v4836 = vor.u32 %v4833, %v4834
        %v4837 = vrot.slane %v4833, 4
        %v4839 = vshrl.u32 %v4823, 16
        %v4841 = vrot.slane %v4839, 7
        %v4842 = vshll.u32 %v4823, 16
        %v4844 = vor.u32 %v4841, %v4842
        %v4845 = vrot.slane %v4841, 4
        %v4847 = vshrl.u32 %v4824, 16
        %v4849 = vrot.slane %v4847, 7
        %v4850 = vshll.u32 %v4824, 16
        %v4852 = vor.u32 %v4849, %v4850
        %v4853 = vrot.slane %v4849, 4
        %v4855 = vshrl.u32 %v4825, 16
        %v4857 = vrot.slane %v4855, 7
        %v4858 = vshll.u32 %v4825, 16
        %v4860 = vor.u32 %v4857, %v4858
        %v4861 = vrot.slane %v4857, 4
        %v4863 = vshrl.u32 %v4826, 16
        %v4865 = vrot.slane %v4863, 7
        %v4866 = vshll.u32 %v4826, 16
        %v4868 = vor.u32 %v4865, %v4866
        %v4869 = vrot.slane %v4865, 4
        %v4871 = vshrl.u32 %v4827, 16
        %v4873 = vrot.slane %v4871, 7
        %v4874 = vshll.u32 %v4827, 16
        %v4876 = vor.u32 %v4873, %v4874
        %v4877 = vrot.slane %v4873, 4
        %v4879 = vshrl.u32 %v4828, 16
        %v4881 = vrot.slane %v4879, 7
        %v4882 = vshll.u32 %v4828, 16
        %v4884 = vor.u32 %v4881, %v4882
        %v4885 = vrot.slane %v4881, 4
        %v4887 = vshrl.u32 %v4829, 16
        %v4889 = vrot.slane %v4887, 7
        %v4890 = vshll.u32 %v4829, 16
        %v4892 = vor.u32 %v4889, %v4890
        %v4893 = vrot.slane %v4889, 4
        %v4910 = vld [vmem:[%s1204] sm:$0xf]
        %v4911 = vsel %vm2668, %v4836, %v4910
        %4912 = vst [vmem:[%s1204] sm:$0xf] %v4911
        %v4913 = vld [vmem:[%s1204 + $0x4] sm:$0x1]
        %v4914 = vsel %vm2674, %v4837, %v4913
        %4915 = vst [vmem:[%s1204 + $0x4] sm:$0x1] %v4914
        %v4916 = vld [vmem:[%s1204 + $0x8] sm:$0xf]
        %v4917 = vsel %vm2668, %v4844, %v4916
        %4918 = vst [vmem:[%s1204 + $0x8] sm:$0xf] %v4917
        %v4919 = vld [vmem:[%s1204 + $0xc] sm:$0x1]
        %v4920 = vsel %vm2674, %v4845, %v4919
        %4921 = vst [vmem:[%s1204 + $0xc] sm:$0x1] %v4920
        %v4922 = vld [vmem:[%s1204 + $0x10] sm:$0xf]
        %v4923 = vsel %vm2668, %v4852, %v4922
        %4924 = vst [vmem:[%s1204 + $0x10] sm:$0xf] %v4923
        %v4925 = vld [vmem:[%s1204 + $0x14] sm:$0x1]
        %v4926 = vsel %vm2674, %v4853, %v4925
        %4927 = vst [vmem:[%s1204 + $0x14] sm:$0x1] %v4926
        %v4928 = vld [vmem:[%s1204 + $0x18] sm:$0xf]
        %v4929 = vsel %vm2668, %v4860, %v4928
        %4930 = vst [vmem:[%s1204 + $0x18] sm:$0xf] %v4929
        %v4931 = vld [vmem:[%s1204 + $0x1c] sm:$0x1]
        %v4932 = vsel %vm2674, %v4861, %v4931
        %4933 = vst [vmem:[%s1204 + $0x1c] sm:$0x1] %v4932
        %v4934 = vld [vmem:[%s1204 + $0x20] sm:$0xf]
        %v4935 = vsel %vm2668, %v4868, %v4934
        %4936 = vst [vmem:[%s1204 + $0x20] sm:$0xf] %v4935
        %v4937 = vld [vmem:[%s1204 + $0x24] sm:$0x1]
        %v4938 = vsel %vm2674, %v4869, %v4937
        %4939 = vst [vmem:[%s1204 + $0x24] sm:$0x1] %v4938
        %v4940 = vld [vmem:[%s1204 + $0x28] sm:$0xf]
        %v4941 = vsel %vm2668, %v4876, %v4940
        %4942 = vst [vmem:[%s1204 + $0x28] sm:$0xf] %v4941
        %v4943 = vld [vmem:[%s1204 + $0x2c] sm:$0x1]
        %v4944 = vsel %vm2674, %v4877, %v4943
        %4945 = vst [vmem:[%s1204 + $0x2c] sm:$0x1] %v4944
        %v4946 = vld [vmem:[%s1204 + $0x30] sm:$0xf]
        %v4947 = vsel %vm2668, %v4884, %v4946
        %4948 = vst [vmem:[%s1204 + $0x30] sm:$0xf] %v4947
        %v4949 = vld [vmem:[%s1204 + $0x34] sm:$0x1]
        %v4950 = vsel %vm2674, %v4885, %v4949
        %4951 = vst [vmem:[%s1204 + $0x34] sm:$0x1] %v4950
        %v4952 = vld [vmem:[%s1204 + $0x38] sm:$0xf]
        %v4953 = vsel %vm2668, %v4892, %v4952
        %4954 = vst [vmem:[%s1204 + $0x38] sm:$0xf] %v4953
        %v4955 = vld [vmem:[%s1204 + $0x3c] sm:$0x1]
        %v4956 = vsel %vm2674, %v4893, %v4955
        %4957 = vst [vmem:[%s1204 + $0x3c] sm:$0x1] %v4956
      $region48: #{downsample_block_forward.3} parent=39 // pred_fallthru
        _
      %p4958 = scmp.eq.s32.totalorder %s21, 1
      // Predicated region
      $region49: #{downsample_block_forward.3} parent=39 // pred_check
        %p4959 = pneg %p4958
      $region50: #{downsample_block_forward.3} parent=39 // pred_check_branch
        %4961 = sbr.rel (%p4959) target = $region52
      $region51: #{downsample_block_forward.3} parent=39 // pred_region
        %4962 = vst [vmem:[%s304] sm:$0xf] %v4794
        %4963 = vst [vmem:[%s304 + $0x4] sm:$0xf] %v4795
        %4964 = vst [vmem:[%s304 + $0x8] sm:$0xf] %v4796
        %4965 = vst [vmem:[%s304 + $0xc] sm:$0xf] %v4797
        %4966 = vst [vmem:[%s304 + $0x10] sm:$0xf] %v4798
        %4967 = vst [vmem:[%s304 + $0x14] sm:$0xf] %v4799
        %4968 = vst [vmem:[%s304 + $0x18] sm:$0xf] %v4800
        %4969 = vst [vmem:[%s304 + $0x1c] sm:$0xf] %v4801
      $region52: #{downsample_block_forward.3} parent=39 // pred_fallthru
        _
      %p4970 = scmp.lt.s32.totalorder %s20, 1
      %s4971 = scalar_select %p4970, %s20, 1
      %s4972 = smul.addr %s4971, 8
      %s4973 = smul.addr %s4972, 4
      %s4974 = scalar_lea.vmem %s5, %s4973
      // Predicated region
      $region53: #{downsample_block_forward.3} parent=39 // pred_check
        %p4975 = pneg %p176
      $region54: #{downsample_block_forward.3} parent=39 // pred_check_branch
        %4977 = sbr.rel (%p4975) target = $region56
      $region55: #{downsample_block_forward.3} parent=39 // pred_region
        _
      $region56: #{downsample_block_forward.3} parent=39 // pred_fallthru
        _
    $region40: #{downsample_block_forward.3} parent=5 // pred_fallthru
      _
    %p4978 = scmp.le.s32.totalorder 2, %s11
    // Predicated region
    $region57: #{downsample_block_forward.3} parent=5 // pred_check
      %p4979 = pneg %p4978
    $region58: #{downsample_block_forward.3} parent=5 // pred_check_branch
      %4981 = sbr.rel (%p4979) target = $region60
    $region59: #{downsample_block_forward.3} parent=5 // pred_region
      %s4982 = ssub.s32 %s11, 2
      // Predicated region
      $region61: #{downsample_block_forward.3} parent=59 // pred_check
        %p4983 = pneg %p182
      $region62: #{downsample_block_forward.3} parent=59 // pred_check_branch
        %4985 = sbr.rel (%p4983) target = $region64
      $region63: #{downsample_block_forward.3} parent=59 // pred_region
        %p4986 = scmp.lt.s32.totalorder %s22, 1
        %s4987 = scalar_select %p4986, %s22, 1
        %s4988 = smul.addr %s4987, 8
        %s4989 = smul.addr %s4988, 4
        %s4990 = scalar_lea.vmem %s5, %s4989
      $region64: #{downsample_block_forward.3} parent=59 // pred_fallthru
        _
    $region60: #{downsample_block_forward.3} parent=5 // pred_fallthru
      _
  $region6: #{downsample_block_forward.3} parent=0 // loop_footer
    %s15 = sadd.s32 1, %s11
  $region7: #{downsample_block_forward.3} parent=0 // loop_footer_branch
    %10 = sbr.rel target = $region3
  $region8: #{downsample_block_forward.3} parent=0 // loop_exit
    _

</llo_original>
